<compile_context>
chip_gen: v7x
topology: tpu7x:2x2x1
jax: 0.10.0
libtpu: 0.0.40
codegen_flags: <defaults>
</compile_context>

<pallas_src>
import jax
import jax.numpy as jnp
from jax.experimental import pallas as pl
from jax.experimental.pallas import tpu as pltpu

# ------------------------- model configuration (small) -----------------------
VOCAB = 50          # token vocabulary (synthetic)
N_LANGS = 4         # language-embedding table size
MAX_POS = 16        # position-embedding table size
HIDDEN = 32         # hidden size (stands in for XLM's 1024)
N_HEADS = 4
HEAD_DIM = HIDDEN // N_HEADS
FFN_DIM = 4 * HIDDEN
N_LAYERS = 2
NUM_CLASSES = 3
CLS_PAD = 128       # lane-dense classifier output; sliced to NUM_CLASSES outside
LN_EPS = 1e-12      # XLM layer_norm_eps

VMEM_SPEC = pl.BlockSpec(memory_space=pltpu.MemorySpace.VMEM)


# ------------------------------- fused kernel --------------------------------
def _layer_norm(x, g, b):
    mu = jnp.mean(x, axis=-1, keepdims=True)
    var = jnp.mean(jnp.square(x - mu), axis=-1, keepdims=True)
    return (x - mu) * jax.lax.rsqrt(var + LN_EPS) * g + b


def _xlm_fused_kernel(x_ref, mask_m1_ref, mask_b1s_ref, pool_ref,
                      eg_ref, eb_ref,
                      wqkv_ref, bqkv_ref, wo_ref, bo_ref,
                      ln1g_ref, ln1b_ref, w1_ref, b1_ref, w2_ref, b2_ref,
                      ln2g_ref, ln2b_ref, clfw_ref, clfb_ref,
                      o_ref):
    # x:        (B*S, H)      summed embeddings (word+pos+lang+type)
    # mask_m1:  (B*S, 1)      1.0 = keep, 0.0 = padding
    # mask_b1s: (B, 1, S)
    # pool:     (B, B*S)      constant mean-pool matrix (1/S in block positions)
    # per-layer weights stacked on a leading N_LAYERS axis
    bsz, _, seq = mask_b1s_ref.shape
    hid = x_ref.shape[-1]

    mask_m1 = mask_m1_ref[...]                       # (M, 1)
    bias = (mask_b1s_ref[...] - 1.0) * 1e9           # 0 kept, -1e9 masked (f32)
    scale = 1.0 / (HEAD_DIM ** 0.5)

    # --- embedding layernorm + mask (dropout: identity in eval) ---
    x = _layer_norm(x_ref[...], eg_ref[...], eb_ref[...]) * mask_m1   # (M, H)

    # --- transformer layers (post-LN, XLM style); static layer loop ---
    for l in range(N_LAYERS):
        # fused QKV projection: one (M,H)x(H,3H) MXU pass
        qkv = jnp.dot(x, wqkv_ref[l], preferred_element_type=jnp.float32) + bqkv_ref[l]
        q = (qkv[:, 0 * hid:1 * hid] * scale).reshape(bsz, seq, hid)  # XLM scales q
        k = qkv[:, 1 * hid:2 * hid].reshape(bsz, seq, hid)
        v = qkv[:, 2 * hid:3 * hid].reshape(bsz, seq, hid)

        # batched (over B) attention; heads lane-concatenated into one value
        heads = []
        for h in range(N_HEADS):
            sl = slice(h * HEAD_DIM, (h + 1) * HEAD_DIM)
            s = jnp.einsum('bqd,bkd->bqk', q[:, :, sl], k[:, :, sl],
                           preferred_element_type=jnp.float32) + bias   # (B,S,S)
            s = s - jnp.max(s, axis=-1, keepdims=True)
            p = jnp.exp(s)
            denom = jnp.maximum(jnp.sum(p, axis=-1, keepdims=True), 1e-9)
            p = p * pl.reciprocal(denom, approx=True)                   # EUP vrcp
            heads.append(jnp.einsum('bqk,bkd->bqd', p, v[:, :, sl],
                                    preferred_element_type=jnp.float32))
        ctx = jnp.concatenate(heads, axis=-1).reshape(bsz * seq, hid)   # (M, H)

        attn_out = jnp.dot(ctx, wo_ref[l], preferred_element_type=jnp.float32) + bo_ref[l]
        x = _layer_norm(x + attn_out, ln1g_ref[l], ln1b_ref[l])

        h1 = jnp.dot(x, w1_ref[l], preferred_element_type=jnp.float32) + b1_ref[l]
        # TODO(synk): XLM uses exact erf-GELU; tanh approximation used here (EUP-friendly).
        h1 = jax.nn.gelu(h1, approximate=True)
        ffn_out = jnp.dot(h1, w2_ref[l], preferred_element_type=jnp.float32) + b2_ref[l]
        x = _layer_norm(x + ffn_out, ln2g_ref[l], ln2b_ref[l]) * mask_m1

    # --- mean-pool over seq (as a matmul) + classifier (lane-padded to 128) ---
    pooled = jnp.dot(pool_ref[...], x, preferred_element_type=jnp.float32)      # (B, H)
    o_ref[...] = (jnp.dot(pooled, clfw_ref[...], preferred_element_type=jnp.float32)
                  + clfb_ref[...])


# ----------------------------- parameter creation ----------------------------
def init_params(key):
    def nrm(k, shape, scale=0.02):
        return scale * jax.random.normal(k, shape, jnp.float32)

    keys = iter(jax.random.split(key, 4 + 4 * N_LAYERS))
    params = {
        "word_emb": nrm(next(keys), (VOCAB, HIDDEN)),
        "pos_emb": nrm(next(keys), (MAX_POS, HIDDEN)),
        "lang_emb": nrm(next(keys), (N_LANGS, HIDDEN)),
        "ln_emb_g": jnp.ones((1, HIDDEN), jnp.float32),
        "ln_emb_b": jnp.zeros((1, HIDDEN), jnp.float32),
        # per-layer weights stacked on a leading N_LAYERS axis (VMEM-resident)
        "wqkv": jnp.stack([nrm(next(keys), (HIDDEN, 3 * HIDDEN)) for _ in range(N_LAYERS)]),
        "bqkv": jnp.zeros((N_LAYERS, 1, 3 * HIDDEN), jnp.float32),
        "wo": jnp.stack([nrm(next(keys), (HIDDEN, HIDDEN)) for _ in range(N_LAYERS)]),
        "bo": jnp.zeros((N_LAYERS, 1, HIDDEN), jnp.float32),
        "ln1_g": jnp.ones((N_LAYERS, 1, HIDDEN), jnp.float32),
        "ln1_b": jnp.zeros((N_LAYERS, 1, HIDDEN), jnp.float32),
        "w1": jnp.stack([nrm(next(keys), (HIDDEN, FFN_DIM)) for _ in range(N_LAYERS)]),
        "b1": jnp.zeros((N_LAYERS, 1, FFN_DIM), jnp.float32),
        "w2": jnp.stack([nrm(next(keys), (FFN_DIM, HIDDEN)) for _ in range(N_LAYERS)]),
        "b2": jnp.zeros((N_LAYERS, 1, HIDDEN), jnp.float32),
        "ln2_g": jnp.ones((N_LAYERS, 1, HIDDEN), jnp.float32),
        "ln2_b": jnp.zeros((N_LAYERS, 1, HIDDEN), jnp.float32),
    }
    clf_w = nrm(next(keys), (HIDDEN, NUM_CLASSES))
    params["clf_w"] = jnp.zeros((HIDDEN, CLS_PAD), jnp.float32).at[:, :NUM_CLASSES].set(clf_w)
    params["clf_b"] = jnp.zeros((1, CLS_PAD), jnp.float32)
    return params


# -------------------------------- forward pass --------------------------------
def xlm_model_forward(params, languages, sequences, attention_mask, tokens_type):
    """Mirrors XLM_Model.forward: XLM encoder -> mean over seq -> dropout(eval) -> classifier."""
    bsz, seq = sequences.shape

    # --- embeddings (gathers are XLA glue) ---
    x = params["word_emb"][sequences]
    x = x + params["pos_emb"][jnp.arange(seq)][None, :, :]
    x = x + params["lang_emb"][languages]
    x = x + params["word_emb"][tokens_type]   # XLM reuses the word-emb table for token types
    x2 = x.reshape(bsz * seq, HIDDEN)

    maskf = attention_mask.astype(jnp.float32)
    mask_m1 = maskf.reshape(bsz * seq, 1)
    mask_b1s = maskf.reshape(bsz, 1, seq)
    # constant mean-pool matrix: pooled = pool_mat @ x2 (matches torch.mean(..., dim=1))
    pool_mat = jnp.repeat(jnp.eye(bsz, dtype=jnp.float32), seq, axis=1) / float(seq)

    logits_pad = pl.pallas_call(
        _xlm_fused_kernel,
        out_shape=jax.ShapeDtypeStruct((bsz, CLS_PAD), jnp.float32),
        in_specs=[VMEM_SPEC] * 20,
        out_specs=VMEM_SPEC,
    )(x2, mask_m1, mask_b1s, pool_mat,
      params["ln_emb_g"], params["ln_emb_b"],
      params["wqkv"], params["bqkv"], params["wo"], params["bo"],
      params["ln1_g"], params["ln1_b"], params["w1"], params["b1"],
      params["w2"], params["b2"], params["ln2_g"], params["ln2_b"],
      params["clf_w"], params["clf_b"])

    return logits_pad[:, :NUM_CLASSES]


# ------------------------------------ main ------------------------------------
if __name__ == "__main__":
    key = jax.random.PRNGKey(0)
    pkey, dkey = jax.random.split(key)
    params = init_params(pkey)

    B, S = 2, 8
    k1, k2, k3 = jax.random.split(dkey, 3)
    sequences = jax.random.randint(k1, (B, S), 0, VOCAB, dtype=jnp.int32)
    languages = jax.random.randint(k2, (B, S), 0, N_LANGS, dtype=jnp.int32)
    tokens_type = jax.random.randint(k3, (B, S), 0, 2, dtype=jnp.int32)
    attention_mask = jnp.ones((B, S), dtype=jnp.int32)

    logits = jax.jit(xlm_model_forward)(params, languages, sequences, attention_mask, tokens_type)
    logits = jax.block_until_ready(logits)
    assert logits.shape == (B, NUM_CLASSES)
    print("KERNEL_OK")
</pallas_src>

<mosaic_0001>
module attributes {stable_mosaic.version = 11 : i64} {
  func.func @_xlm_fused_kernel(%arg0: memref<16x32xf32, #tpu.memory_space<vmem>>, %arg1: memref<16x1xf32, #tpu.memory_space<vmem>>, %arg2: memref<2x1x8xf32, #tpu.memory_space<vmem>>, %arg3: memref<2x16xf32, #tpu.memory_space<vmem>>, %arg4: memref<1x32xf32, #tpu.memory_space<vmem>>, %arg5: memref<1x32xf32, #tpu.memory_space<vmem>>, %arg6: memref<2x32x96xf32, #tpu.memory_space<vmem>>, %arg7: memref<2x1x96xf32, #tpu.memory_space<vmem>>, %arg8: memref<2x32x32xf32, #tpu.memory_space<vmem>>, %arg9: memref<2x1x32xf32, #tpu.memory_space<vmem>>, %arg10: memref<2x1x32xf32, #tpu.memory_space<vmem>>, %arg11: memref<2x1x32xf32, #tpu.memory_space<vmem>>, %arg12: memref<2x32x128xf32, #tpu.memory_space<vmem>>, %arg13: memref<2x1x128xf32, #tpu.memory_space<vmem>>, %arg14: memref<2x128x32xf32, #tpu.memory_space<vmem>>, %arg15: memref<2x1x32xf32, #tpu.memory_space<vmem>>, %arg16: memref<2x1x32xf32, #tpu.memory_space<vmem>>, %arg17: memref<2x1x32xf32, #tpu.memory_space<vmem>>, %arg18: memref<32x128xf32, #tpu.memory_space<vmem>>, %arg19: memref<1x128xf32, #tpu.memory_space<vmem>>, %arg20: memref<2x128xf32, #tpu.memory_space<vmem>>) attributes {dimension_semantics = [], scalar_prefetch = 0 : i64, scratch_operands = 0 : i64, tpu.core_type = #tpu.core_type<tc>} {
    %c0 = arith.constant 0 : index
    %c0_0 = arith.constant 0 : index
    %0 = vector.load %arg1[%c0, %c0_0] : memref<16x1xf32, #tpu.memory_space<vmem>>, vector<16x1xf32>
    %c0_1 = arith.constant 0 : index
    %c0_2 = arith.constant 0 : index
    %c0_3 = arith.constant 0 : index
    %1 = vector.load %arg2[%c0_1, %c0_2, %c0_3] : memref<2x1x8xf32, #tpu.memory_space<vmem>>, vector<2x1x8xf32>
    %cst = arith.constant 1.000000e+00 : f32
    %2 = vector.broadcast %cst : f32 to vector<2x1x8xf32>
    %3 = arith.subf %1, %2 : vector<2x1x8xf32>
    %cst_4 = arith.constant 1.000000e+09 : f32
    %4 = vector.broadcast %cst_4 : f32 to vector<2x1x8xf32>
    %5 = arith.mulf %3, %4 : vector<2x1x8xf32>
    %c0_5 = arith.constant 0 : index
    %c0_6 = arith.constant 0 : index
    %6 = vector.load %arg0[%c0_5, %c0_6] : memref<16x32xf32, #tpu.memory_space<vmem>>, vector<16x32xf32>
    %c0_7 = arith.constant 0 : index
    %c0_8 = arith.constant 0 : index
    %7 = vector.load %arg4[%c0_7, %c0_8] : memref<1x32xf32, #tpu.memory_space<vmem>>, vector<1x32xf32>
    %c0_9 = arith.constant 0 : index
    %c0_10 = arith.constant 0 : index
    %8 = vector.load %arg5[%c0_9, %c0_10] : memref<1x32xf32, #tpu.memory_space<vmem>>, vector<1x32xf32>
    %cst_11 = arith.constant dense<0.000000e+00> : vector<16xf32>
    %9 = vector.multi_reduction <add>, %6, %cst_11 [1] : vector<16x32xf32> to vector<16xf32>
    %10 = vector.shape_cast %9 : vector<16xf32> to vector<16x1xf32>
    %cst_12 = arith.constant 3.200000e+01 : f32
    %11 = vector.broadcast %cst_12 : f32 to vector<16x1xf32>
    %12 = arith.divf %10, %11 : vector<16x1xf32>
    %13 = vector.broadcast %12 : vector<16x1xf32> to vector<16x32xf32>
    %14 = arith.subf %6, %13 : vector<16x32xf32>
    %15 = arith.mulf %14, %14 : vector<16x32xf32>
    %cst_13 = arith.constant dense<0.000000e+00> : vector<16xf32>
    %16 = vector.multi_reduction <add>, %15, %cst_13 [1] : vector<16x32xf32> to vector<16xf32>
    %17 = vector.shape_cast %16 : vector<16xf32> to vector<16x1xf32>
    %cst_14 = arith.constant 3.200000e+01 : f32
    %18 = vector.broadcast %cst_14 : f32 to vector<16x1xf32>
    %19 = arith.divf %17, %18 : vector<16x1xf32>
    %20 = vector.broadcast %12 : vector<16x1xf32> to vector<16x32xf32>
    %21 = arith.subf %6, %20 : vector<16x32xf32>
    %cst_15 = arith.constant 9.99999996E-13 : f32
    %22 = vector.broadcast %cst_15 : f32 to vector<16x1xf32>
    %23 = arith.addf %19, %22 : vector<16x1xf32>
    %24 = math.rsqrt %23 : vector<16x1xf32>
    %25 = vector.broadcast %24 : vector<16x1xf32> to vector<16x32xf32>
    %26 = arith.mulf %21, %25 : vector<16x32xf32>
    %27 = vector.broadcast %7 : vector<1x32xf32> to vector<16x32xf32>
    %28 = arith.mulf %26, %27 : vector<16x32xf32>
    %29 = vector.broadcast %8 : vector<1x32xf32> to vector<16x32xf32>
    %30 = arith.addf %28, %29 : vector<16x32xf32>
    %31 = vector.broadcast %0 : vector<16x1xf32> to vector<16x32xf32>
    %32 = arith.mulf %30, %31 : vector<16x32xf32>
    %c0_16 = arith.constant 0 : index
    %c0_17 = arith.constant 0 : index
    %c0_18 = arith.constant 0 : index
    %33 = vector.load %arg6[%c0_16, %c0_17, %c0_18] : memref<2x32x96xf32, #tpu.memory_space<vmem>>, vector<1x32x96xf32>
    %34 = vector.shape_cast %33 : vector<1x32x96xf32> to vector<32x96xf32>
    %cst_19 = arith.constant dense<0.000000e+00> : vector<16x96xf32>
    %35 = tpu.matmul %32, %34, %cst_19 {dimension_numbers = #tpu.dot_dimension_numbers<[1], [0], [0], [1], [0, 0, 1, 1], [], []>} : vector<16x32xf32>, vector<32x96xf32>, vector<16x96xf32> -> vector<16x96xf32>
    %c0_20 = arith.constant 0 : index
    %c0_21 = arith.constant 0 : index
    %c0_22 = arith.constant 0 : index
    %36 = vector.load %arg7[%c0_20, %c0_21, %c0_22] : memref<2x1x96xf32, #tpu.memory_space<vmem>>, vector<1x1x96xf32>
    %37 = vector.shape_cast %36 : vector<1x1x96xf32> to vector<1x96xf32>
    %38 = vector.broadcast %37 : vector<1x96xf32> to vector<16x96xf32>
    %39 = arith.addf %35, %38 : vector<16x96xf32>
    %40 = vector.extract_strided_slice %39 {offsets = [0, 0], sizes = [16, 32], strides = [1, 1]} : vector<16x96xf32> to vector<16x32xf32>
    %cst_23 = arith.constant 0.353553385 : f32
    %41 = vector.broadcast %cst_23 : f32 to vector<16x32xf32>
    %42 = arith.mulf %40, %41 : vector<16x32xf32>
    %43 = vector.shape_cast %42 : vector<16x32xf32> to vector<2x8x32xf32>
    %44 = vector.extract_strided_slice %39 {offsets = [0, 32], sizes = [16, 32], strides = [1, 1]} : vector<16x96xf32> to vector<16x32xf32>
    %45 = vector.shape_cast %44 : vector<16x32xf32> to vector<2x8x32xf32>
    %46 = vector.extract_strided_slice %39 {offsets = [0, 64], sizes = [16, 32], strides = [1, 1]} : vector<16x96xf32> to vector<16x32xf32>
    %47 = vector.shape_cast %46 : vector<16x32xf32> to vector<2x8x32xf32>
    %48 = vector.extract_strided_slice %43 {offsets = [0, 0, 0], sizes = [2, 8, 8], strides = [1, 1, 1]} : vector<2x8x32xf32> to vector<2x8x8xf32>
    %49 = vector.extract_strided_slice %45 {offsets = [0, 0, 0], sizes = [2, 8, 8], strides = [1, 1, 1]} : vector<2x8x32xf32> to vector<2x8x8xf32>
    "tpu.trace_start"() <{level = 10 : i32, message = "bqd,bkd->bqk"}> : () -> ()
    %cst_24 = arith.constant dense<0.000000e+00> : vector<2x8x8xf32>
    %50 = tpu.matmul %48, %49, %cst_24 {dimension_numbers = #tpu.dot_dimension_numbers<[2], [2], [1], [1], [0, 0, 0, 1, 1, 1], [0], [0]>} : vector<2x8x8xf32>, vector<2x8x8xf32>, vector<2x8x8xf32> -> vector<2x8x8xf32>
    "tpu.trace_stop"() : () -> ()
    %51 = vector.broadcast %5 : vector<2x1x8xf32> to vector<2x8x8xf32>
    %52 = arith.addf %50, %51 : vector<2x8x8xf32>
    %cst_25 = arith.constant dense<0xFF800000> : vector<2x8xf32>
    %53 = vector.multi_reduction <maximumf>, %52, %cst_25 [2] : vector<2x8x8xf32> to vector<2x8xf32>
    %54 = vector.shape_cast %53 : vector<2x8xf32> to vector<2x8x1xf32>
    %55 = vector.broadcast %54 : vector<2x8x1xf32> to vector<2x8x8xf32>
    %56 = arith.subf %52, %55 : vector<2x8x8xf32>
    %57 = math.exp %56 : vector<2x8x8xf32>
    %cst_26 = arith.constant dense<0.000000e+00> : vector<2x8xf32>
    %58 = vector.multi_reduction <add>, %57, %cst_26 [2] : vector<2x8x8xf32> to vector<2x8xf32>
    %59 = vector.shape_cast %58 : vector<2x8xf32> to vector<2x8x1xf32>
    %cst_27 = arith.constant 9.99999971E-10 : f32
    %60 = vector.broadcast %cst_27 : f32 to vector<2x8x1xf32>
    %61 = arith.maximumf %59, %60 : vector<2x8x1xf32>
    %62 = tpu.reciprocal %61 {approx = true} : vector<2x8x1xf32> -> vector<2x8x1xf32>
    %63 = vector.broadcast %62 : vector<2x8x1xf32> to vector<2x8x8xf32>
    %64 = arith.mulf %57, %63 : vector<2x8x8xf32>
    %65 = vector.extract_strided_slice %47 {offsets = [0, 0, 0], sizes = [2, 8, 8], strides = [1, 1, 1]} : vector<2x8x32xf32> to vector<2x8x8xf32>
    "tpu.trace_start"() <{level = 10 : i32, message = "bqk,bkd->bqd"}> : () -> ()
    %cst_28 = arith.constant dense<0.000000e+00> : vector<2x8x8xf32>
    %66 = tpu.matmul %64, %65, %cst_28 {dimension_numbers = #tpu.dot_dimension_numbers<[2], [1], [1], [2], [0, 0, 0, 1, 1, 2], [0], [0]>} : vector<2x8x8xf32>, vector<2x8x8xf32>, vector<2x8x8xf32> -> vector<2x8x8xf32>
    "tpu.trace_stop"() : () -> ()
    %67 = vector.extract_strided_slice %43 {offsets = [0, 0, 8], sizes = [2, 8, 8], strides = [1, 1, 1]} : vector<2x8x32xf32> to vector<2x8x8xf32>
    %68 = vector.extract_strided_slice %45 {offsets = [0, 0, 8], sizes = [2, 8, 8], strides = [1, 1, 1]} : vector<2x8x32xf32> to vector<2x8x8xf32>
    "tpu.trace_start"() <{level = 10 : i32, message = "bqd,bkd->bqk"}> : () -> ()
    %cst_29 = arith.constant dense<0.000000e+00> : vector<2x8x8xf32>
    %69 = tpu.matmul %67, %68, %cst_29 {dimension_numbers = #tpu.dot_dimension_numbers<[2], [2], [1], [1], [0, 0, 0, 1, 1, 1], [0], [0]>} : vector<2x8x8xf32>, vector<2x8x8xf32>, vector<2x8x8xf32> -> vector<2x8x8xf32>
    "tpu.trace_stop"() : () -> ()
    %70 = vector.broadcast %5 : vector<2x1x8xf32> to vector<2x8x8xf32>
    %71 = arith.addf %69, %70 : vector<2x8x8xf32>
    %cst_30 = arith.constant dense<0xFF800000> : vector<2x8xf32>
    %72 = vector.multi_reduction <maximumf>, %71, %cst_30 [2] : vector<2x8x8xf32> to vector<2x8xf32>
    %73 = vector.shape_cast %72 : vector<2x8xf32> to vector<2x8x1xf32>
    %74 = vector.broadcast %73 : vector<2x8x1xf32> to vector<2x8x8xf32>
    %75 = arith.subf %71, %74 : vector<2x8x8xf32>
    %76 = math.exp %75 : vector<2x8x8xf32>
    %cst_31 = arith.constant dense<0.000000e+00> : vector<2x8xf32>
    %77 = vector.multi_reduction <add>, %76, %cst_31 [2] : vector<2x8x8xf32> to vector<2x8xf32>
    %78 = vector.shape_cast %77 : vector<2x8xf32> to vector<2x8x1xf32>
    %cst_32 = arith.constant 9.99999971E-10 : f32
    %79 = vector.broadcast %cst_32 : f32 to vector<2x8x1xf32>
    %80 = arith.maximumf %78, %79 : vector<2x8x1xf32>
    %81 = tpu.reciprocal %80 {approx = true} : vector<2x8x1xf32> -> vector<2x8x1xf32>
    %82 = vector.broadcast %81 : vector<2x8x1xf32> to vector<2x8x8xf32>
    %83 = arith.mulf %76, %82 : vector<2x8x8xf32>
    %84 = vector.extract_strided_slice %47 {offsets = [0, 0, 8], sizes = [2, 8, 8], strides = [1, 1, 1]} : vector<2x8x32xf32> to vector<2x8x8xf32>
    "tpu.trace_start"() <{level = 10 : i32, message = "bqk,bkd->bqd"}> : () -> ()
    %cst_33 = arith.constant dense<0.000000e+00> : vector<2x8x8xf32>
    %85 = tpu.matmul %83, %84, %cst_33 {dimension_numbers = #tpu.dot_dimension_numbers<[2], [1], [1], [2], [0, 0, 0, 1, 1, 2], [0], [0]>} : vector<2x8x8xf32>, vector<2x8x8xf32>, vector<2x8x8xf32> -> vector<2x8x8xf32>
    "tpu.trace_stop"() : () -> ()
    %86 = vector.extract_strided_slice %43 {offsets = [0, 0, 16], sizes = [2, 8, 8], strides = [1, 1, 1]} : vector<2x8x32xf32> to vector<2x8x8xf32>
    %87 = vector.extract_strided_slice %45 {offsets = [0, 0, 16], sizes = [2, 8, 8], strides = [1, 1, 1]} : vector<2x8x32xf32> to vector<2x8x8xf32>
    "tpu.trace_start"() <{level = 10 : i32, message = "bqd,bkd->bqk"}> : () -> ()
    %cst_34 = arith.constant dense<0.000000e+00> : vector<2x8x8xf32>
    %88 = tpu.matmul %86, %87, %cst_34 {dimension_numbers = #tpu.dot_dimension_numbers<[2], [2], [1], [1], [0, 0, 0, 1, 1, 1], [0], [0]>} : vector<2x8x8xf32>, vector<2x8x8xf32>, vector<2x8x8xf32> -> vector<2x8x8xf32>
    "tpu.trace_stop"() : () -> ()
    %89 = vector.broadcast %5 : vector<2x1x8xf32> to vector<2x8x8xf32>
    %90 = arith.addf %88, %89 : vector<2x8x8xf32>
    %cst_35 = arith.constant dense<0xFF800000> : vector<2x8xf32>
    %91 = vector.multi_reduction <maximumf>, %90, %cst_35 [2] : vector<2x8x8xf32> to vector<2x8xf32>
    %92 = vector.shape_cast %91 : vector<2x8xf32> to vector<2x8x1xf32>
    %93 = vector.broadcast %92 : vector<2x8x1xf32> to vector<2x8x8xf32>
    %94 = arith.subf %90, %93 : vector<2x8x8xf32>
    %95 = math.exp %94 : vector<2x8x8xf32>
    %cst_36 = arith.constant dense<0.000000e+00> : vector<2x8xf32>
    %96 = vector.multi_reduction <add>, %95, %cst_36 [2] : vector<2x8x8xf32> to vector<2x8xf32>
    %97 = vector.shape_cast %96 : vector<2x8xf32> to vector<2x8x1xf32>
    %cst_37 = arith.constant 9.99999971E-10 : f32
    %98 = vector.broadcast %cst_37 : f32 to vector<2x8x1xf32>
    %99 = arith.maximumf %97, %98 : vector<2x8x1xf32>
    %100 = tpu.reciprocal %99 {approx = true} : vector<2x8x1xf32> -> vector<2x8x1xf32>
    %101 = vector.broadcast %100 : vector<2x8x1xf32> to vector<2x8x8xf32>
    %102 = arith.mulf %95, %101 : vector<2x8x8xf32>
    %103 = vector.extract_strided_slice %47 {offsets = [0, 0, 16], sizes = [2, 8, 8], strides = [1, 1, 1]} : vector<2x8x32xf32> to vector<2x8x8xf32>
    "tpu.trace_start"() <{level = 10 : i32, message = "bqk,bkd->bqd"}> : () -> ()
    %cst_38 = arith.constant dense<0.000000e+00> : vector<2x8x8xf32>
    %104 = tpu.matmul %102, %103, %cst_38 {dimension_numbers = #tpu.dot_dimension_numbers<[2], [1], [1], [2], [0, 0, 0, 1, 1, 2], [0], [0]>} : vector<2x8x8xf32>, vector<2x8x8xf32>, vector<2x8x8xf32> -> vector<2x8x8xf32>
    "tpu.trace_stop"() : () -> ()
    %105 = vector.extract_strided_slice %43 {offsets = [0, 0, 24], sizes = [2, 8, 8], strides = [1, 1, 1]} : vector<2x8x32xf32> to vector<2x8x8xf32>
    %106 = vector.extract_strided_slice %45 {offsets = [0, 0, 24], sizes = [2, 8, 8], strides = [1, 1, 1]} : vector<2x8x32xf32> to vector<2x8x8xf32>
    "tpu.trace_start"() <{level = 10 : i32, message = "bqd,bkd->bqk"}> : () -> ()
    %cst_39 = arith.constant dense<0.000000e+00> : vector<2x8x8xf32>
    %107 = tpu.matmul %105, %106, %cst_39 {dimension_numbers = #tpu.dot_dimension_numbers<[2], [2], [1], [1], [0, 0, 0, 1, 1, 1], [0], [0]>} : vector<2x8x8xf32>, vector<2x8x8xf32>, vector<2x8x8xf32> -> vector<2x8x8xf32>
    "tpu.trace_stop"() : () -> ()
    %108 = vector.broadcast %5 : vector<2x1x8xf32> to vector<2x8x8xf32>
    %109 = arith.addf %107, %108 : vector<2x8x8xf32>
    %cst_40 = arith.constant dense<0xFF800000> : vector<2x8xf32>
    %110 = vector.multi_reduction <maximumf>, %109, %cst_40 [2] : vector<2x8x8xf32> to vector<2x8xf32>
    %111 = vector.shape_cast %110 : vector<2x8xf32> to vector<2x8x1xf32>
    %112 = vector.broadcast %111 : vector<2x8x1xf32> to vector<2x8x8xf32>
    %113 = arith.subf %109, %112 : vector<2x8x8xf32>
    %114 = math.exp %113 : vector<2x8x8xf32>
    %cst_41 = arith.constant dense<0.000000e+00> : vector<2x8xf32>
    %115 = vector.multi_reduction <add>, %114, %cst_41 [2] : vector<2x8x8xf32> to vector<2x8xf32>
    %116 = vector.shape_cast %115 : vector<2x8xf32> to vector<2x8x1xf32>
    %cst_42 = arith.constant 9.99999971E-10 : f32
    %117 = vector.broadcast %cst_42 : f32 to vector<2x8x1xf32>
    %118 = arith.maximumf %116, %117 : vector<2x8x1xf32>
    %119 = tpu.reciprocal %118 {approx = true} : vector<2x8x1xf32> -> vector<2x8x1xf32>
    %120 = vector.broadcast %119 : vector<2x8x1xf32> to vector<2x8x8xf32>
    %121 = arith.mulf %114, %120 : vector<2x8x8xf32>
    %122 = vector.extract_strided_slice %47 {offsets = [0, 0, 24], sizes = [2, 8, 8], strides = [1, 1, 1]} : vector<2x8x32xf32> to vector<2x8x8xf32>
    "tpu.trace_start"() <{level = 10 : i32, message = "bqk,bkd->bqd"}> : () -> ()
    %cst_43 = arith.constant dense<0.000000e+00> : vector<2x8x8xf32>
    %123 = tpu.matmul %121, %122, %cst_43 {dimension_numbers = #tpu.dot_dimension_numbers<[2], [1], [1], [2], [0, 0, 0, 1, 1, 2], [0], [0]>} : vector<2x8x8xf32>, vector<2x8x8xf32>, vector<2x8x8xf32> -> vector<2x8x8xf32>
    "tpu.trace_stop"() : () -> ()
    %124 = tpu.concatenate %66, %85, %104, %123 in 2 : vector<2x8x8xf32>, vector<2x8x8xf32>, vector<2x8x8xf32>, vector<2x8x8xf32> -> vector<2x8x32xf32>
    %125 = vector.shape_cast %124 : vector<2x8x32xf32> to vector<16x32xf32>
    %c0_44 = arith.constant 0 : index
    %c0_45 = arith.constant 0 : index
    %c0_46 = arith.constant 0 : index
    %126 = vector.load %arg8[%c0_44, %c0_45, %c0_46] : memref<2x32x32xf32, #tpu.memory_space<vmem>>, vector<1x32x32xf32>
    %127 = vector.shape_cast %126 : vector<1x32x32xf32> to vector<32x32xf32>
    %cst_47 = arith.constant dense<0.000000e+00> : vector<16x32xf32>
    %128 = tpu.matmul %125, %127, %cst_47 {dimension_numbers = #tpu.dot_dimension_numbers<[1], [0], [0], [1], [0, 0, 1, 1], [], []>} : vector<16x32xf32>, vector<32x32xf32>, vector<16x32xf32> -> vector<16x32xf32>
    %c0_48 = arith.constant 0 : index
    %c0_49 = arith.constant 0 : index
    %c0_50 = arith.constant 0 : index
    %129 = vector.load %arg9[%c0_48, %c0_49, %c0_50] : memref<2x1x32xf32, #tpu.memory_space<vmem>>, vector<1x1x32xf32>
    %130 = vector.shape_cast %129 : vector<1x1x32xf32> to vector<1x32xf32>
    %131 = vector.broadcast %130 : vector<1x32xf32> to vector<16x32xf32>
    %132 = arith.addf %128, %131 : vector<16x32xf32>
    %133 = arith.addf %32, %132 : vector<16x32xf32>
    %c0_51 = arith.constant 0 : index
    %c0_52 = arith.constant 0 : index
    %c0_53 = arith.constant 0 : index
    %134 = vector.load %arg10[%c0_51, %c0_52, %c0_53] : memref<2x1x32xf32, #tpu.memory_space<vmem>>, vector<1x1x32xf32>
    %135 = vector.shape_cast %134 : vector<1x1x32xf32> to vector<1x32xf32>
    %c0_54 = arith.constant 0 : index
    %c0_55 = arith.constant 0 : index
    %c0_56 = arith.constant 0 : index
    %136 = vector.load %arg11[%c0_54, %c0_55, %c0_56] : memref<2x1x32xf32, #tpu.memory_space<vmem>>, vector<1x1x32xf32>
    %137 = vector.shape_cast %136 : vector<1x1x32xf32> to vector<1x32xf32>
    %cst_57 = arith.constant dense<0.000000e+00> : vector<16xf32>
    %138 = vector.multi_reduction <add>, %133, %cst_57 [1] : vector<16x32xf32> to vector<16xf32>
    %139 = vector.shape_cast %138 : vector<16xf32> to vector<16x1xf32>
    %cst_58 = arith.constant 3.200000e+01 : f32
    %140 = vector.broadcast %cst_58 : f32 to vector<16x1xf32>
    %141 = arith.divf %139, %140 : vector<16x1xf32>
    %142 = vector.broadcast %141 : vector<16x1xf32> to vector<16x32xf32>
    %143 = arith.subf %133, %142 : vector<16x32xf32>
    %144 = arith.mulf %143, %143 : vector<16x32xf32>
    %cst_59 = arith.constant dense<0.000000e+00> : vector<16xf32>
    %145 = vector.multi_reduction <add>, %144, %cst_59 [1] : vector<16x32xf32> to vector<16xf32>
    %146 = vector.shape_cast %145 : vector<16xf32> to vector<16x1xf32>
    %cst_60 = arith.constant 3.200000e+01 : f32
    %147 = vector.broadcast %cst_60 : f32 to vector<16x1xf32>
    %148 = arith.divf %146, %147 : vector<16x1xf32>
    %149 = vector.broadcast %141 : vector<16x1xf32> to vector<16x32xf32>
    %150 = arith.subf %133, %149 : vector<16x32xf32>
    %cst_61 = arith.constant 9.99999996E-13 : f32
    %151 = vector.broadcast %cst_61 : f32 to vector<16x1xf32>
    %152 = arith.addf %148, %151 : vector<16x1xf32>
    %153 = math.rsqrt %152 : vector<16x1xf32>
    %154 = vector.broadcast %153 : vector<16x1xf32> to vector<16x32xf32>
    %155 = arith.mulf %150, %154 : vector<16x32xf32>
    %156 = vector.broadcast %135 : vector<1x32xf32> to vector<16x32xf32>
    %157 = arith.mulf %155, %156 : vector<16x32xf32>
    %158 = vector.broadcast %137 : vector<1x32xf32> to vector<16x32xf32>
    %159 = arith.addf %157, %158 : vector<16x32xf32>
    %c0_62 = arith.constant 0 : index
    %c0_63 = arith.constant 0 : index
    %c0_64 = arith.constant 0 : index
    %160 = vector.load %arg12[%c0_62, %c0_63, %c0_64] : memref<2x32x128xf32, #tpu.memory_space<vmem>>, vector<1x32x128xf32>
    %161 = vector.shape_cast %160 : vector<1x32x128xf32> to vector<32x128xf32>
    %cst_65 = arith.constant dense<0.000000e+00> : vector<16x128xf32>
    %162 = tpu.matmul %159, %161, %cst_65 {dimension_numbers = #tpu.dot_dimension_numbers<[1], [0], [0], [1], [0, 0, 1, 1], [], []>} : vector<16x32xf32>, vector<32x128xf32>, vector<16x128xf32> -> vector<16x128xf32>
    %c0_66 = arith.constant 0 : index
    %c0_67 = arith.constant 0 : index
    %c0_68 = arith.constant 0 : index
    %163 = vector.load %arg13[%c0_66, %c0_67, %c0_68] : memref<2x1x128xf32, #tpu.memory_space<vmem>>, vector<1x1x128xf32>
    %164 = vector.shape_cast %163 : vector<1x1x128xf32> to vector<1x128xf32>
    %165 = vector.broadcast %164 : vector<1x128xf32> to vector<16x128xf32>
    %166 = arith.addf %162, %165 : vector<16x128xf32>
    %167 = arith.mulf %166, %166 : vector<16x128xf32>
    %168 = arith.mulf %166, %167 : vector<16x128xf32>
    %cst_69 = arith.constant 4.471500e-02 : f32
    %169 = vector.broadcast %cst_69 : f32 to vector<16x128xf32>
    %170 = arith.mulf %169, %168 : vector<16x128xf32>
    %171 = arith.addf %166, %170 : vector<16x128xf32>
    %cst_70 = arith.constant 0.797884583 : f32
    %172 = vector.broadcast %cst_70 : f32 to vector<16x128xf32>
    %173 = arith.mulf %172, %171 : vector<16x128xf32>
    %174 = math.tanh %173 : vector<16x128xf32>
    %cst_71 = arith.constant 1.000000e+00 : f32
    %175 = vector.broadcast %cst_71 : f32 to vector<16x128xf32>
    %176 = arith.addf %175, %174 : vector<16x128xf32>
    %cst_72 = arith.constant 5.000000e-01 : f32
    %177 = vector.broadcast %cst_72 : f32 to vector<16x128xf32>
    %178 = arith.mulf %177, %176 : vector<16x128xf32>
    %179 = arith.mulf %166, %178 : vector<16x128xf32>
    %c0_73 = arith.constant 0 : index
    %c0_74 = arith.constant 0 : index
    %c0_75 = arith.constant 0 : index
    %180 = vector.load %arg14[%c0_73, %c0_74, %c0_75] : memref<2x128x32xf32, #tpu.memory_space<vmem>>, vector<1x128x32xf32>
    %181 = vector.shape_cast %180 : vector<1x128x32xf32> to vector<128x32xf32>
    %cst_76 = arith.constant dense<0.000000e+00> : vector<16x32xf32>
    %182 = tpu.matmul %179, %181, %cst_76 {dimension_numbers = #tpu.dot_dimension_numbers<[1], [0], [0], [1], [0, 0, 1, 1], [], []>} : vector<16x128xf32>, vector<128x32xf32>, vector<16x32xf32> -> vector<16x32xf32>
    %c0_77 = arith.constant 0 : index
    %c0_78 = arith.constant 0 : index
    %c0_79 = arith.constant 0 : index
    %183 = vector.load %arg15[%c0_77, %c0_78, %c0_79] : memref<2x1x32xf32, #tpu.memory_space<vmem>>, vector<1x1x32xf32>
    %184 = vector.shape_cast %183 : vector<1x1x32xf32> to vector<1x32xf32>
    %185 = vector.broadcast %184 : vector<1x32xf32> to vector<16x32xf32>
    %186 = arith.addf %182, %185 : vector<16x32xf32>
    %187 = arith.addf %159, %186 : vector<16x32xf32>
    %c0_80 = arith.constant 0 : index
    %c0_81 = arith.constant 0 : index
    %c0_82 = arith.constant 0 : index
    %188 = vector.load %arg16[%c0_80, %c0_81, %c0_82] : memref<2x1x32xf32, #tpu.memory_space<vmem>>, vector<1x1x32xf32>
    %189 = vector.shape_cast %188 : vector<1x1x32xf32> to vector<1x32xf32>
    %c0_83 = arith.constant 0 : index
    %c0_84 = arith.constant 0 : index
    %c0_85 = arith.constant 0 : index
    %190 = vector.load %arg17[%c0_83, %c0_84, %c0_85] : memref<2x1x32xf32, #tpu.memory_space<vmem>>, vector<1x1x32xf32>
    %191 = vector.shape_cast %190 : vector<1x1x32xf32> to vector<1x32xf32>
    %cst_86 = arith.constant dense<0.000000e+00> : vector<16xf32>
    %192 = vector.multi_reduction <add>, %187, %cst_86 [1] : vector<16x32xf32> to vector<16xf32>
    %193 = vector.shape_cast %192 : vector<16xf32> to vector<16x1xf32>
    %cst_87 = arith.constant 3.200000e+01 : f32
    %194 = vector.broadcast %cst_87 : f32 to vector<16x1xf32>
    %195 = arith.divf %193, %194 : vector<16x1xf32>
    %196 = vector.broadcast %195 : vector<16x1xf32> to vector<16x32xf32>
    %197 = arith.subf %187, %196 : vector<16x32xf32>
    %198 = arith.mulf %197, %197 : vector<16x32xf32>
    %cst_88 = arith.constant dense<0.000000e+00> : vector<16xf32>
    %199 = vector.multi_reduction <add>, %198, %cst_88 [1] : vector<16x32xf32> to vector<16xf32>
    %200 = vector.shape_cast %199 : vector<16xf32> to vector<16x1xf32>
    %cst_89 = arith.constant 3.200000e+01 : f32
    %201 = vector.broadcast %cst_89 : f32 to vector<16x1xf32>
    %202 = arith.divf %200, %201 : vector<16x1xf32>
    %203 = vector.broadcast %195 : vector<16x1xf32> to vector<16x32xf32>
    %204 = arith.subf %187, %203 : vector<16x32xf32>
    %cst_90 = arith.constant 9.99999996E-13 : f32
    %205 = vector.broadcast %cst_90 : f32 to vector<16x1xf32>
    %206 = arith.addf %202, %205 : vector<16x1xf32>
    %207 = math.rsqrt %206 : vector<16x1xf32>
    %208 = vector.broadcast %207 : vector<16x1xf32> to vector<16x32xf32>
    %209 = arith.mulf %204, %208 : vector<16x32xf32>
    %210 = vector.broadcast %189 : vector<1x32xf32> to vector<16x32xf32>
    %211 = arith.mulf %209, %210 : vector<16x32xf32>
    %212 = vector.broadcast %191 : vector<1x32xf32> to vector<16x32xf32>
    %213 = arith.addf %211, %212 : vector<16x32xf32>
    %214 = vector.broadcast %0 : vector<16x1xf32> to vector<16x32xf32>
    %215 = arith.mulf %213, %214 : vector<16x32xf32>
    %c1 = arith.constant 1 : index
    %c0_91 = arith.constant 0 : index
    %c0_92 = arith.constant 0 : index
    %216 = vector.load %arg6[%c1, %c0_91, %c0_92] : memref<2x32x96xf32, #tpu.memory_space<vmem>>, vector<1x32x96xf32>
    %217 = vector.shape_cast %216 : vector<1x32x96xf32> to vector<32x96xf32>
    %cst_93 = arith.constant dense<0.000000e+00> : vector<16x96xf32>
    %218 = tpu.matmul %215, %217, %cst_93 {dimension_numbers = #tpu.dot_dimension_numbers<[1], [0], [0], [1], [0, 0, 1, 1], [], []>} : vector<16x32xf32>, vector<32x96xf32>, vector<16x96xf32> -> vector<16x96xf32>
    %c1_94 = arith.constant 1 : index
    %c0_95 = arith.constant 0 : index
    %c0_96 = arith.constant 0 : index
    %219 = vector.load %arg7[%c1_94, %c0_95, %c0_96] : memref<2x1x96xf32, #tpu.memory_space<vmem>>, vector<1x1x96xf32>
    %220 = vector.shape_cast %219 : vector<1x1x96xf32> to vector<1x96xf32>
    %221 = vector.broadcast %220 : vector<1x96xf32> to vector<16x96xf32>
    %222 = arith.addf %218, %221 : vector<16x96xf32>
    %223 = vector.extract_strided_slice %222 {offsets = [0, 0], sizes = [16, 32], strides = [1, 1]} : vector<16x96xf32> to vector<16x32xf32>
    %cst_97 = arith.constant 0.353553385 : f32
    %224 = vector.broadcast %cst_97 : f32 to vector<16x32xf32>
    %225 = arith.mulf %223, %224 : vector<16x32xf32>
    %226 = vector.shape_cast %225 : vector<16x32xf32> to vector<2x8x32xf32>
    %227 = vector.extract_strided_slice %222 {offsets = [0, 32], sizes = [16, 32], strides = [1, 1]} : vector<16x96xf32> to vector<16x32xf32>
    %228 = vector.shape_cast %227 : vector<16x32xf32> to vector<2x8x32xf32>
    %229 = vector.extract_strided_slice %222 {offsets = [0, 64], sizes = [16, 32], strides = [1, 1]} : vector<16x96xf32> to vector<16x32xf32>
    %230 = vector.shape_cast %229 : vector<16x32xf32> to vector<2x8x32xf32>
    %231 = vector.extract_strided_slice %226 {offsets = [0, 0, 0], sizes = [2, 8, 8], strides = [1, 1, 1]} : vector<2x8x32xf32> to vector<2x8x8xf32>
    %232 = vector.extract_strided_slice %228 {offsets = [0, 0, 0], sizes = [2, 8, 8], strides = [1, 1, 1]} : vector<2x8x32xf32> to vector<2x8x8xf32>
    "tpu.trace_start"() <{level = 10 : i32, message = "bqd,bkd->bqk"}> : () -> ()
    %cst_98 = arith.constant dense<0.000000e+00> : vector<2x8x8xf32>
    %233 = tpu.matmul %231, %232, %cst_98 {dimension_numbers = #tpu.dot_dimension_numbers<[2], [2], [1], [1], [0, 0, 0, 1, 1, 1], [0], [0]>} : vector<2x8x8xf32>, vector<2x8x8xf32>, vector<2x8x8xf32> -> vector<2x8x8xf32>
    "tpu.trace_stop"() : () -> ()
    %234 = vector.broadcast %5 : vector<2x1x8xf32> to vector<2x8x8xf32>
    %235 = arith.addf %233, %234 : vector<2x8x8xf32>
    %cst_99 = arith.constant dense<0xFF800000> : vector<2x8xf32>
    %236 = vector.multi_reduction <maximumf>, %235, %cst_99 [2] : vector<2x8x8xf32> to vector<2x8xf32>
    %237 = vector.shape_cast %236 : vector<2x8xf32> to vector<2x8x1xf32>
    %238 = vector.broadcast %237 : vector<2x8x1xf32> to vector<2x8x8xf32>
    %239 = arith.subf %235, %238 : vector<2x8x8xf32>
    %240 = math.exp %239 : vector<2x8x8xf32>
    %cst_100 = arith.constant dense<0.000000e+00> : vector<2x8xf32>
    %241 = vector.multi_reduction <add>, %240, %cst_100 [2] : vector<2x8x8xf32> to vector<2x8xf32>
    %242 = vector.shape_cast %241 : vector<2x8xf32> to vector<2x8x1xf32>
    %cst_101 = arith.constant 9.99999971E-10 : f32
    %243 = vector.broadcast %cst_101 : f32 to vector<2x8x1xf32>
    %244 = arith.maximumf %242, %243 : vector<2x8x1xf32>
    %245 = tpu.reciprocal %244 {approx = true} : vector<2x8x1xf32> -> vector<2x8x1xf32>
    %246 = vector.broadcast %245 : vector<2x8x1xf32> to vector<2x8x8xf32>
    %247 = arith.mulf %240, %246 : vector<2x8x8xf32>
    %248 = vector.extract_strided_slice %230 {offsets = [0, 0, 0], sizes = [2, 8, 8], strides = [1, 1, 1]} : vector<2x8x32xf32> to vector<2x8x8xf32>
    "tpu.trace_start"() <{level = 10 : i32, message = "bqk,bkd->bqd"}> : () -> ()
    %cst_102 = arith.constant dense<0.000000e+00> : vector<2x8x8xf32>
    %249 = tpu.matmul %247, %248, %cst_102 {dimension_numbers = #tpu.dot_dimension_numbers<[2], [1], [1], [2], [0, 0, 0, 1, 1, 2], [0], [0]>} : vector<2x8x8xf32>, vector<2x8x8xf32>, vector<2x8x8xf32> -> vector<2x8x8xf32>
    "tpu.trace_stop"() : () -> ()
    %250 = vector.extract_strided_slice %226 {offsets = [0, 0, 8], sizes = [2, 8, 8], strides = [1, 1, 1]} : vector<2x8x32xf32> to vector<2x8x8xf32>
    %251 = vector.extract_strided_slice %228 {offsets = [0, 0, 8], sizes = [2, 8, 8], strides = [1, 1, 1]} : vector<2x8x32xf32> to vector<2x8x8xf32>
    "tpu.trace_start"() <{level = 10 : i32, message = "bqd,bkd->bqk"}> : () -> ()
    %cst_103 = arith.constant dense<0.000000e+00> : vector<2x8x8xf32>
    %252 = tpu.matmul %250, %251, %cst_103 {dimension_numbers = #tpu.dot_dimension_numbers<[2], [2], [1], [1], [0, 0, 0, 1, 1, 1], [0], [0]>} : vector<2x8x8xf32>, vector<2x8x8xf32>, vector<2x8x8xf32> -> vector<2x8x8xf32>
    "tpu.trace_stop"() : () -> ()
    %253 = vector.broadcast %5 : vector<2x1x8xf32> to vector<2x8x8xf32>
    %254 = arith.addf %252, %253 : vector<2x8x8xf32>
    %cst_104 = arith.constant dense<0xFF800000> : vector<2x8xf32>
    %255 = vector.multi_reduction <maximumf>, %254, %cst_104 [2] : vector<2x8x8xf32> to vector<2x8xf32>
    %256 = vector.shape_cast %255 : vector<2x8xf32> to vector<2x8x1xf32>
    %257 = vector.broadcast %256 : vector<2x8x1xf32> to vector<2x8x8xf32>
    %258 = arith.subf %254, %257 : vector<2x8x8xf32>
    %259 = math.exp %258 : vector<2x8x8xf32>
    %cst_105 = arith.constant dense<0.000000e+00> : vector<2x8xf32>
    %260 = vector.multi_reduction <add>, %259, %cst_105 [2] : vector<2x8x8xf32> to vector<2x8xf32>
    %261 = vector.shape_cast %260 : vector<2x8xf32> to vector<2x8x1xf32>
    %cst_106 = arith.constant 9.99999971E-10 : f32
    %262 = vector.broadcast %cst_106 : f32 to vector<2x8x1xf32>
    %263 = arith.maximumf %261, %262 : vector<2x8x1xf32>
    %264 = tpu.reciprocal %263 {approx = true} : vector<2x8x1xf32> -> vector<2x8x1xf32>
    %265 = vector.broadcast %264 : vector<2x8x1xf32> to vector<2x8x8xf32>
    %266 = arith.mulf %259, %265 : vector<2x8x8xf32>
    %267 = vector.extract_strided_slice %230 {offsets = [0, 0, 8], sizes = [2, 8, 8], strides = [1, 1, 1]} : vector<2x8x32xf32> to vector<2x8x8xf32>
    "tpu.trace_start"() <{level = 10 : i32, message = "bqk,bkd->bqd"}> : () -> ()
    %cst_107 = arith.constant dense<0.000000e+00> : vector<2x8x8xf32>
    %268 = tpu.matmul %266, %267, %cst_107 {dimension_numbers = #tpu.dot_dimension_numbers<[2], [1], [1], [2], [0, 0, 0, 1, 1, 2], [0], [0]>} : vector<2x8x8xf32>, vector<2x8x8xf32>, vector<2x8x8xf32> -> vector<2x8x8xf32>
    "tpu.trace_stop"() : () -> ()
    %269 = vector.extract_strided_slice %226 {offsets = [0, 0, 16], sizes = [2, 8, 8], strides = [1, 1, 1]} : vector<2x8x32xf32> to vector<2x8x8xf32>
    %270 = vector.extract_strided_slice %228 {offsets = [0, 0, 16], sizes = [2, 8, 8], strides = [1, 1, 1]} : vector<2x8x32xf32> to vector<2x8x8xf32>
    "tpu.trace_start"() <{level = 10 : i32, message = "bqd,bkd->bqk"}> : () -> ()
    %cst_108 = arith.constant dense<0.000000e+00> : vector<2x8x8xf32>
    %271 = tpu.matmul %269, %270, %cst_108 {dimension_numbers = #tpu.dot_dimension_numbers<[2], [2], [1], [1], [0, 0, 0, 1, 1, 1], [0], [0]>} : vector<2x8x8xf32>, vector<2x8x8xf32>, vector<2x8x8xf32> -> vector<2x8x8xf32>
    "tpu.trace_stop"() : () -> ()
    %272 = vector.broadcast %5 : vector<2x1x8xf32> to vector<2x8x8xf32>
    %273 = arith.addf %271, %272 : vector<2x8x8xf32>
    %cst_109 = arith.constant dense<0xFF800000> : vector<2x8xf32>
    %274 = vector.multi_reduction <maximumf>, %273, %cst_109 [2] : vector<2x8x8xf32> to vector<2x8xf32>
    %275 = vector.shape_cast %274 : vector<2x8xf32> to vector<2x8x1xf32>
    %276 = vector.broadcast %275 : vector<2x8x1xf32> to vector<2x8x8xf32>
    %277 = arith.subf %273, %276 : vector<2x8x8xf32>
    %278 = math.exp %277 : vector<2x8x8xf32>
    %cst_110 = arith.constant dense<0.000000e+00> : vector<2x8xf32>
    %279 = vector.multi_reduction <add>, %278, %cst_110 [2] : vector<2x8x8xf32> to vector<2x8xf32>
    %280 = vector.shape_cast %279 : vector<2x8xf32> to vector<2x8x1xf32>
    %cst_111 = arith.constant 9.99999971E-10 : f32
    %281 = vector.broadcast %cst_111 : f32 to vector<2x8x1xf32>
    %282 = arith.maximumf %280, %281 : vector<2x8x1xf32>
    %283 = tpu.reciprocal %282 {approx = true} : vector<2x8x1xf32> -> vector<2x8x1xf32>
    %284 = vector.broadcast %283 : vector<2x8x1xf32> to vector<2x8x8xf32>
    %285 = arith.mulf %278, %284 : vector<2x8x8xf32>
    %286 = vector.extract_strided_slice %230 {offsets = [0, 0, 16], sizes = [2, 8, 8], strides = [1, 1, 1]} : vector<2x8x32xf32> to vector<2x8x8xf32>
    "tpu.trace_start"() <{level = 10 : i32, message = "bqk,bkd->bqd"}> : () -> ()
    %cst_112 = arith.constant dense<0.000000e+00> : vector<2x8x8xf32>
    %287 = tpu.matmul %285, %286, %cst_112 {dimension_numbers = #tpu.dot_dimension_numbers<[2], [1], [1], [2], [0, 0, 0, 1, 1, 2], [0], [0]>} : vector<2x8x8xf32>, vector<2x8x8xf32>, vector<2x8x8xf32> -> vector<2x8x8xf32>
    "tpu.trace_stop"() : () -> ()
    %288 = vector.extract_strided_slice %226 {offsets = [0, 0, 24], sizes = [2, 8, 8], strides = [1, 1, 1]} : vector<2x8x32xf32> to vector<2x8x8xf32>
    %289 = vector.extract_strided_slice %228 {offsets = [0, 0, 24], sizes = [2, 8, 8], strides = [1, 1, 1]} : vector<2x8x32xf32> to vector<2x8x8xf32>
    "tpu.trace_start"() <{level = 10 : i32, message = "bqd,bkd->bqk"}> : () -> ()
    %cst_113 = arith.constant dense<0.000000e+00> : vector<2x8x8xf32>
    %290 = tpu.matmul %288, %289, %cst_113 {dimension_numbers = #tpu.dot_dimension_numbers<[2], [2], [1], [1], [0, 0, 0, 1, 1, 1], [0], [0]>} : vector<2x8x8xf32>, vector<2x8x8xf32>, vector<2x8x8xf32> -> vector<2x8x8xf32>
    "tpu.trace_stop"() : () -> ()
    %291 = vector.broadcast %5 : vector<2x1x8xf32> to vector<2x8x8xf32>
    %292 = arith.addf %290, %291 : vector<2x8x8xf32>
    %cst_114 = arith.constant dense<0xFF800000> : vector<2x8xf32>
    %293 = vector.multi_reduction <maximumf>, %292, %cst_114 [2] : vector<2x8x8xf32> to vector<2x8xf32>
    %294 = vector.shape_cast %293 : vector<2x8xf32> to vector<2x8x1xf32>
    %295 = vector.broadcast %294 : vector<2x8x1xf32> to vector<2x8x8xf32>
    %296 = arith.subf %292, %295 : vector<2x8x8xf32>
    %297 = math.exp %296 : vector<2x8x8xf32>
    %cst_115 = arith.constant dense<0.000000e+00> : vector<2x8xf32>
    %298 = vector.multi_reduction <add>, %297, %cst_115 [2] : vector<2x8x8xf32> to vector<2x8xf32>
    %299 = vector.shape_cast %298 : vector<2x8xf32> to vector<2x8x1xf32>
    %cst_116 = arith.constant 9.99999971E-10 : f32
    %300 = vector.broadcast %cst_116 : f32 to vector<2x8x1xf32>
    %301 = arith.maximumf %299, %300 : vector<2x8x1xf32>
    %302 = tpu.reciprocal %301 {approx = true} : vector<2x8x1xf32> -> vector<2x8x1xf32>
    %303 = vector.broadcast %302 : vector<2x8x1xf32> to vector<2x8x8xf32>
    %304 = arith.mulf %297, %303 : vector<2x8x8xf32>
    %305 = vector.extract_strided_slice %230 {offsets = [0, 0, 24], sizes = [2, 8, 8], strides = [1, 1, 1]} : vector<2x8x32xf32> to vector<2x8x8xf32>
    "tpu.trace_start"() <{level = 10 : i32, message = "bqk,bkd->bqd"}> : () -> ()
    %cst_117 = arith.constant dense<0.000000e+00> : vector<2x8x8xf32>
    %306 = tpu.matmul %304, %305, %cst_117 {dimension_numbers = #tpu.dot_dimension_numbers<[2], [1], [1], [2], [0, 0, 0, 1, 1, 2], [0], [0]>} : vector<2x8x8xf32>, vector<2x8x8xf32>, vector<2x8x8xf32> -> vector<2x8x8xf32>
    "tpu.trace_stop"() : () -> ()
    %307 = tpu.concatenate %249, %268, %287, %306 in 2 : vector<2x8x8xf32>, vector<2x8x8xf32>, vector<2x8x8xf32>, vector<2x8x8xf32> -> vector<2x8x32xf32>
    %308 = vector.shape_cast %307 : vector<2x8x32xf32> to vector<16x32xf32>
    %c1_118 = arith.constant 1 : index
    %c0_119 = arith.constant 0 : index
    %c0_120 = arith.constant 0 : index
    %309 = vector.load %arg8[%c1_118, %c0_119, %c0_120] : memref<2x32x32xf32, #tpu.memory_space<vmem>>, vector<1x32x32xf32>
    %310 = vector.shape_cast %309 : vector<1x32x32xf32> to vector<32x32xf32>
    %cst_121 = arith.constant dense<0.000000e+00> : vector<16x32xf32>
    %311 = tpu.matmul %308, %310, %cst_121 {dimension_numbers = #tpu.dot_dimension_numbers<[1], [0], [0], [1], [0, 0, 1, 1], [], []>} : vector<16x32xf32>, vector<32x32xf32>, vector<16x32xf32> -> vector<16x32xf32>
    %c1_122 = arith.constant 1 : index
    %c0_123 = arith.constant 0 : index
    %c0_124 = arith.constant 0 : index
    %312 = vector.load %arg9[%c1_122, %c0_123, %c0_124] : memref<2x1x32xf32, #tpu.memory_space<vmem>>, vector<1x1x32xf32>
    %313 = vector.shape_cast %312 : vector<1x1x32xf32> to vector<1x32xf32>
    %314 = vector.broadcast %313 : vector<1x32xf32> to vector<16x32xf32>
    %315 = arith.addf %311, %314 : vector<16x32xf32>
    %316 = arith.addf %215, %315 : vector<16x32xf32>
    %c1_125 = arith.constant 1 : index
    %c0_126 = arith.constant 0 : index
    %c0_127 = arith.constant 0 : index
    %317 = vector.load %arg10[%c1_125, %c0_126, %c0_127] : memref<2x1x32xf32, #tpu.memory_space<vmem>>, vector<1x1x32xf32>
    %318 = vector.shape_cast %317 : vector<1x1x32xf32> to vector<1x32xf32>
    %c1_128 = arith.constant 1 : index
    %c0_129 = arith.constant 0 : index
    %c0_130 = arith.constant 0 : index
    %319 = vector.load %arg11[%c1_128, %c0_129, %c0_130] : memref<2x1x32xf32, #tpu.memory_space<vmem>>, vector<1x1x32xf32>
    %320 = vector.shape_cast %319 : vector<1x1x32xf32> to vector<1x32xf32>
    %cst_131 = arith.constant dense<0.000000e+00> : vector<16xf32>
    %321 = vector.multi_reduction <add>, %316, %cst_131 [1] : vector<16x32xf32> to vector<16xf32>
    %322 = vector.shape_cast %321 : vector<16xf32> to vector<16x1xf32>
    %cst_132 = arith.constant 3.200000e+01 : f32
    %323 = vector.broadcast %cst_132 : f32 to vector<16x1xf32>
    %324 = arith.divf %322, %323 : vector<16x1xf32>
    %325 = vector.broadcast %324 : vector<16x1xf32> to vector<16x32xf32>
    %326 = arith.subf %316, %325 : vector<16x32xf32>
    %327 = arith.mulf %326, %326 : vector<16x32xf32>
    %cst_133 = arith.constant dense<0.000000e+00> : vector<16xf32>
    %328 = vector.multi_reduction <add>, %327, %cst_133 [1] : vector<16x32xf32> to vector<16xf32>
    %329 = vector.shape_cast %328 : vector<16xf32> to vector<16x1xf32>
    %cst_134 = arith.constant 3.200000e+01 : f32
    %330 = vector.broadcast %cst_134 : f32 to vector<16x1xf32>
    %331 = arith.divf %329, %330 : vector<16x1xf32>
    %332 = vector.broadcast %324 : vector<16x1xf32> to vector<16x32xf32>
    %333 = arith.subf %316, %332 : vector<16x32xf32>
    %cst_135 = arith.constant 9.99999996E-13 : f32
    %334 = vector.broadcast %cst_135 : f32 to vector<16x1xf32>
    %335 = arith.addf %331, %334 : vector<16x1xf32>
    %336 = math.rsqrt %335 : vector<16x1xf32>
    %337 = vector.broadcast %336 : vector<16x1xf32> to vector<16x32xf32>
    %338 = arith.mulf %333, %337 : vector<16x32xf32>
    %339 = vector.broadcast %318 : vector<1x32xf32> to vector<16x32xf32>
    %340 = arith.mulf %338, %339 : vector<16x32xf32>
    %341 = vector.broadcast %320 : vector<1x32xf32> to vector<16x32xf32>
    %342 = arith.addf %340, %341 : vector<16x32xf32>
    %c1_136 = arith.constant 1 : index
    %c0_137 = arith.constant 0 : index
    %c0_138 = arith.constant 0 : index
    %343 = vector.load %arg12[%c1_136, %c0_137, %c0_138] : memref<2x32x128xf32, #tpu.memory_space<vmem>>, vector<1x32x128xf32>
    %344 = vector.shape_cast %343 : vector<1x32x128xf32> to vector<32x128xf32>
    %cst_139 = arith.constant dense<0.000000e+00> : vector<16x128xf32>
    %345 = tpu.matmul %342, %344, %cst_139 {dimension_numbers = #tpu.dot_dimension_numbers<[1], [0], [0], [1], [0, 0, 1, 1], [], []>} : vector<16x32xf32>, vector<32x128xf32>, vector<16x128xf32> -> vector<16x128xf32>
    %c1_140 = arith.constant 1 : index
    %c0_141 = arith.constant 0 : index
    %c0_142 = arith.constant 0 : index
    %346 = vector.load %arg13[%c1_140, %c0_141, %c0_142] : memref<2x1x128xf32, #tpu.memory_space<vmem>>, vector<1x1x128xf32>
    %347 = vector.shape_cast %346 : vector<1x1x128xf32> to vector<1x128xf32>
    %348 = vector.broadcast %347 : vector<1x128xf32> to vector<16x128xf32>
    %349 = arith.addf %345, %348 : vector<16x128xf32>
    %350 = arith.mulf %349, %349 : vector<16x128xf32>
    %351 = arith.mulf %349, %350 : vector<16x128xf32>
    %cst_143 = arith.constant 4.471500e-02 : f32
    %352 = vector.broadcast %cst_143 : f32 to vector<16x128xf32>
    %353 = arith.mulf %352, %351 : vector<16x128xf32>
    %354 = arith.addf %349, %353 : vector<16x128xf32>
    %cst_144 = arith.constant 0.797884583 : f32
    %355 = vector.broadcast %cst_144 : f32 to vector<16x128xf32>
    %356 = arith.mulf %355, %354 : vector<16x128xf32>
    %357 = math.tanh %356 : vector<16x128xf32>
    %cst_145 = arith.constant 1.000000e+00 : f32
    %358 = vector.broadcast %cst_145 : f32 to vector<16x128xf32>
    %359 = arith.addf %358, %357 : vector<16x128xf32>
    %cst_146 = arith.constant 5.000000e-01 : f32
    %360 = vector.broadcast %cst_146 : f32 to vector<16x128xf32>
    %361 = arith.mulf %360, %359 : vector<16x128xf32>
    %362 = arith.mulf %349, %361 : vector<16x128xf32>
    %c1_147 = arith.constant 1 : index
    %c0_148 = arith.constant 0 : index
    %c0_149 = arith.constant 0 : index
    %363 = vector.load %arg14[%c1_147, %c0_148, %c0_149] : memref<2x128x32xf32, #tpu.memory_space<vmem>>, vector<1x128x32xf32>
    %364 = vector.shape_cast %363 : vector<1x128x32xf32> to vector<128x32xf32>
    %cst_150 = arith.constant dense<0.000000e+00> : vector<16x32xf32>
    %365 = tpu.matmul %362, %364, %cst_150 {dimension_numbers = #tpu.dot_dimension_numbers<[1], [0], [0], [1], [0, 0, 1, 1], [], []>} : vector<16x128xf32>, vector<128x32xf32>, vector<16x32xf32> -> vector<16x32xf32>
    %c1_151 = arith.constant 1 : index
    %c0_152 = arith.constant 0 : index
    %c0_153 = arith.constant 0 : index
    %366 = vector.load %arg15[%c1_151, %c0_152, %c0_153] : memref<2x1x32xf32, #tpu.memory_space<vmem>>, vector<1x1x32xf32>
    %367 = vector.shape_cast %366 : vector<1x1x32xf32> to vector<1x32xf32>
    %368 = vector.broadcast %367 : vector<1x32xf32> to vector<16x32xf32>
    %369 = arith.addf %365, %368 : vector<16x32xf32>
    %370 = arith.addf %342, %369 : vector<16x32xf32>
    %c1_154 = arith.constant 1 : index
    %c0_155 = arith.constant 0 : index
    %c0_156 = arith.constant 0 : index
    %371 = vector.load %arg16[%c1_154, %c0_155, %c0_156] : memref<2x1x32xf32, #tpu.memory_space<vmem>>, vector<1x1x32xf32>
    %372 = vector.shape_cast %371 : vector<1x1x32xf32> to vector<1x32xf32>
    %c1_157 = arith.constant 1 : index
    %c0_158 = arith.constant 0 : index
    %c0_159 = arith.constant 0 : index
    %373 = vector.load %arg17[%c1_157, %c0_158, %c0_159] : memref<2x1x32xf32, #tpu.memory_space<vmem>>, vector<1x1x32xf32>
    %374 = vector.shape_cast %373 : vector<1x1x32xf32> to vector<1x32xf32>
    %cst_160 = arith.constant dense<0.000000e+00> : vector<16xf32>
    %375 = vector.multi_reduction <add>, %370, %cst_160 [1] : vector<16x32xf32> to vector<16xf32>
    %376 = vector.shape_cast %375 : vector<16xf32> to vector<16x1xf32>
    %cst_161 = arith.constant 3.200000e+01 : f32
    %377 = vector.broadcast %cst_161 : f32 to vector<16x1xf32>
    %378 = arith.divf %376, %377 : vector<16x1xf32>
    %379 = vector.broadcast %378 : vector<16x1xf32> to vector<16x32xf32>
    %380 = arith.subf %370, %379 : vector<16x32xf32>
    %381 = arith.mulf %380, %380 : vector<16x32xf32>
    %cst_162 = arith.constant dense<0.000000e+00> : vector<16xf32>
    %382 = vector.multi_reduction <add>, %381, %cst_162 [1] : vector<16x32xf32> to vector<16xf32>
    %383 = vector.shape_cast %382 : vector<16xf32> to vector<16x1xf32>
    %cst_163 = arith.constant 3.200000e+01 : f32
    %384 = vector.broadcast %cst_163 : f32 to vector<16x1xf32>
    %385 = arith.divf %383, %384 : vector<16x1xf32>
    %386 = vector.broadcast %378 : vector<16x1xf32> to vector<16x32xf32>
    %387 = arith.subf %370, %386 : vector<16x32xf32>
    %cst_164 = arith.constant 9.99999996E-13 : f32
    %388 = vector.broadcast %cst_164 : f32 to vector<16x1xf32>
    %389 = arith.addf %385, %388 : vector<16x1xf32>
    %390 = math.rsqrt %389 : vector<16x1xf32>
    %391 = vector.broadcast %390 : vector<16x1xf32> to vector<16x32xf32>
    %392 = arith.mulf %387, %391 : vector<16x32xf32>
    %393 = vector.broadcast %372 : vector<1x32xf32> to vector<16x32xf32>
    %394 = arith.mulf %392, %393 : vector<16x32xf32>
    %395 = vector.broadcast %374 : vector<1x32xf32> to vector<16x32xf32>
    %396 = arith.addf %394, %395 : vector<16x32xf32>
    %397 = vector.broadcast %0 : vector<16x1xf32> to vector<16x32xf32>
    %398 = arith.mulf %396, %397 : vector<16x32xf32>
    %c0_165 = arith.constant 0 : index
    %c0_166 = arith.constant 0 : index
    %399 = vector.load %arg3[%c0_165, %c0_166] : memref<2x16xf32, #tpu.memory_space<vmem>>, vector<2x16xf32>
    %cst_167 = arith.constant dense<0.000000e+00> : vector<2x32xf32>
    %400 = tpu.matmul %399, %398, %cst_167 {dimension_numbers = #tpu.dot_dimension_numbers<[1], [0], [0], [1], [0, 0, 1, 1], [], []>} : vector<2x16xf32>, vector<16x32xf32>, vector<2x32xf32> -> vector<2x32xf32>
    %c0_168 = arith.constant 0 : index
    %c0_169 = arith.constant 0 : index
    %401 = vector.load %arg18[%c0_168, %c0_169] : memref<32x128xf32, #tpu.memory_space<vmem>>, vector<32x128xf32>
    %cst_170 = arith.constant dense<0.000000e+00> : vector<2x128xf32>
    %402 = tpu.matmul %400, %401, %cst_170 {dimension_numbers = #tpu.dot_dimension_numbers<[1], [0], [0], [1], [0, 0, 1, 1], [], []>} : vector<2x32xf32>, vector<32x128xf32>, vector<2x128xf32> -> vector<2x128xf32>
    %c0_171 = arith.constant 0 : index
    %c0_172 = arith.constant 0 : index
    %403 = vector.load %arg19[%c0_171, %c0_172] : memref<1x128xf32, #tpu.memory_space<vmem>>, vector<1x128xf32>
    %404 = vector.broadcast %403 : vector<1x128xf32> to vector<2x128xf32>
    %405 = arith.addf %402, %404 : vector<2x128xf32>
    %c0_173 = arith.constant 0 : index
    %c0_174 = arith.constant 0 : index
    %406 = vector.load %arg20[%c0_173, %c0_174] : memref<2x128xf32, #tpu.memory_space<vmem>>, vector<2x128xf32>
    tpu.vector_store %arg20[%c0_173, %c0_174], %405 {strides = array<i32>} : memref<2x128xf32, #tpu.memory_space<vmem>>, vector<2x128xf32>,
    return
  }
}

</mosaic_0001>

<llo_original>
// kernel: xlm_model_forward.1
$region0: #{xlm_model_forward.1}
  #allocation0 [shape = 'u32[]', space=smem, size = 0x4, offset = 0x4, fixed_abs, tag = 'smem constant byte address 0x4 - core index']
  #allocation1 [shape = 'u32[144,128]{1,0:T(1,128)}', space=vmem, size = 0x12000, scoped, tag = 'internal scratch']
  %s0 = inlined_call_operand.vmem [shape: f32[16,32], index: 0, kind: input, shape index: {}]
  %s1 = inlined_call_operand.vmem [shape: f32[16,1], index: 1, kind: input, shape index: {}]
  %s2 = inlined_call_operand.vmem [shape: f32[2,1,8], index: 2, kind: input, shape index: {}]
  %s3 = inlined_call_operand.vmem [shape: f32[2,16], index: 3, kind: input, shape index: {}]
  %s4 = inlined_call_operand.vmem [shape: f32[1,32], index: 4, kind: input, shape index: {}]
  %s5 = inlined_call_operand.vmem [shape: f32[1,32], index: 5, kind: input, shape index: {}]
  %s6 = inlined_call_operand.vmem [shape: f32[2,32,96], index: 6, kind: input, shape index: {}]
  %s7 = inlined_call_operand.vmem [shape: f32[2,1,96], index: 7, kind: input, shape index: {}]
  %s8 = inlined_call_operand.vmem [shape: f32[2,32,32], index: 8, kind: input, shape index: {}]
  %s9 = inlined_call_operand.vmem [shape: f32[2,1,32], index: 9, kind: input, shape index: {}]
  %s10 = inlined_call_operand.vmem [shape: f32[2,1,32], index: 10, kind: input, shape index: {}]
  %s11 = inlined_call_operand.vmem [shape: f32[2,1,32], index: 11, kind: input, shape index: {}]
  %s12 = inlined_call_operand.vmem [shape: f32[2,32,128], index: 12, kind: input, shape index: {}]
  %s13 = inlined_call_operand.vmem [shape: f32[2,1,128], index: 13, kind: input, shape index: {}]
  %s14 = inlined_call_operand.vmem [shape: f32[2,128,32], index: 14, kind: input, shape index: {}]
  %s15 = inlined_call_operand.vmem [shape: f32[2,1,32], index: 15, kind: input, shape index: {}]
  %s16 = inlined_call_operand.vmem [shape: f32[2,1,32], index: 16, kind: input, shape index: {}]
  %s17 = inlined_call_operand.vmem [shape: f32[2,1,32], index: 17, kind: input, shape index: {}]
  %s18 = inlined_call_operand.vmem [shape: f32[32,128], index: 18, kind: input, shape index: {}]
  %s19 = inlined_call_operand.vmem [shape: f32[1,128], index: 19, kind: input, shape index: {}]
  %s20 = inlined_call_operand.hbm [shape: f32[2,128], index: 20, kind: output, shape index: {}]
  %s21 = sld [smem:[#allocation0]]
  $region90: #{xlm_model_forward.1} parent=0
    _
  %s23 = ssub.s32 1, %s21
  %s24 = scalar_select 0, %s23, %s21
  $region1: #{xlm_model_forward.1} parent=0
    #allocation2 [shape = 'u8[1024]{0}', space=vmem, size = 0x400, scoped, tag = 'output window, operand 0, single buffered']
    #allocation3 [shape = 's32[1]{0}', space=sflag, size = 0x4, scoped, tag = 'scoped memory for xlm_model_forward.1']
    %25 = vsyncpa [#allocation3], 0
    // Predicated region
    $region2: #{xlm_model_forward.1} parent=1 // pred_check
      _
    $region3: #{xlm_model_forward.1} parent=1 // pred_check_branch
      %27 = sbr.rel (0) target = $region5
    $region4: #{xlm_model_forward.1} parent=1 // pred_region
      _
    $region5: #{xlm_model_forward.1} parent=1 // pred_fallthru
      _
    // Predicated region
    $region6: #{xlm_model_forward.1} parent=1 // pred_check
      _
    $region7: #{xlm_model_forward.1} parent=1 // pred_check_branch
      %29 = sbr.rel (0) target = $region9
    $region8: #{xlm_model_forward.1} parent=1 // pred_region
      _
    $region9: #{xlm_model_forward.1} parent=1 // pred_fallthru
      _
    // Predicated region
    $region10: #{xlm_model_forward.1} parent=1 // pred_check
      _
    $region11: #{xlm_model_forward.1} parent=1 // pred_check_branch
      %31 = sbr.rel (0) target = $region13
    $region12: #{xlm_model_forward.1} parent=1 // pred_region
      _
    $region13: #{xlm_model_forward.1} parent=1 // pred_fallthru
      _
    // Predicated region
    $region14: #{xlm_model_forward.1} parent=1 // pred_check
      _
    $region15: #{xlm_model_forward.1} parent=1 // pred_check_branch
      %33 = sbr.rel (0) target = $region17
    $region16: #{xlm_model_forward.1} parent=1 // pred_region
      _
    $region17: #{xlm_model_forward.1} parent=1 // pred_fallthru
      _
    // Predicated region
    $region18: #{xlm_model_forward.1} parent=1 // pred_check
      _
    $region19: #{xlm_model_forward.1} parent=1 // pred_check_branch
      %35 = sbr.rel (0) target = $region21
    $region20: #{xlm_model_forward.1} parent=1 // pred_region
      _
    $region21: #{xlm_model_forward.1} parent=1 // pred_fallthru
      _
    // Predicated region
    $region22: #{xlm_model_forward.1} parent=1 // pred_check
      _
    $region23: #{xlm_model_forward.1} parent=1 // pred_check_branch
      %37 = sbr.rel (0) target = $region25
    $region24: #{xlm_model_forward.1} parent=1 // pred_region
      _
    $region25: #{xlm_model_forward.1} parent=1 // pred_fallthru
      _
    // Predicated region
    $region26: #{xlm_model_forward.1} parent=1 // pred_check
      _
    $region27: #{xlm_model_forward.1} parent=1 // pred_check_branch
      %39 = sbr.rel (0) target = $region29
    $region28: #{xlm_model_forward.1} parent=1 // pred_region
      _
    $region29: #{xlm_model_forward.1} parent=1 // pred_fallthru
      _
    // Predicated region
    $region30: #{xlm_model_forward.1} parent=1 // pred_check
      _
    $region31: #{xlm_model_forward.1} parent=1 // pred_check_branch
      %41 = sbr.rel (0) target = $region33
    $region32: #{xlm_model_forward.1} parent=1 // pred_region
      _
    $region33: #{xlm_model_forward.1} parent=1 // pred_fallthru
      _
    // Predicated region
    $region34: #{xlm_model_forward.1} parent=1 // pred_check
      _
    $region35: #{xlm_model_forward.1} parent=1 // pred_check_branch
      %43 = sbr.rel (0) target = $region37
    $region36: #{xlm_model_forward.1} parent=1 // pred_region
      _
    $region37: #{xlm_model_forward.1} parent=1 // pred_fallthru
      _
    // Predicated region
    $region38: #{xlm_model_forward.1} parent=1 // pred_check
      _
    $region39: #{xlm_model_forward.1} parent=1 // pred_check_branch
      %45 = sbr.rel (0) target = $region41
    $region40: #{xlm_model_forward.1} parent=1 // pred_region
      _
    $region41: #{xlm_model_forward.1} parent=1 // pred_fallthru
      _
    // Predicated region
    $region42: #{xlm_model_forward.1} parent=1 // pred_check
      _
    $region43: #{xlm_model_forward.1} parent=1 // pred_check_branch
      %47 = sbr.rel (0) target = $region45
    $region44: #{xlm_model_forward.1} parent=1 // pred_region
      _
    $region45: #{xlm_model_forward.1} parent=1 // pred_fallthru
      _
    // Predicated region
    $region46: #{xlm_model_forward.1} parent=1 // pred_check
      _
    $region47: #{xlm_model_forward.1} parent=1 // pred_check_branch
      %49 = sbr.rel (0) target = $region49
    $region48: #{xlm_model_forward.1} parent=1 // pred_region
      _
    $region49: #{xlm_model_forward.1} parent=1 // pred_fallthru
      _
    // Predicated region
    $region50: #{xlm_model_forward.1} parent=1 // pred_check
      _
    $region51: #{xlm_model_forward.1} parent=1 // pred_check_branch
      %51 = sbr.rel (0) target = $region53
    $region52: #{xlm_model_forward.1} parent=1 // pred_region
      _
    $region53: #{xlm_model_forward.1} parent=1 // pred_fallthru
      _
    // Predicated region
    $region54: #{xlm_model_forward.1} parent=1 // pred_check
      _
    $region55: #{xlm_model_forward.1} parent=1 // pred_check_branch
      %53 = sbr.rel (0) target = $region57
    $region56: #{xlm_model_forward.1} parent=1 // pred_region
      _
    $region57: #{xlm_model_forward.1} parent=1 // pred_fallthru
      _
    // Predicated region
    $region58: #{xlm_model_forward.1} parent=1 // pred_check
      _
    $region59: #{xlm_model_forward.1} parent=1 // pred_check_branch
      %55 = sbr.rel (0) target = $region61
    $region60: #{xlm_model_forward.1} parent=1 // pred_region
      _
    $region61: #{xlm_model_forward.1} parent=1 // pred_fallthru
      _
    // Predicated region
    $region62: #{xlm_model_forward.1} parent=1 // pred_check
      _
    $region63: #{xlm_model_forward.1} parent=1 // pred_check_branch
      %57 = sbr.rel (0) target = $region65
    $region64: #{xlm_model_forward.1} parent=1 // pred_region
      _
    $region65: #{xlm_model_forward.1} parent=1 // pred_fallthru
      _
    // Predicated region
    $region66: #{xlm_model_forward.1} parent=1 // pred_check
      _
    $region67: #{xlm_model_forward.1} parent=1 // pred_check_branch
      %59 = sbr.rel (0) target = $region69
    $region68: #{xlm_model_forward.1} parent=1 // pred_region
      _
    $region69: #{xlm_model_forward.1} parent=1 // pred_fallthru
      _
    // Predicated region
    $region70: #{xlm_model_forward.1} parent=1 // pred_check
      _
    $region71: #{xlm_model_forward.1} parent=1 // pred_check_branch
      %61 = sbr.rel (0) target = $region73
    $region72: #{xlm_model_forward.1} parent=1 // pred_region
      _
    $region73: #{xlm_model_forward.1} parent=1 // pred_fallthru
      _
    // Predicated region
    $region74: #{xlm_model_forward.1} parent=1 // pred_check
      _
    $region75: #{xlm_model_forward.1} parent=1 // pred_check_branch
      %63 = sbr.rel (0) target = $region77
    $region76: #{xlm_model_forward.1} parent=1 // pred_region
      _
    $region77: #{xlm_model_forward.1} parent=1 // pred_fallthru
      _
    // Predicated region
    $region78: #{xlm_model_forward.1} parent=1 // pred_check
      _
    $region79: #{xlm_model_forward.1} parent=1 // pred_check_branch
      %65 = sbr.rel (0) target = $region81
    $region80: #{xlm_model_forward.1} parent=1 // pred_region
      _
    $region81: #{xlm_model_forward.1} parent=1 // pred_fallthru
      _
    %v66 = vld [vmem:[%s1] sm:$0xff]
    %v67 = vld [vmem:[%s1 + $0x8] sm:$0xff]
    %v68 = vld [vmem:[%s2] sm:$0x1]
    %v69 = vld [vmem:[%s2 + $0x1] sm:$0x1]
    %v70 = vsub.f32 %v68, 1.0
    %v71 = vsub.f32 %v69, 1.0
    %v72 = vmul.f32 %v70, 1e+09
    %v73 = vmul.f32 %v71, 1e+09
    %v74 = vld [vmem:[%s0] sm:$0xff]
    %v75 = vld [vmem:[%s0 + $0x8] sm:$0xff]
    %v76 = vld [vmem:[%s4] sm:$0x1]
    %v77 = vld [vmem:[%s5] sm:$0x1]
    %vm78 = vcmask 261120
    %v79 = vsel %vm78, %v74, 0.0
    %80 = vadd.xlane.f32.xlu0 %v79
    %v81 = vpop.xlane.xlu0 %80
    %v82 = vsel %vm78, %v75, 0.0
    %83 = vadd.xlane.f32.xlu0 %v82
    %v84 = vpop.xlane.xlu0 %83
    %v85 = vrcp.pop 32.0
    %v86 = vmul.f32 %v81, %v85
    %v87 = vmul.f32 %v84, %v85
    %v88 = vsub.f32 %v74, %v86
    %v89 = vsub.f32 %v75, %v87
    %v90 = vmul.f32 %v88, %v88
    %v91 = vmul.f32 %v89, %v89
    %v92 = vsel %vm78, %v90, 0.0
    %93 = vadd.xlane.f32.xlu0 %v92
    %v94 = vpop.xlane.xlu0 %93
    %v95 = vsel %vm78, %v91, 0.0
    %96 = vadd.xlane.f32.xlu0 %v95
    %v97 = vpop.xlane.xlu0 %96
    %v98 = vmul.f32 %v94, %v85
    %v99 = vmul.f32 %v97, %v85
    %v100 = vadd.f32 %v98, 1e-12
    %v101 = vadd.f32 %v99, 1e-12
    %v102 = vrsqrt.pop %v100
    %v103 = vrsqrt.pop %v101
    %v104 = vmul.f32 %v88, %v102
    %v105 = vmul.f32 %v89, %v103
    %v107 = vlaneseq
    %v108 = vshrl.u32 %v107, 7
    %v109 = vsub.s32 0, %v108
    %v110 = vrot.slane %v76, %v109
    %v112 = vmul.f32 %v104, %v110
    %v113 = vmul.f32 %v105, %v110
    %v115 = vlaneseq
    %v116 = vshrl.u32 %v115, 7
    %v117 = vsub.s32 0, %v116
    %v118 = vrot.slane %v77, %v117
    %v120 = vadd.f32 %v112, %v118
    %v121 = vadd.f32 %v113, %v118
    %123 = vset.pattern.permute.xlu0 0
    %124 = vperm.xlu0 %123, %v66
    %v125 = vpop.permute.xlu0 %124
    %128 = vset.pattern.permute.xlu0 0
    %129 = vperm.xlu0 %128, %v67
    %v130 = vpop.permute.xlu0 %129
    %v132 = vmul.f32 %v120, %v125
    %v133 = vmul.f32 %v121, %v130
    %v134 = vld [vmem:[%s6] sm:$0xff]
    %v135 = vld [vmem:[%s6 + $0x8] sm:$0xff]
    %v136 = vld [vmem:[%s6 + $0x10] sm:$0xff]
    %v137 = vld [vmem:[%s6 + $0x18] sm:$0xff]
    %v138 = vld [vmem:[%s7] sm:$0x1]
    %v140 = vlaneseq
    %v141 = vshrl.u32 %v140, 7
    %v142 = vsub.s32 0, %v141
    %v143 = vrot.slane %v138, %v142
    %v146 = vsel %vm78, %v132, 0
    %v149 = vsel %vm78, %v133, 0
    %151 = vmatprep.subr.mxu0 0.0
    %152 = vmatpush1.msra.mxu0 %v134
    %153 = vmatprep.subr.mxu0 0.0
    %154 = vmatpush1.msra.mxu0 %v135
    %155 = vmatprep.subr.mxu0 0.0
    %156 = vmatpush1.msra.mxu0 %v136
    %157 = vmatprep.subr.mxu0 0.0
    %158 = vmatpush1.msra.mxu0 %v137
    %159 = vmatprep.subr.mxu0 0.0
    %160 = vmatpush1.msra.mxu0 0.0
    %161 = vmatprep.subr.mxu0 0.0
    %162 = vmatpush1.msra.mxu0 0.0
    %163 = vmatprep.subr.mxu0 0.0
    %164 = vmatpush1.msra.mxu0 0.0
    %165 = vmatprep.subr.mxu0 0.0
    %166 = vmatpush1.msra.mxu0 0.0
    %167 = vmatprep.subr.mxu0 0.0
    %168 = vmatpush1.msra.mxu0 0.0
    %169 = vmatprep.subr.mxu0 0.0
    %170 = vmatpush1.msra.mxu0 0.0
    %171 = vmatprep.subr.mxu0 0.0
    %172 = vmatpush1.msra.mxu0 0.0
    %173 = vmatprep.subr.mxu0 0.0
    %174 = vmatpush1.msra.mxu0 0.0
    %175 = vmatprep.subr.mxu0 0.0
    %176 = vmatpush1.msra.mxu0 0.0
    %177 = vmatprep.subr.mxu0 0.0
    %178 = vmatpush1.msra.mxu0 0.0
    %179 = vmatprep.subr.mxu0 0.0
    %180 = vmatpush1.msra.mxu0 0.0
    %181 = vmatprep.subr.mxu0 0.0
    %182 = vmatpush1.msra.mxu0 0.0
    %183 = vmatprep.subr.mxu0 0.0
    %184 = vmatpush1.msra.mxu0 0.0
    %185 = vmatprep.subr.mxu0 0.0
    %186 = vmatpush1.msra.mxu0 0.0
    %187 = vmatprep.subr.mxu0 0.0
    %188 = vmatpush1.msra.mxu0 0.0
    %189 = vmatprep.subr.mxu0 0.0
    %190 = vmatpush1.msra.mxu0 0.0
    %191 = vmatprep.subr.mxu0 0.0
    %192 = vmatpush1.msra.mxu0 0.0
    %193 = vmatprep.subr.mxu0 0.0
    %194 = vmatpush1.msra.mxu0 0.0
    %195 = vmatprep.subr.mxu0 0.0
    %196 = vmatpush1.msra.mxu0 0.0
    %197 = vmatprep.subr.mxu0 0.0
    %198 = vmatpush1.msra.mxu0 0.0
    %199 = vmatprep.subr.mxu0 0.0
    %200 = vmatpush1.msra.mxu0 0.0
    %201 = vmatprep.subr.mxu0 0.0
    %202 = vmatpush1.msra.mxu0 0.0
    %203 = vmatprep.subr.mxu0 0.0
    %204 = vmatpush1.msra.mxu0 0.0
    %205 = vmatprep.subr.mxu0 0.0
    %206 = vmatpush1.msra.mxu0 0.0
    %207 = vmatprep.subr.mxu0 0.0
    %208 = vmatpush1.msra.mxu0 0.0
    %209 = vmatprep.subr.mxu0 0.0
    %210 = vmatpush1.msra.mxu0 0.0
    %211 = vmatprep.subr.mxu0 0.0
    %212 = vmatpush1.msra.mxu0 0.0
    %213 = vmatprep.subr.mxu0 0.0
    %214 = vmatpush1.msra.mxu0 0.0
    %215 = vmatprep.mubr.f32.mxu0 0.0
    %216 = vmatmul.mubr.f32.gmra.mrb[0].mxu0 %v146
    %v217 = vpop.f32.mrb[0].mxu0
    %v218 = vadd.f32 %v143, %v217
    %v219 = vpop.f32.mrb[0].mxu0
    %220 = vmatprep.mubr.f32.mxu0 0.0
    %221 = vmatmul.mubr.f32.gmra.mrb[0].mxu0 %v149
    %v222 = vpop.f32.mrb[0].mxu0
    %v223 = vadd.f32 %v143, %v222
    %v224 = vpop.f32.mrb[0].mxu0
    %225 = vdwg.mxu0
    %v226 = vmul.f32 %v218, 0.35355338
    %v227 = vmul.f32 %v223, 0.35355338
    %v230 = vlaneseq
    %v231 = vshrl.u32 %v230, 7
    %v232 = vsub.s32 0, %v231
    %v233 = vrot.slane %v72, %v232
    %v234 = vlaneseq
    %v235 = vshrl.u32 %v234, 7
    %v236 = vsub.s32 0, %v235
    %v237 = vrot.slane %v73, %v236
    %241 = vrot.lane.b32.xlu0 %v218, 96
    %v242 = vpop.permute.xlu0 %241
    %vm243 = vcmask 64512
    %v245 = vsel %vm243, %v226, 0
    %v247 = vsel %vm243, %v242, 0
    %249 = vmatprep.subr.mxu0 0.0
    %250 = vmatpush1.xpose.msra.mxu0 %v247
    %251 = vmatprep.subr.mxu0 0.0
    %252 = vmatpush1.xpose.msra.mxu0 0.0
    %253 = vmatprep.subr.mxu0 0.0
    %254 = vmatpush1.xpose.msra.mxu0 0.0
    %255 = vmatprep.subr.mxu0 0.0
    %256 = vmatpush1.xpose.msra.mxu0 0.0
    %257 = vmatprep.subr.mxu0 0.0
    %258 = vmatpush1.xpose.msra.mxu0 0.0
    %259 = vmatprep.subr.mxu0 0.0
    %260 = vmatpush1.xpose.msra.mxu0 0.0
    %261 = vmatprep.subr.mxu0 0.0
    %262 = vmatpush1.xpose.msra.mxu0 0.0
    %263 = vmatprep.subr.mxu0 0.0
    %264 = vmatpush1.xpose.msra.mxu0 0.0
    %265 = vmatprep.subr.mxu0 0.0
    %266 = vmatpush1.xpose.msra.mxu0 0.0
    %267 = vmatprep.subr.mxu0 0.0
    %268 = vmatpush1.xpose.msra.mxu0 0.0
    %269 = vmatprep.subr.mxu0 0.0
    %270 = vmatpush1.xpose.msra.mxu0 0.0
    %271 = vmatprep.subr.mxu0 0.0
    %272 = vmatpush1.xpose.msra.mxu0 0.0
    %273 = vmatprep.subr.mxu0 0.0
    %274 = vmatpush1.xpose.msra.mxu0 0.0
    %275 = vmatprep.subr.mxu0 0.0
    %276 = vmatpush1.xpose.msra.mxu0 0.0
    %277 = vmatprep.subr.mxu0 0.0
    %278 = vmatpush1.xpose.msra.mxu0 0.0
    %279 = vmatprep.subr.mxu0 0.0
    %280 = vmatpush1.xpose.msra.mxu0 0.0
    %281 = vmatprep.subr.mxu0 0.0
    %282 = vmatpush1.xpose.msra.mxu0 0.0
    %283 = vmatprep.subr.mxu0 0.0
    %284 = vmatpush1.xpose.msra.mxu0 0.0
    %285 = vmatprep.subr.mxu0 0.0
    %286 = vmatpush1.xpose.msra.mxu0 0.0
    %287 = vmatprep.subr.mxu0 0.0
    %288 = vmatpush1.xpose.msra.mxu0 0.0
    %289 = vmatprep.subr.mxu0 0.0
    %290 = vmatpush1.xpose.msra.mxu0 0.0
    %291 = vmatprep.subr.mxu0 0.0
    %292 = vmatpush1.xpose.msra.mxu0 0.0
    %293 = vmatprep.subr.mxu0 0.0
    %294 = vmatpush1.xpose.msra.mxu0 0.0
    %295 = vmatprep.subr.mxu0 0.0
    %296 = vmatpush1.xpose.msra.mxu0 0.0
    %297 = vmatprep.subr.mxu0 0.0
    %298 = vmatpush1.xpose.msra.mxu0 0.0
    %299 = vmatprep.subr.mxu0 0.0
    %300 = vmatpush1.xpose.msra.mxu0 0.0
    %301 = vmatprep.subr.mxu0 0.0
    %302 = vmatpush1.xpose.msra.mxu0 0.0
    %303 = vmatprep.subr.mxu0 0.0
    %304 = vmatpush1.xpose.msra.mxu0 0.0
    %305 = vmatprep.subr.mxu0 0.0
    %306 = vmatpush1.xpose.msra.mxu0 0.0
    %307 = vmatprep.subr.mxu0 0.0
    %308 = vmatpush1.xpose.msra.mxu0 0.0
    %309 = vmatprep.subr.mxu0 0.0
    %310 = vmatpush1.xpose.msra.mxu0 0.0
    %311 = vmatprep.subr.mxu0 0.0
    %312 = vmatpush1.xpose.msra.mxu0 0.0
    %313 = vmatprep.mubr.f32.mxu0 0.0
    %314 = vmatmul.mubr.f32.gmra.mrb[0].mxu0 %v245
    %v315 = vpop.f32.mrb[0].mxu0
    %v316 = vadd.f32 %v233, %v315
    %v317 = vpop.f32.mrb[0].mxu0
    %318 = vdwg.mxu0
    %320 = vrot.lane.b32.xlu0 %v223, 96
    %v321 = vpop.permute.xlu0 %320
    %v323 = vsel %vm243, %v227, 0
    %v325 = vsel %vm243, %v321, 0
    %327 = vmatprep.subr.mxu0 0.0
    %328 = vmatpush1.xpose.msra.mxu0 %v325
    %329 = vmatprep.subr.mxu0 0.0
    %330 = vmatpush1.xpose.msra.mxu0 0.0
    %331 = vmatprep.subr.mxu0 0.0
    %332 = vmatpush1.xpose.msra.mxu0 0.0
    %333 = vmatprep.subr.mxu0 0.0
    %334 = vmatpush1.xpose.msra.mxu0 0.0
    %335 = vmatprep.subr.mxu0 0.0
    %336 = vmatpush1.xpose.msra.mxu0 0.0
    %337 = vmatprep.subr.mxu0 0.0
    %338 = vmatpush1.xpose.msra.mxu0 0.0
    %339 = vmatprep.subr.mxu0 0.0
    %340 = vmatpush1.xpose.msra.mxu0 0.0
    %341 = vmatprep.subr.mxu0 0.0
    %342 = vmatpush1.xpose.msra.mxu0 0.0
    %343 = vmatprep.subr.mxu0 0.0
    %344 = vmatpush1.xpose.msra.mxu0 0.0
    %345 = vmatprep.subr.mxu0 0.0
    %346 = vmatpush1.xpose.msra.mxu0 0.0
    %347 = vmatprep.subr.mxu0 0.0
    %348 = vmatpush1.xpose.msra.mxu0 0.0
    %349 = vmatprep.subr.mxu0 0.0
    %350 = vmatpush1.xpose.msra.mxu0 0.0
    %351 = vmatprep.subr.mxu0 0.0
    %352 = vmatpush1.xpose.msra.mxu0 0.0
    %353 = vmatprep.subr.mxu0 0.0
    %354 = vmatpush1.xpose.msra.mxu0 0.0
    %355 = vmatprep.subr.mxu0 0.0
    %356 = vmatpush1.xpose.msra.mxu0 0.0
    %357 = vmatprep.subr.mxu0 0.0
    %358 = vmatpush1.xpose.msra.mxu0 0.0
    %359 = vmatprep.subr.mxu0 0.0
    %360 = vmatpush1.xpose.msra.mxu0 0.0
    %361 = vmatprep.subr.mxu0 0.0
    %362 = vmatpush1.xpose.msra.mxu0 0.0
    %363 = vmatprep.subr.mxu0 0.0
    %364 = vmatpush1.xpose.msra.mxu0 0.0
    %365 = vmatprep.subr.mxu0 0.0
    %366 = vmatpush1.xpose.msra.mxu0 0.0
    %367 = vmatprep.subr.mxu0 0.0
    %368 = vmatpush1.xpose.msra.mxu0 0.0
    %369 = vmatprep.subr.mxu0 0.0
    %370 = vmatpush1.xpose.msra.mxu0 0.0
    %371 = vmatprep.subr.mxu0 0.0
    %372 = vmatpush1.xpose.msra.mxu0 0.0
    %373 = vmatprep.subr.mxu0 0.0
    %374 = vmatpush1.xpose.msra.mxu0 0.0
    %375 = vmatprep.subr.mxu0 0.0
    %376 = vmatpush1.xpose.msra.mxu0 0.0
    %377 = vmatprep.subr.mxu0 0.0
    %378 = vmatpush1.xpose.msra.mxu0 0.0
    %379 = vmatprep.subr.mxu0 0.0
    %380 = vmatpush1.xpose.msra.mxu0 0.0
    %381 = vmatprep.subr.mxu0 0.0
    %382 = vmatpush1.xpose.msra.mxu0 0.0
    %383 = vmatprep.subr.mxu0 0.0
    %384 = vmatpush1.xpose.msra.mxu0 0.0
    %385 = vmatprep.subr.mxu0 0.0
    %386 = vmatpush1.xpose.msra.mxu0 0.0
    %387 = vmatprep.subr.mxu0 0.0
    %388 = vmatpush1.xpose.msra.mxu0 0.0
    %389 = vmatprep.subr.mxu0 0.0
    %390 = vmatpush1.xpose.msra.mxu0 0.0
    %391 = vmatprep.mubr.f32.mxu0 0.0
    %392 = vmatmul.mubr.f32.gmra.mrb[0].mxu0 %v323
    %v393 = vpop.f32.mrb[0].mxu0
    %v394 = vadd.f32 %v237, %v393
    %v395 = vpop.f32.mrb[0].mxu0
    %396 = vdwg.mxu0
    %v397 = vsel %vm243, %v316, -inf
    %398 = vmax.xlane.f32.xlu0 %v397
    %v399 = vpop.xlane.xlu0 %398
    %v400 = vsel %vm243, %v394, -inf
    %401 = vmax.xlane.f32.xlu0 %v400
    %v402 = vpop.xlane.xlu0 %401
    %v403 = vsub.f32 %v316, %v399
    %v404 = vsub.f32 %v394, %v402
    %v405 = vmul.f32 %v403, 1.442695
    %v406 = vpow.pop %v405
    %v407 = vmul.f32 %v404, 1.442695
    %v408 = vpow.pop %v407
    %v409 = vsel %vm243, %v406, 0.0
    %410 = vadd.xlane.f32.xlu0 %v409
    %v411 = vpop.xlane.xlu0 %410
    %v412 = vsel %vm243, %v408, 0.0
    %413 = vadd.xlane.f32.xlu0 %v412
    %v414 = vpop.xlane.xlu0 %413
    %v415 = vmax.f32 %v411, 1e-09
    %v416 = vmax.f32 %v414, 1e-09
    %v417 = vrcp.pop %v415
    %v418 = vrcp.pop %v416
    %v419 = vmul.f32 %v406, %v417
    %v420 = vmul.f32 %v408, %v418
    %421 = vrot.lane.b32.xlu0 %v218, 64
    %v422 = vpop.permute.xlu0 %421
    %v425 = vsel %vm243, %v419, 0
    %427 = vmatprep.subr.mxu0 0.0
    %428 = vmatpush1.msra.mxu0 %v422
    %429 = vmatprep.subr.mxu0 0.0
    %430 = vmatpush1.msra.mxu0 0.0
    %431 = vmatprep.subr.mxu0 0.0
    %432 = vmatpush1.msra.mxu0 0.0
    %433 = vmatprep.subr.mxu0 0.0
    %434 = vmatpush1.msra.mxu0 0.0
    %435 = vmatprep.subr.mxu0 0.0
    %436 = vmatpush1.msra.mxu0 0.0
    %437 = vmatprep.subr.mxu0 0.0
    %438 = vmatpush1.msra.mxu0 0.0
    %439 = vmatprep.subr.mxu0 0.0
    %440 = vmatpush1.msra.mxu0 0.0
    %441 = vmatprep.subr.mxu0 0.0
    %442 = vmatpush1.msra.mxu0 0.0
    %443 = vmatprep.subr.mxu0 0.0
    %444 = vmatpush1.msra.mxu0 0.0
    %445 = vmatprep.subr.mxu0 0.0
    %446 = vmatpush1.msra.mxu0 0.0
    %447 = vmatprep.subr.mxu0 0.0
    %448 = vmatpush1.msra.mxu0 0.0
    %449 = vmatprep.subr.mxu0 0.0
    %450 = vmatpush1.msra.mxu0 0.0
    %451 = vmatprep.subr.mxu0 0.0
    %452 = vmatpush1.msra.mxu0 0.0
    %453 = vmatprep.subr.mxu0 0.0
    %454 = vmatpush1.msra.mxu0 0.0
    %455 = vmatprep.subr.mxu0 0.0
    %456 = vmatpush1.msra.mxu0 0.0
    %457 = vmatprep.subr.mxu0 0.0
    %458 = vmatpush1.msra.mxu0 0.0
    %459 = vmatprep.subr.mxu0 0.0
    %460 = vmatpush1.msra.mxu0 0.0
    %461 = vmatprep.subr.mxu0 0.0
    %462 = vmatpush1.msra.mxu0 0.0
    %463 = vmatprep.subr.mxu0 0.0
    %464 = vmatpush1.msra.mxu0 0.0
    %465 = vmatprep.subr.mxu0 0.0
    %466 = vmatpush1.msra.mxu0 0.0
    %467 = vmatprep.subr.mxu0 0.0
    %468 = vmatpush1.msra.mxu0 0.0
    %469 = vmatprep.subr.mxu0 0.0
    %470 = vmatpush1.msra.mxu0 0.0
    %471 = vmatprep.subr.mxu0 0.0
    %472 = vmatpush1.msra.mxu0 0.0
    %473 = vmatprep.subr.mxu0 0.0
    %474 = vmatpush1.msra.mxu0 0.0
    %475 = vmatprep.subr.mxu0 0.0
    %476 = vmatpush1.msra.mxu0 0.0
    %477 = vmatprep.subr.mxu0 0.0
    %478 = vmatpush1.msra.mxu0 0.0
    %479 = vmatprep.subr.mxu0 0.0
    %480 = vmatpush1.msra.mxu0 0.0
    %481 = vmatprep.subr.mxu0 0.0
    %482 = vmatpush1.msra.mxu0 0.0
    %483 = vmatprep.subr.mxu0 0.0
    %484 = vmatpush1.msra.mxu0 0.0
    %485 = vmatprep.subr.mxu0 0.0
    %486 = vmatpush1.msra.mxu0 0.0
    %487 = vmatprep.subr.mxu0 0.0
    %488 = vmatpush1.msra.mxu0 0.0
    %489 = vmatprep.subr.mxu0 0.0
    %490 = vmatpush1.msra.mxu0 0.0
    %491 = vmatprep.mubr.f32.mxu0 0.0
    %492 = vmatmul.mubr.f32.gmra.mrb[0].mxu0 %v425
    %v493 = vpop.f32.mrb[0].mxu0
    %v494 = vadd.f32 0.0, %v493
    %v495 = vpop.f32.mrb[0].mxu0
    %496 = vdwg.mxu0
    %497 = vrot.lane.b32.xlu0 %v223, 64
    %v498 = vpop.permute.xlu0 %497
    %v501 = vsel %vm243, %v420, 0
    %503 = vmatprep.subr.mxu0 0.0
    %504 = vmatpush1.msra.mxu0 %v498
    %505 = vmatprep.subr.mxu0 0.0
    %506 = vmatpush1.msra.mxu0 0.0
    %507 = vmatprep.subr.mxu0 0.0
    %508 = vmatpush1.msra.mxu0 0.0
    %509 = vmatprep.subr.mxu0 0.0
    %510 = vmatpush1.msra.mxu0 0.0
    %511 = vmatprep.subr.mxu0 0.0
    %512 = vmatpush1.msra.mxu0 0.0
    %513 = vmatprep.subr.mxu0 0.0
    %514 = vmatpush1.msra.mxu0 0.0
    %515 = vmatprep.subr.mxu0 0.0
    %516 = vmatpush1.msra.mxu0 0.0
    %517 = vmatprep.subr.mxu0 0.0
    %518 = vmatpush1.msra.mxu0 0.0
    %519 = vmatprep.subr.mxu0 0.0
    %520 = vmatpush1.msra.mxu0 0.0
    %521 = vmatprep.subr.mxu0 0.0
    %522 = vmatpush1.msra.mxu0 0.0
    %523 = vmatprep.subr.mxu0 0.0
    %524 = vmatpush1.msra.mxu0 0.0
    %525 = vmatprep.subr.mxu0 0.0
    %526 = vmatpush1.msra.mxu0 0.0
    %527 = vmatprep.subr.mxu0 0.0
    %528 = vmatpush1.msra.mxu0 0.0
    %529 = vmatprep.subr.mxu0 0.0
    %530 = vmatpush1.msra.mxu0 0.0
    %531 = vmatprep.subr.mxu0 0.0
    %532 = vmatpush1.msra.mxu0 0.0
    %533 = vmatprep.subr.mxu0 0.0
    %534 = vmatpush1.msra.mxu0 0.0
    %535 = vmatprep.subr.mxu0 0.0
    %536 = vmatpush1.msra.mxu0 0.0
    %537 = vmatprep.subr.mxu0 0.0
    %538 = vmatpush1.msra.mxu0 0.0
    %539 = vmatprep.subr.mxu0 0.0
    %540 = vmatpush1.msra.mxu0 0.0
    %541 = vmatprep.subr.mxu0 0.0
    %542 = vmatpush1.msra.mxu0 0.0
    %543 = vmatprep.subr.mxu0 0.0
    %544 = vmatpush1.msra.mxu0 0.0
    %545 = vmatprep.subr.mxu0 0.0
    %546 = vmatpush1.msra.mxu0 0.0
    %547 = vmatprep.subr.mxu0 0.0
    %548 = vmatpush1.msra.mxu0 0.0
    %549 = vmatprep.subr.mxu0 0.0
    %550 = vmatpush1.msra.mxu0 0.0
    %551 = vmatprep.subr.mxu0 0.0
    %552 = vmatpush1.msra.mxu0 0.0
    %553 = vmatprep.subr.mxu0 0.0
    %554 = vmatpush1.msra.mxu0 0.0
    %555 = vmatprep.subr.mxu0 0.0
    %556 = vmatpush1.msra.mxu0 0.0
    %557 = vmatprep.subr.mxu0 0.0
    %558 = vmatpush1.msra.mxu0 0.0
    %559 = vmatprep.subr.mxu0 0.0
    %560 = vmatpush1.msra.mxu0 0.0
    %561 = vmatprep.subr.mxu0 0.0
    %562 = vmatpush1.msra.mxu0 0.0
    %563 = vmatprep.subr.mxu0 0.0
    %564 = vmatpush1.msra.mxu0 0.0
    %565 = vmatprep.subr.mxu0 0.0
    %566 = vmatpush1.msra.mxu0 0.0
    %567 = vmatprep.mubr.f32.mxu0 0.0
    %568 = vmatmul.mubr.f32.gmra.mrb[0].mxu0 %v501
    %v569 = vpop.f32.mrb[0].mxu0
    %v570 = vadd.f32 0.0, %v569
    %v571 = vpop.f32.mrb[0].mxu0
    %572 = vdwg.mxu0
    %573 = vrot.lane.b32.xlu0 %v226, 120
    %v574 = vpop.permute.xlu0 %573
    %575 = vrot.lane.b32.xlu0 %v218, 88
    %v576 = vpop.permute.xlu0 %575
    %v577 = vsel %vm243, %v574, 0
    %v579 = vsel %vm243, %v576, 0
    %581 = vmatprep.subr.mxu0 0.0
    %582 = vmatpush1.xpose.msra.mxu0 %v579
    %583 = vmatprep.subr.mxu0 0.0
    %584 = vmatpush1.xpose.msra.mxu0 0.0
    %585 = vmatprep.subr.mxu0 0.0
    %586 = vmatpush1.xpose.msra.mxu0 0.0
    %587 = vmatprep.subr.mxu0 0.0
    %588 = vmatpush1.xpose.msra.mxu0 0.0
    %589 = vmatprep.subr.mxu0 0.0
    %590 = vmatpush1.xpose.msra.mxu0 0.0
    %591 = vmatprep.subr.mxu0 0.0
    %592 = vmatpush1.xpose.msra.mxu0 0.0
    %593 = vmatprep.subr.mxu0 0.0
    %594 = vmatpush1.xpose.msra.mxu0 0.0
    %595 = vmatprep.subr.mxu0 0.0
    %596 = vmatpush1.xpose.msra.mxu0 0.0
    %597 = vmatprep.subr.mxu0 0.0
    %598 = vmatpush1.xpose.msra.mxu0 0.0
    %599 = vmatprep.subr.mxu0 0.0
    %600 = vmatpush1.xpose.msra.mxu0 0.0
    %601 = vmatprep.subr.mxu0 0.0
    %602 = vmatpush1.xpose.msra.mxu0 0.0
    %603 = vmatprep.subr.mxu0 0.0
    %604 = vmatpush1.xpose.msra.mxu0 0.0
    %605 = vmatprep.subr.mxu0 0.0
    %606 = vmatpush1.xpose.msra.mxu0 0.0
    %607 = vmatprep.subr.mxu0 0.0
    %608 = vmatpush1.xpose.msra.mxu0 0.0
    %609 = vmatprep.subr.mxu0 0.0
    %610 = vmatpush1.xpose.msra.mxu0 0.0
    %611 = vmatprep.subr.mxu0 0.0
    %612 = vmatpush1.xpose.msra.mxu0 0.0
    %613 = vmatprep.subr.mxu0 0.0
    %614 = vmatpush1.xpose.msra.mxu0 0.0
    %615 = vmatprep.subr.mxu0 0.0
    %616 = vmatpush1.xpose.msra.mxu0 0.0
    %617 = vmatprep.subr.mxu0 0.0
    %618 = vmatpush1.xpose.msra.mxu0 0.0
    %619 = vmatprep.subr.mxu0 0.0
    %620 = vmatpush1.xpose.msra.mxu0 0.0
    %621 = vmatprep.subr.mxu0 0.0
    %622 = vmatpush1.xpose.msra.mxu0 0.0
    %623 = vmatprep.subr.mxu0 0.0
    %624 = vmatpush1.xpose.msra.mxu0 0.0
    %625 = vmatprep.subr.mxu0 0.0
    %626 = vmatpush1.xpose.msra.mxu0 0.0
    %627 = vmatprep.subr.mxu0 0.0
    %628 = vmatpush1.xpose.msra.mxu0 0.0
    %629 = vmatprep.subr.mxu0 0.0
    %630 = vmatpush1.xpose.msra.mxu0 0.0
    %631 = vmatprep.subr.mxu0 0.0
    %632 = vmatpush1.xpose.msra.mxu0 0.0
    %633 = vmatprep.subr.mxu0 0.0
    %634 = vmatpush1.xpose.msra.mxu0 0.0
    %635 = vmatprep.subr.mxu0 0.0
    %636 = vmatpush1.xpose.msra.mxu0 0.0
    %637 = vmatprep.subr.mxu0 0.0
    %638 = vmatpush1.xpose.msra.mxu0 0.0
    %639 = vmatprep.subr.mxu0 0.0
    %640 = vmatpush1.xpose.msra.mxu0 0.0
    %641 = vmatprep.subr.mxu0 0.0
    %642 = vmatpush1.xpose.msra.mxu0 0.0
    %643 = vmatprep.subr.mxu0 0.0
    %644 = vmatpush1.xpose.msra.mxu0 0.0
    %645 = vmatprep.mubr.f32.mxu0 0.0
    %646 = vmatmul.mubr.f32.gmra.mrb[0].mxu0 %v577
    %v647 = vpop.f32.mrb[0].mxu0
    %v648 = vadd.f32 %v233, %v647
    %v649 = vpop.f32.mrb[0].mxu0
    %650 = vdwg.mxu0
    %651 = vrot.lane.b32.xlu0 %v227, 120
    %v652 = vpop.permute.xlu0 %651
    %653 = vrot.lane.b32.xlu0 %v223, 88
    %v654 = vpop.permute.xlu0 %653
    %v655 = vsel %vm243, %v652, 0
    %v657 = vsel %vm243, %v654, 0
    %659 = vmatprep.subr.mxu0 0.0
    %660 = vmatpush1.xpose.msra.mxu0 %v657
    %661 = vmatprep.subr.mxu0 0.0
    %662 = vmatpush1.xpose.msra.mxu0 0.0
    %663 = vmatprep.subr.mxu0 0.0
    %664 = vmatpush1.xpose.msra.mxu0 0.0
    %665 = vmatprep.subr.mxu0 0.0
    %666 = vmatpush1.xpose.msra.mxu0 0.0
    %667 = vmatprep.subr.mxu0 0.0
    %668 = vmatpush1.xpose.msra.mxu0 0.0
    %669 = vmatprep.subr.mxu0 0.0
    %670 = vmatpush1.xpose.msra.mxu0 0.0
    %671 = vmatprep.subr.mxu0 0.0
    %672 = vmatpush1.xpose.msra.mxu0 0.0
    %673 = vmatprep.subr.mxu0 0.0
    %674 = vmatpush1.xpose.msra.mxu0 0.0
    %675 = vmatprep.subr.mxu0 0.0
    %676 = vmatpush1.xpose.msra.mxu0 0.0
    %677 = vmatprep.subr.mxu0 0.0
    %678 = vmatpush1.xpose.msra.mxu0 0.0
    %679 = vmatprep.subr.mxu0 0.0
    %680 = vmatpush1.xpose.msra.mxu0 0.0
    %681 = vmatprep.subr.mxu0 0.0
    %682 = vmatpush1.xpose.msra.mxu0 0.0
    %683 = vmatprep.subr.mxu0 0.0
    %684 = vmatpush1.xpose.msra.mxu0 0.0
    %685 = vmatprep.subr.mxu0 0.0
    %686 = vmatpush1.xpose.msra.mxu0 0.0
    %687 = vmatprep.subr.mxu0 0.0
    %688 = vmatpush1.xpose.msra.mxu0 0.0
    %689 = vmatprep.subr.mxu0 0.0
    %690 = vmatpush1.xpose.msra.mxu0 0.0
    %691 = vmatprep.subr.mxu0 0.0
    %692 = vmatpush1.xpose.msra.mxu0 0.0
    %693 = vmatprep.subr.mxu0 0.0
    %694 = vmatpush1.xpose.msra.mxu0 0.0
    %695 = vmatprep.subr.mxu0 0.0
    %696 = vmatpush1.xpose.msra.mxu0 0.0
    %697 = vmatprep.subr.mxu0 0.0
    %698 = vmatpush1.xpose.msra.mxu0 0.0
    %699 = vmatprep.subr.mxu0 0.0
    %700 = vmatpush1.xpose.msra.mxu0 0.0
    %701 = vmatprep.subr.mxu0 0.0
    %702 = vmatpush1.xpose.msra.mxu0 0.0
    %703 = vmatprep.subr.mxu0 0.0
    %704 = vmatpush1.xpose.msra.mxu0 0.0
    %705 = vmatprep.subr.mxu0 0.0
    %706 = vmatpush1.xpose.msra.mxu0 0.0
    %707 = vmatprep.subr.mxu0 0.0
    %708 = vmatpush1.xpose.msra.mxu0 0.0
    %709 = vmatprep.subr.mxu0 0.0
    %710 = vmatpush1.xpose.msra.mxu0 0.0
    %711 = vmatprep.subr.mxu0 0.0
    %712 = vmatpush1.xpose.msra.mxu0 0.0
    %713 = vmatprep.subr.mxu0 0.0
    %714 = vmatpush1.xpose.msra.mxu0 0.0
    %715 = vmatprep.subr.mxu0 0.0
    %716 = vmatpush1.xpose.msra.mxu0 0.0
    %717 = vmatprep.subr.mxu0 0.0
    %718 = vmatpush1.xpose.msra.mxu0 0.0
    %719 = vmatprep.subr.mxu0 0.0
    %720 = vmatpush1.xpose.msra.mxu0 0.0
    %721 = vmatprep.subr.mxu0 0.0
    %722 = vmatpush1.xpose.msra.mxu0 0.0
    %723 = vmatprep.mubr.f32.mxu0 0.0
    %724 = vmatmul.mubr.f32.gmra.mrb[0].mxu0 %v655
    %v725 = vpop.f32.mrb[0].mxu0
    %v726 = vadd.f32 %v237, %v725
    %v727 = vpop.f32.mrb[0].mxu0
    %728 = vdwg.mxu0
    %v729 = vsel %vm243, %v648, -inf
    %730 = vmax.xlane.f32.xlu0 %v729
    %v731 = vpop.xlane.xlu0 %730
    %v732 = vsel %vm243, %v726, -inf
    %733 = vmax.xlane.f32.xlu0 %v732
    %v734 = vpop.xlane.xlu0 %733
    %v735 = vsub.f32 %v648, %v731
    %v736 = vsub.f32 %v726, %v734
    %v737 = vmul.f32 %v735, 1.442695
    %v738 = vpow.pop %v737
    %v739 = vmul.f32 %v736, 1.442695
    %v740 = vpow.pop %v739
    %v741 = vsel %vm243, %v738, 0.0
    %742 = vadd.xlane.f32.xlu0 %v741
    %v743 = vpop.xlane.xlu0 %742
    %v744 = vsel %vm243, %v740, 0.0
    %745 = vadd.xlane.f32.xlu0 %v744
    %v746 = vpop.xlane.xlu0 %745
    %v747 = vmax.f32 %v743, 1e-09
    %v748 = vmax.f32 %v746, 1e-09
    %v749 = vrcp.pop %v747
    %v750 = vrcp.pop %v748
    %v751 = vmul.f32 %v738, %v749
    %v752 = vmul.f32 %v740, %v750
    %753 = vrot.lane.b32.xlu0 %v218, 56
    %v754 = vpop.permute.xlu0 %753
    %v757 = vsel %vm243, %v751, 0
    %759 = vmatprep.subr.mxu0 0.0
    %760 = vmatpush1.msra.mxu0 %v754
    %761 = vmatprep.subr.mxu0 0.0
    %762 = vmatpush1.msra.mxu0 0.0
    %763 = vmatprep.subr.mxu0 0.0
    %764 = vmatpush1.msra.mxu0 0.0
    %765 = vmatprep.subr.mxu0 0.0
    %766 = vmatpush1.msra.mxu0 0.0
    %767 = vmatprep.subr.mxu0 0.0
    %768 = vmatpush1.msra.mxu0 0.0
    %769 = vmatprep.subr.mxu0 0.0
    %770 = vmatpush1.msra.mxu0 0.0
    %771 = vmatprep.subr.mxu0 0.0
    %772 = vmatpush1.msra.mxu0 0.0
    %773 = vmatprep.subr.mxu0 0.0
    %774 = vmatpush1.msra.mxu0 0.0
    %775 = vmatprep.subr.mxu0 0.0
    %776 = vmatpush1.msra.mxu0 0.0
    %777 = vmatprep.subr.mxu0 0.0
    %778 = vmatpush1.msra.mxu0 0.0
    %779 = vmatprep.subr.mxu0 0.0
    %780 = vmatpush1.msra.mxu0 0.0
    %781 = vmatprep.subr.mxu0 0.0
    %782 = vmatpush1.msra.mxu0 0.0
    %783 = vmatprep.subr.mxu0 0.0
    %784 = vmatpush1.msra.mxu0 0.0
    %785 = vmatprep.subr.mxu0 0.0
    %786 = vmatpush1.msra.mxu0 0.0
    %787 = vmatprep.subr.mxu0 0.0
    %788 = vmatpush1.msra.mxu0 0.0
    %789 = vmatprep.subr.mxu0 0.0
    %790 = vmatpush1.msra.mxu0 0.0
    %791 = vmatprep.subr.mxu0 0.0
    %792 = vmatpush1.msra.mxu0 0.0
    %793 = vmatprep.subr.mxu0 0.0
    %794 = vmatpush1.msra.mxu0 0.0
    %795 = vmatprep.subr.mxu0 0.0
    %796 = vmatpush1.msra.mxu0 0.0
    %797 = vmatprep.subr.mxu0 0.0
    %798 = vmatpush1.msra.mxu0 0.0
    %799 = vmatprep.subr.mxu0 0.0
    %800 = vmatpush1.msra.mxu0 0.0
    %801 = vmatprep.subr.mxu0 0.0
    %802 = vmatpush1.msra.mxu0 0.0
    %803 = vmatprep.subr.mxu0 0.0
    %804 = vmatpush1.msra.mxu0 0.0
    %805 = vmatprep.subr.mxu0 0.0
    %806 = vmatpush1.msra.mxu0 0.0
    %807 = vmatprep.subr.mxu0 0.0
    %808 = vmatpush1.msra.mxu0 0.0
    %809 = vmatprep.subr.mxu0 0.0
    %810 = vmatpush1.msra.mxu0 0.0
    %811 = vmatprep.subr.mxu0 0.0
    %812 = vmatpush1.msra.mxu0 0.0
    %813 = vmatprep.subr.mxu0 0.0
    %814 = vmatpush1.msra.mxu0 0.0
    %815 = vmatprep.subr.mxu0 0.0
    %816 = vmatpush1.msra.mxu0 0.0
    %817 = vmatprep.subr.mxu0 0.0
    %818 = vmatpush1.msra.mxu0 0.0
    %819 = vmatprep.subr.mxu0 0.0
    %820 = vmatpush1.msra.mxu0 0.0
    %821 = vmatprep.subr.mxu0 0.0
    %822 = vmatpush1.msra.mxu0 0.0
    %823 = vmatprep.mubr.f32.mxu0 0.0
    %824 = vmatmul.mubr.f32.gmra.mrb[0].mxu0 %v757
    %v825 = vpop.f32.mrb[0].mxu0
    %v826 = vadd.f32 0.0, %v825
    %v827 = vpop.f32.mrb[0].mxu0
    %828 = vdwg.mxu0
    %829 = vrot.lane.b32.xlu0 %v223, 56
    %v830 = vpop.permute.xlu0 %829
    %v833 = vsel %vm243, %v752, 0
    %835 = vmatprep.subr.mxu0 0.0
    %836 = vmatpush1.msra.mxu0 %v830
    %837 = vmatprep.subr.mxu0 0.0
    %838 = vmatpush1.msra.mxu0 0.0
    %839 = vmatprep.subr.mxu0 0.0
    %840 = vmatpush1.msra.mxu0 0.0
    %841 = vmatprep.subr.mxu0 0.0
    %842 = vmatpush1.msra.mxu0 0.0
    %843 = vmatprep.subr.mxu0 0.0
    %844 = vmatpush1.msra.mxu0 0.0
    %845 = vmatprep.subr.mxu0 0.0
    %846 = vmatpush1.msra.mxu0 0.0
    %847 = vmatprep.subr.mxu0 0.0
    %848 = vmatpush1.msra.mxu0 0.0
    %849 = vmatprep.subr.mxu0 0.0
    %850 = vmatpush1.msra.mxu0 0.0
    %851 = vmatprep.subr.mxu0 0.0
    %852 = vmatpush1.msra.mxu0 0.0
    %853 = vmatprep.subr.mxu0 0.0
    %854 = vmatpush1.msra.mxu0 0.0
    %855 = vmatprep.subr.mxu0 0.0
    %856 = vmatpush1.msra.mxu0 0.0
    %857 = vmatprep.subr.mxu0 0.0
    %858 = vmatpush1.msra.mxu0 0.0
    %859 = vmatprep.subr.mxu0 0.0
    %860 = vmatpush1.msra.mxu0 0.0
    %861 = vmatprep.subr.mxu0 0.0
    %862 = vmatpush1.msra.mxu0 0.0
    %863 = vmatprep.subr.mxu0 0.0
    %864 = vmatpush1.msra.mxu0 0.0
    %865 = vmatprep.subr.mxu0 0.0
    %866 = vmatpush1.msra.mxu0 0.0
    %867 = vmatprep.subr.mxu0 0.0
    %868 = vmatpush1.msra.mxu0 0.0
    %869 = vmatprep.subr.mxu0 0.0
    %870 = vmatpush1.msra.mxu0 0.0
    %871 = vmatprep.subr.mxu0 0.0
    %872 = vmatpush1.msra.mxu0 0.0
    %873 = vmatprep.subr.mxu0 0.0
    %874 = vmatpush1.msra.mxu0 0.0
    %875 = vmatprep.subr.mxu0 0.0
    %876 = vmatpush1.msra.mxu0 0.0
    %877 = vmatprep.subr.mxu0 0.0
    %878 = vmatpush1.msra.mxu0 0.0
    %879 = vmatprep.subr.mxu0 0.0
    %880 = vmatpush1.msra.mxu0 0.0
    %881 = vmatprep.subr.mxu0 0.0
    %882 = vmatpush1.msra.mxu0 0.0
    %883 = vmatprep.subr.mxu0 0.0
    %884 = vmatpush1.msra.mxu0 0.0
    %885 = vmatprep.subr.mxu0 0.0
    %886 = vmatpush1.msra.mxu0 0.0
    %887 = vmatprep.subr.mxu0 0.0
    %888 = vmatpush1.msra.mxu0 0.0
    %889 = vmatprep.subr.mxu0 0.0
    %890 = vmatpush1.msra.mxu0 0.0
    %891 = vmatprep.subr.mxu0 0.0
    %892 = vmatpush1.msra.mxu0 0.0
    %893 = vmatprep.subr.mxu0 0.0
    %894 = vmatpush1.msra.mxu0 0.0
    %895 = vmatprep.subr.mxu0 0.0
    %896 = vmatpush1.msra.mxu0 0.0
    %897 = vmatprep.subr.mxu0 0.0
    %898 = vmatpush1.msra.mxu0 0.0
    %899 = vmatprep.mubr.f32.mxu0 0.0
    %900 = vmatmul.mubr.f32.gmra.mrb[0].mxu0 %v833
    %v901 = vpop.f32.mrb[0].mxu0
    %v902 = vadd.f32 0.0, %v901
    %v903 = vpop.f32.mrb[0].mxu0
    %904 = vdwg.mxu0
    %905 = vrot.lane.b32.xlu0 %v226, 112
    %v906 = vpop.permute.xlu0 %905
    %907 = vrot.lane.b32.xlu0 %v218, 80
    %v908 = vpop.permute.xlu0 %907
    %v909 = vsel %vm243, %v906, 0
    %v911 = vsel %vm243, %v908, 0
    %913 = vmatprep.subr.mxu0 0.0
    %914 = vmatpush1.xpose.msra.mxu0 %v911
    %915 = vmatprep.subr.mxu0 0.0
    %916 = vmatpush1.xpose.msra.mxu0 0.0
    %917 = vmatprep.subr.mxu0 0.0
    %918 = vmatpush1.xpose.msra.mxu0 0.0
    %919 = vmatprep.subr.mxu0 0.0
    %920 = vmatpush1.xpose.msra.mxu0 0.0
    %921 = vmatprep.subr.mxu0 0.0
    %922 = vmatpush1.xpose.msra.mxu0 0.0
    %923 = vmatprep.subr.mxu0 0.0
    %924 = vmatpush1.xpose.msra.mxu0 0.0
    %925 = vmatprep.subr.mxu0 0.0
    %926 = vmatpush1.xpose.msra.mxu0 0.0
    %927 = vmatprep.subr.mxu0 0.0
    %928 = vmatpush1.xpose.msra.mxu0 0.0
    %929 = vmatprep.subr.mxu0 0.0
    %930 = vmatpush1.xpose.msra.mxu0 0.0
    %931 = vmatprep.subr.mxu0 0.0
    %932 = vmatpush1.xpose.msra.mxu0 0.0
    %933 = vmatprep.subr.mxu0 0.0
    %934 = vmatpush1.xpose.msra.mxu0 0.0
    %935 = vmatprep.subr.mxu0 0.0
    %936 = vmatpush1.xpose.msra.mxu0 0.0
    %937 = vmatprep.subr.mxu0 0.0
    %938 = vmatpush1.xpose.msra.mxu0 0.0
    %939 = vmatprep.subr.mxu0 0.0
    %940 = vmatpush1.xpose.msra.mxu0 0.0
    %941 = vmatprep.subr.mxu0 0.0
    %942 = vmatpush1.xpose.msra.mxu0 0.0
    %943 = vmatprep.subr.mxu0 0.0
    %944 = vmatpush1.xpose.msra.mxu0 0.0
    %945 = vmatprep.subr.mxu0 0.0
    %946 = vmatpush1.xpose.msra.mxu0 0.0
    %947 = vmatprep.subr.mxu0 0.0
    %948 = vmatpush1.xpose.msra.mxu0 0.0
    %949 = vmatprep.subr.mxu0 0.0
    %950 = vmatpush1.xpose.msra.mxu0 0.0
    %951 = vmatprep.subr.mxu0 0.0
    %952 = vmatpush1.xpose.msra.mxu0 0.0
    %953 = vmatprep.subr.mxu0 0.0
    %954 = vmatpush1.xpose.msra.mxu0 0.0
    %955 = vmatprep.subr.mxu0 0.0
    %956 = vmatpush1.xpose.msra.mxu0 0.0
    %957 = vmatprep.subr.mxu0 0.0
    %958 = vmatpush1.xpose.msra.mxu0 0.0
    %959 = vmatprep.subr.mxu0 0.0
    %960 = vmatpush1.xpose.msra.mxu0 0.0
    %961 = vmatprep.subr.mxu0 0.0
    %962 = vmatpush1.xpose.msra.mxu0 0.0
    %963 = vmatprep.subr.mxu0 0.0
    %964 = vmatpush1.xpose.msra.mxu0 0.0
    %965 = vmatprep.subr.mxu0 0.0
    %966 = vmatpush1.xpose.msra.mxu0 0.0
    %967 = vmatprep.subr.mxu0 0.0
    %968 = vmatpush1.xpose.msra.mxu0 0.0
    %969 = vmatprep.subr.mxu0 0.0
    %970 = vmatpush1.xpose.msra.mxu0 0.0
    %971 = vmatprep.subr.mxu0 0.0
    %972 = vmatpush1.xpose.msra.mxu0 0.0
    %973 = vmatprep.subr.mxu0 0.0
    %974 = vmatpush1.xpose.msra.mxu0 0.0
    %975 = vmatprep.subr.mxu0 0.0
    %976 = vmatpush1.xpose.msra.mxu0 0.0
    %977 = vmatprep.mubr.f32.mxu0 0.0
    %978 = vmatmul.mubr.f32.gmra.mrb[0].mxu0 %v909
    %v979 = vpop.f32.mrb[0].mxu0
    %v980 = vadd.f32 %v233, %v979
    %v981 = vpop.f32.mrb[0].mxu0
    %982 = vdwg.mxu0
    %983 = vrot.lane.b32.xlu0 %v227, 112
    %v984 = vpop.permute.xlu0 %983
    %985 = vrot.lane.b32.xlu0 %v223, 80
    %v986 = vpop.permute.xlu0 %985
    %v987 = vsel %vm243, %v984, 0
    %v989 = vsel %vm243, %v986, 0
    %991 = vmatprep.subr.mxu0 0.0
    %992 = vmatpush1.xpose.msra.mxu0 %v989
    %993 = vmatprep.subr.mxu0 0.0
    %994 = vmatpush1.xpose.msra.mxu0 0.0
    %995 = vmatprep.subr.mxu0 0.0
    %996 = vmatpush1.xpose.msra.mxu0 0.0
    %997 = vmatprep.subr.mxu0 0.0
    %998 = vmatpush1.xpose.msra.mxu0 0.0
    %999 = vmatprep.subr.mxu0 0.0
    %1000 = vmatpush1.xpose.msra.mxu0 0.0
    %1001 = vmatprep.subr.mxu0 0.0
    %1002 = vmatpush1.xpose.msra.mxu0 0.0
    %1003 = vmatprep.subr.mxu0 0.0
    %1004 = vmatpush1.xpose.msra.mxu0 0.0
    %1005 = vmatprep.subr.mxu0 0.0
    %1006 = vmatpush1.xpose.msra.mxu0 0.0
    %1007 = vmatprep.subr.mxu0 0.0
    %1008 = vmatpush1.xpose.msra.mxu0 0.0
    %1009 = vmatprep.subr.mxu0 0.0
    %1010 = vmatpush1.xpose.msra.mxu0 0.0
    %1011 = vmatprep.subr.mxu0 0.0
    %1012 = vmatpush1.xpose.msra.mxu0 0.0
    %1013 = vmatprep.subr.mxu0 0.0
    %1014 = vmatpush1.xpose.msra.mxu0 0.0
    %1015 = vmatprep.subr.mxu0 0.0
    %1016 = vmatpush1.xpose.msra.mxu0 0.0
    %1017 = vmatprep.subr.mxu0 0.0
    %1018 = vmatpush1.xpose.msra.mxu0 0.0
    %1019 = vmatprep.subr.mxu0 0.0
    %1020 = vmatpush1.xpose.msra.mxu0 0.0
    %1021 = vmatprep.subr.mxu0 0.0
    %1022 = vmatpush1.xpose.msra.mxu0 0.0
    %1023 = vmatprep.subr.mxu0 0.0
    %1024 = vmatpush1.xpose.msra.mxu0 0.0
    %1025 = vmatprep.subr.mxu0 0.0
    %1026 = vmatpush1.xpose.msra.mxu0 0.0
    %1027 = vmatprep.subr.mxu0 0.0
    %1028 = vmatpush1.xpose.msra.mxu0 0.0
    %1029 = vmatprep.subr.mxu0 0.0
    %1030 = vmatpush1.xpose.msra.mxu0 0.0
    %1031 = vmatprep.subr.mxu0 0.0
    %1032 = vmatpush1.xpose.msra.mxu0 0.0
    %1033 = vmatprep.subr.mxu0 0.0
    %1034 = vmatpush1.xpose.msra.mxu0 0.0
    %1035 = vmatprep.subr.mxu0 0.0
    %1036 = vmatpush1.xpose.msra.mxu0 0.0
    %1037 = vmatprep.subr.mxu0 0.0
    %1038 = vmatpush1.xpose.msra.mxu0 0.0
    %1039 = vmatprep.subr.mxu0 0.0
    %1040 = vmatpush1.xpose.msra.mxu0 0.0
    %1041 = vmatprep.subr.mxu0 0.0
    %1042 = vmatpush1.xpose.msra.mxu0 0.0
    %1043 = vmatprep.subr.mxu0 0.0
    %1044 = vmatpush1.xpose.msra.mxu0 0.0
    %1045 = vmatprep.subr.mxu0 0.0
    %1046 = vmatpush1.xpose.msra.mxu0 0.0
    %1047 = vmatprep.subr.mxu0 0.0
    %1048 = vmatpush1.xpose.msra.mxu0 0.0
    %1049 = vmatprep.subr.mxu0 0.0
    %1050 = vmatpush1.xpose.msra.mxu0 0.0
    %1051 = vmatprep.subr.mxu0 0.0
    %1052 = vmatpush1.xpose.msra.mxu0 0.0
    %1053 = vmatprep.subr.mxu0 0.0
    %1054 = vmatpush1.xpose.msra.mxu0 0.0
    %1055 = vmatprep.mubr.f32.mxu0 0.0
    %1056 = vmatmul.mubr.f32.gmra.mrb[0].mxu0 %v987
    %v1057 = vpop.f32.mrb[0].mxu0
    %v1058 = vadd.f32 %v237, %v1057
    %v1059 = vpop.f32.mrb[0].mxu0
    %1060 = vdwg.mxu0
    %v1061 = vsel %vm243, %v980, -inf
    %1062 = vmax.xlane.f32.xlu0 %v1061
    %v1063 = vpop.xlane.xlu0 %1062
    %v1064 = vsel %vm243, %v1058, -inf
    %1065 = vmax.xlane.f32.xlu0 %v1064
    %v1066 = vpop.xlane.xlu0 %1065
    %v1067 = vsub.f32 %v980, %v1063
    %v1068 = vsub.f32 %v1058, %v1066
    %v1069 = vmul.f32 %v1067, 1.442695
    %v1070 = vpow.pop %v1069
    %v1071 = vmul.f32 %v1068, 1.442695
    %v1072 = vpow.pop %v1071
    %v1073 = vsel %vm243, %v1070, 0.0
    %1074 = vadd.xlane.f32.xlu0 %v1073
    %v1075 = vpop.xlane.xlu0 %1074
    %v1076 = vsel %vm243, %v1072, 0.0
    %1077 = vadd.xlane.f32.xlu0 %v1076
    %v1078 = vpop.xlane.xlu0 %1077
    %v1079 = vmax.f32 %v1075, 1e-09
    %v1080 = vmax.f32 %v1078, 1e-09
    %v1081 = vrcp.pop %v1079
    %v1082 = vrcp.pop %v1080
    %v1083 = vmul.f32 %v1070, %v1081
    %v1084 = vmul.f32 %v1072, %v1082
    %1085 = vrot.lane.b32.xlu0 %v218, 48
    %v1086 = vpop.permute.xlu0 %1085
    %v1089 = vsel %vm243, %v1083, 0
    %1091 = vmatprep.subr.mxu0 0.0
    %1092 = vmatpush1.msra.mxu0 %v1086
    %1093 = vmatprep.subr.mxu0 0.0
    %1094 = vmatpush1.msra.mxu0 0.0
    %1095 = vmatprep.subr.mxu0 0.0
    %1096 = vmatpush1.msra.mxu0 0.0
    %1097 = vmatprep.subr.mxu0 0.0
    %1098 = vmatpush1.msra.mxu0 0.0
    %1099 = vmatprep.subr.mxu0 0.0
    %1100 = vmatpush1.msra.mxu0 0.0
    %1101 = vmatprep.subr.mxu0 0.0
    %1102 = vmatpush1.msra.mxu0 0.0
    %1103 = vmatprep.subr.mxu0 0.0
    %1104 = vmatpush1.msra.mxu0 0.0
    %1105 = vmatprep.subr.mxu0 0.0
    %1106 = vmatpush1.msra.mxu0 0.0
    %1107 = vmatprep.subr.mxu0 0.0
    %1108 = vmatpush1.msra.mxu0 0.0
    %1109 = vmatprep.subr.mxu0 0.0
    %1110 = vmatpush1.msra.mxu0 0.0
    %1111 = vmatprep.subr.mxu0 0.0
    %1112 = vmatpush1.msra.mxu0 0.0
    %1113 = vmatprep.subr.mxu0 0.0
    %1114 = vmatpush1.msra.mxu0 0.0
    %1115 = vmatprep.subr.mxu0 0.0
    %1116 = vmatpush1.msra.mxu0 0.0
    %1117 = vmatprep.subr.mxu0 0.0
    %1118 = vmatpush1.msra.mxu0 0.0
    %1119 = vmatprep.subr.mxu0 0.0
    %1120 = vmatpush1.msra.mxu0 0.0
    %1121 = vmatprep.subr.mxu0 0.0
    %1122 = vmatpush1.msra.mxu0 0.0
    %1123 = vmatprep.subr.mxu0 0.0
    %1124 = vmatpush1.msra.mxu0 0.0
    %1125 = vmatprep.subr.mxu0 0.0
    %1126 = vmatpush1.msra.mxu0 0.0
    %1127 = vmatprep.subr.mxu0 0.0
    %1128 = vmatpush1.msra.mxu0 0.0
    %1129 = vmatprep.subr.mxu0 0.0
    %1130 = vmatpush1.msra.mxu0 0.0
    %1131 = vmatprep.subr.mxu0 0.0
    %1132 = vmatpush1.msra.mxu0 0.0
    %1133 = vmatprep.subr.mxu0 0.0
    %1134 = vmatpush1.msra.mxu0 0.0
    %1135 = vmatprep.subr.mxu0 0.0
    %1136 = vmatpush1.msra.mxu0 0.0
    %1137 = vmatprep.subr.mxu0 0.0
    %1138 = vmatpush1.msra.mxu0 0.0
    %1139 = vmatprep.subr.mxu0 0.0
    %1140 = vmatpush1.msra.mxu0 0.0
    %1141 = vmatprep.subr.mxu0 0.0
    %1142 = vmatpush1.msra.mxu0 0.0
    %1143 = vmatprep.subr.mxu0 0.0
    %1144 = vmatpush1.msra.mxu0 0.0
    %1145 = vmatprep.subr.mxu0 0.0
    %1146 = vmatpush1.msra.mxu0 0.0
    %1147 = vmatprep.subr.mxu0 0.0
    %1148 = vmatpush1.msra.mxu0 0.0
    %1149 = vmatprep.subr.mxu0 0.0
    %1150 = vmatpush1.msra.mxu0 0.0
    %1151 = vmatprep.subr.mxu0 0.0
    %1152 = vmatpush1.msra.mxu0 0.0
    %1153 = vmatprep.subr.mxu0 0.0
    %1154 = vmatpush1.msra.mxu0 0.0
    %1155 = vmatprep.mubr.f32.mxu0 0.0
    %1156 = vmatmul.mubr.f32.gmra.mrb[0].mxu0 %v1089
    %v1157 = vpop.f32.mrb[0].mxu0
    %v1158 = vadd.f32 0.0, %v1157
    %v1159 = vpop.f32.mrb[0].mxu0
    %1160 = vdwg.mxu0
    %1161 = vrot.lane.b32.xlu0 %v223, 48
    %v1162 = vpop.permute.xlu0 %1161
    %v1165 = vsel %vm243, %v1084, 0
    %1167 = vmatprep.subr.mxu0 0.0
    %1168 = vmatpush1.msra.mxu0 %v1162
    %1169 = vmatprep.subr.mxu0 0.0
    %1170 = vmatpush1.msra.mxu0 0.0
    %1171 = vmatprep.subr.mxu0 0.0
    %1172 = vmatpush1.msra.mxu0 0.0
    %1173 = vmatprep.subr.mxu0 0.0
    %1174 = vmatpush1.msra.mxu0 0.0
    %1175 = vmatprep.subr.mxu0 0.0
    %1176 = vmatpush1.msra.mxu0 0.0
    %1177 = vmatprep.subr.mxu0 0.0
    %1178 = vmatpush1.msra.mxu0 0.0
    %1179 = vmatprep.subr.mxu0 0.0
    %1180 = vmatpush1.msra.mxu0 0.0
    %1181 = vmatprep.subr.mxu0 0.0
    %1182 = vmatpush1.msra.mxu0 0.0
    %1183 = vmatprep.subr.mxu0 0.0
    %1184 = vmatpush1.msra.mxu0 0.0
    %1185 = vmatprep.subr.mxu0 0.0
    %1186 = vmatpush1.msra.mxu0 0.0
    %1187 = vmatprep.subr.mxu0 0.0
    %1188 = vmatpush1.msra.mxu0 0.0
    %1189 = vmatprep.subr.mxu0 0.0
    %1190 = vmatpush1.msra.mxu0 0.0
    %1191 = vmatprep.subr.mxu0 0.0
    %1192 = vmatpush1.msra.mxu0 0.0
    %1193 = vmatprep.subr.mxu0 0.0
    %1194 = vmatpush1.msra.mxu0 0.0
    %1195 = vmatprep.subr.mxu0 0.0
    %1196 = vmatpush1.msra.mxu0 0.0
    %1197 = vmatprep.subr.mxu0 0.0
    %1198 = vmatpush1.msra.mxu0 0.0
    %1199 = vmatprep.subr.mxu0 0.0
    %1200 = vmatpush1.msra.mxu0 0.0
    %1201 = vmatprep.subr.mxu0 0.0
    %1202 = vmatpush1.msra.mxu0 0.0
    %1203 = vmatprep.subr.mxu0 0.0
    %1204 = vmatpush1.msra.mxu0 0.0
    %1205 = vmatprep.subr.mxu0 0.0
    %1206 = vmatpush1.msra.mxu0 0.0
    %1207 = vmatprep.subr.mxu0 0.0
    %1208 = vmatpush1.msra.mxu0 0.0
    %1209 = vmatprep.subr.mxu0 0.0
    %1210 = vmatpush1.msra.mxu0 0.0
    %1211 = vmatprep.subr.mxu0 0.0
    %1212 = vmatpush1.msra.mxu0 0.0
    %1213 = vmatprep.subr.mxu0 0.0
    %1214 = vmatpush1.msra.mxu0 0.0
    %1215 = vmatprep.subr.mxu0 0.0
    %1216 = vmatpush1.msra.mxu0 0.0
    %1217 = vmatprep.subr.mxu0 0.0
    %1218 = vmatpush1.msra.mxu0 0.0
    %1219 = vmatprep.subr.mxu0 0.0
    %1220 = vmatpush1.msra.mxu0 0.0
    %1221 = vmatprep.subr.mxu0 0.0
    %1222 = vmatpush1.msra.mxu0 0.0
    %1223 = vmatprep.subr.mxu0 0.0
    %1224 = vmatpush1.msra.mxu0 0.0
    %1225 = vmatprep.subr.mxu0 0.0
    %1226 = vmatpush1.msra.mxu0 0.0
    %1227 = vmatprep.subr.mxu0 0.0
    %1228 = vmatpush1.msra.mxu0 0.0
    %1229 = vmatprep.subr.mxu0 0.0
    %1230 = vmatpush1.msra.mxu0 0.0
    %1231 = vmatprep.mubr.f32.mxu0 0.0
    %1232 = vmatmul.mubr.f32.gmra.mrb[0].mxu0 %v1165
    %v1233 = vpop.f32.mrb[0].mxu0
    %v1234 = vadd.f32 0.0, %v1233
    %v1235 = vpop.f32.mrb[0].mxu0
    %1236 = vdwg.mxu0
    %1237 = vrot.lane.b32.xlu0 %v226, 104
    %v1238 = vpop.permute.xlu0 %1237
    %1239 = vrot.lane.b32.xlu0 %v218, 72
    %v1240 = vpop.permute.xlu0 %1239
    %v1241 = vsel %vm243, %v1238, 0
    %v1243 = vsel %vm243, %v1240, 0
    %1245 = vmatprep.subr.mxu0 0.0
    %1246 = vmatpush1.xpose.msra.mxu0 %v1243
    %1247 = vmatprep.subr.mxu0 0.0
    %1248 = vmatpush1.xpose.msra.mxu0 0.0
    %1249 = vmatprep.subr.mxu0 0.0
    %1250 = vmatpush1.xpose.msra.mxu0 0.0
    %1251 = vmatprep.subr.mxu0 0.0
    %1252 = vmatpush1.xpose.msra.mxu0 0.0
    %1253 = vmatprep.subr.mxu0 0.0
    %1254 = vmatpush1.xpose.msra.mxu0 0.0
    %1255 = vmatprep.subr.mxu0 0.0
    %1256 = vmatpush1.xpose.msra.mxu0 0.0
    %1257 = vmatprep.subr.mxu0 0.0
    %1258 = vmatpush1.xpose.msra.mxu0 0.0
    %1259 = vmatprep.subr.mxu0 0.0
    %1260 = vmatpush1.xpose.msra.mxu0 0.0
    %1261 = vmatprep.subr.mxu0 0.0
    %1262 = vmatpush1.xpose.msra.mxu0 0.0
    %1263 = vmatprep.subr.mxu0 0.0
    %1264 = vmatpush1.xpose.msra.mxu0 0.0
    %1265 = vmatprep.subr.mxu0 0.0
    %1266 = vmatpush1.xpose.msra.mxu0 0.0
    %1267 = vmatprep.subr.mxu0 0.0
    %1268 = vmatpush1.xpose.msra.mxu0 0.0
    %1269 = vmatprep.subr.mxu0 0.0
    %1270 = vmatpush1.xpose.msra.mxu0 0.0
    %1271 = vmatprep.subr.mxu0 0.0
    %1272 = vmatpush1.xpose.msra.mxu0 0.0
    %1273 = vmatprep.subr.mxu0 0.0
    %1274 = vmatpush1.xpose.msra.mxu0 0.0
    %1275 = vmatprep.subr.mxu0 0.0
    %1276 = vmatpush1.xpose.msra.mxu0 0.0
    %1277 = vmatprep.subr.mxu0 0.0
    %1278 = vmatpush1.xpose.msra.mxu0 0.0
    %1279 = vmatprep.subr.mxu0 0.0
    %1280 = vmatpush1.xpose.msra.mxu0 0.0
    %1281 = vmatprep.subr.mxu0 0.0
    %1282 = vmatpush1.xpose.msra.mxu0 0.0
    %1283 = vmatprep.subr.mxu0 0.0
    %1284 = vmatpush1.xpose.msra.mxu0 0.0
    %1285 = vmatprep.subr.mxu0 0.0
    %1286 = vmatpush1.xpose.msra.mxu0 0.0
    %1287 = vmatprep.subr.mxu0 0.0
    %1288 = vmatpush1.xpose.msra.mxu0 0.0
    %1289 = vmatprep.subr.mxu0 0.0
    %1290 = vmatpush1.xpose.msra.mxu0 0.0
    %1291 = vmatprep.subr.mxu0 0.0
    %1292 = vmatpush1.xpose.msra.mxu0 0.0
    %1293 = vmatprep.subr.mxu0 0.0
    %1294 = vmatpush1.xpose.msra.mxu0 0.0
    %1295 = vmatprep.subr.mxu0 0.0
    %1296 = vmatpush1.xpose.msra.mxu0 0.0
    %1297 = vmatprep.subr.mxu0 0.0
    %1298 = vmatpush1.xpose.msra.mxu0 0.0
    %1299 = vmatprep.subr.mxu0 0.0
    %1300 = vmatpush1.xpose.msra.mxu0 0.0
    %1301 = vmatprep.subr.mxu0 0.0
    %1302 = vmatpush1.xpose.msra.mxu0 0.0
    %1303 = vmatprep.subr.mxu0 0.0
    %1304 = vmatpush1.xpose.msra.mxu0 0.0
    %1305 = vmatprep.subr.mxu0 0.0
    %1306 = vmatpush1.xpose.msra.mxu0 0.0
    %1307 = vmatprep.subr.mxu0 0.0
    %1308 = vmatpush1.xpose.msra.mxu0 0.0
    %1309 = vmatprep.mubr.f32.mxu0 0.0
    %1310 = vmatmul.mubr.f32.gmra.mrb[0].mxu0 %v1241
    %v1311 = vpop.f32.mrb[0].mxu0
    %v1312 = vadd.f32 %v233, %v1311
    %v1313 = vpop.f32.mrb[0].mxu0
    %1314 = vdwg.mxu0
    %1315 = vrot.lane.b32.xlu0 %v227, 104
    %v1316 = vpop.permute.xlu0 %1315
    %1317 = vrot.lane.b32.xlu0 %v223, 72
    %v1318 = vpop.permute.xlu0 %1317
    %v1319 = vsel %vm243, %v1316, 0
    %v1321 = vsel %vm243, %v1318, 0
    %1323 = vmatprep.subr.mxu0 0.0
    %1324 = vmatpush1.xpose.msra.mxu0 %v1321
    %1325 = vmatprep.subr.mxu0 0.0
    %1326 = vmatpush1.xpose.msra.mxu0 0.0
    %1327 = vmatprep.subr.mxu0 0.0
    %1328 = vmatpush1.xpose.msra.mxu0 0.0
    %1329 = vmatprep.subr.mxu0 0.0
    %1330 = vmatpush1.xpose.msra.mxu0 0.0
    %1331 = vmatprep.subr.mxu0 0.0
    %1332 = vmatpush1.xpose.msra.mxu0 0.0
    %1333 = vmatprep.subr.mxu0 0.0
    %1334 = vmatpush1.xpose.msra.mxu0 0.0
    %1335 = vmatprep.subr.mxu0 0.0
    %1336 = vmatpush1.xpose.msra.mxu0 0.0
    %1337 = vmatprep.subr.mxu0 0.0
    %1338 = vmatpush1.xpose.msra.mxu0 0.0
    %1339 = vmatprep.subr.mxu0 0.0
    %1340 = vmatpush1.xpose.msra.mxu0 0.0
    %1341 = vmatprep.subr.mxu0 0.0
    %1342 = vmatpush1.xpose.msra.mxu0 0.0
    %1343 = vmatprep.subr.mxu0 0.0
    %1344 = vmatpush1.xpose.msra.mxu0 0.0
    %1345 = vmatprep.subr.mxu0 0.0
    %1346 = vmatpush1.xpose.msra.mxu0 0.0
    %1347 = vmatprep.subr.mxu0 0.0
    %1348 = vmatpush1.xpose.msra.mxu0 0.0
    %1349 = vmatprep.subr.mxu0 0.0
    %1350 = vmatpush1.xpose.msra.mxu0 0.0
    %1351 = vmatprep.subr.mxu0 0.0
    %1352 = vmatpush1.xpose.msra.mxu0 0.0
    %1353 = vmatprep.subr.mxu0 0.0
    %1354 = vmatpush1.xpose.msra.mxu0 0.0
    %1355 = vmatprep.subr.mxu0 0.0
    %1356 = vmatpush1.xpose.msra.mxu0 0.0
    %1357 = vmatprep.subr.mxu0 0.0
    %1358 = vmatpush1.xpose.msra.mxu0 0.0
    %1359 = vmatprep.subr.mxu0 0.0
    %1360 = vmatpush1.xpose.msra.mxu0 0.0
    %1361 = vmatprep.subr.mxu0 0.0
    %1362 = vmatpush1.xpose.msra.mxu0 0.0
    %1363 = vmatprep.subr.mxu0 0.0
    %1364 = vmatpush1.xpose.msra.mxu0 0.0
    %1365 = vmatprep.subr.mxu0 0.0
    %1366 = vmatpush1.xpose.msra.mxu0 0.0
    %1367 = vmatprep.subr.mxu0 0.0
    %1368 = vmatpush1.xpose.msra.mxu0 0.0
    %1369 = vmatprep.subr.mxu0 0.0
    %1370 = vmatpush1.xpose.msra.mxu0 0.0
    %1371 = vmatprep.subr.mxu0 0.0
    %1372 = vmatpush1.xpose.msra.mxu0 0.0
    %1373 = vmatprep.subr.mxu0 0.0
    %1374 = vmatpush1.xpose.msra.mxu0 0.0
    %1375 = vmatprep.subr.mxu0 0.0
    %1376 = vmatpush1.xpose.msra.mxu0 0.0
    %1377 = vmatprep.subr.mxu0 0.0
    %1378 = vmatpush1.xpose.msra.mxu0 0.0
    %1379 = vmatprep.subr.mxu0 0.0
    %1380 = vmatpush1.xpose.msra.mxu0 0.0
    %1381 = vmatprep.subr.mxu0 0.0
    %1382 = vmatpush1.xpose.msra.mxu0 0.0
    %1383 = vmatprep.subr.mxu0 0.0
    %1384 = vmatpush1.xpose.msra.mxu0 0.0
    %1385 = vmatprep.subr.mxu0 0.0
    %1386 = vmatpush1.xpose.msra.mxu0 0.0
    %1387 = vmatprep.mubr.f32.mxu0 0.0
    %1388 = vmatmul.mubr.f32.gmra.mrb[0].mxu0 %v1319
    %v1389 = vpop.f32.mrb[0].mxu0
    %v1390 = vadd.f32 %v237, %v1389
    %v1391 = vpop.f32.mrb[0].mxu0
    %1392 = vdwg.mxu0
    %v1393 = vsel %vm243, %v1312, -inf
    %1394 = vmax.xlane.f32.xlu0 %v1393
    %v1395 = vpop.xlane.xlu0 %1394
    %v1396 = vsel %vm243, %v1390, -inf
    %1397 = vmax.xlane.f32.xlu0 %v1396
    %v1398 = vpop.xlane.xlu0 %1397
    %v1399 = vsub.f32 %v1312, %v1395
    %v1400 = vsub.f32 %v1390, %v1398
    %v1401 = vmul.f32 %v1399, 1.442695
    %v1402 = vpow.pop %v1401
    %v1403 = vmul.f32 %v1400, 1.442695
    %v1404 = vpow.pop %v1403
    %v1405 = vsel %vm243, %v1402, 0.0
    %1406 = vadd.xlane.f32.xlu0 %v1405
    %v1407 = vpop.xlane.xlu0 %1406
    %v1408 = vsel %vm243, %v1404, 0.0
    %1409 = vadd.xlane.f32.xlu0 %v1408
    %v1410 = vpop.xlane.xlu0 %1409
    %v1411 = vmax.f32 %v1407, 1e-09
    %v1412 = vmax.f32 %v1410, 1e-09
    %v1413 = vrcp.pop %v1411
    %v1414 = vrcp.pop %v1412
    %v1415 = vmul.f32 %v1402, %v1413
    %v1416 = vmul.f32 %v1404, %v1414
    %1417 = vrot.lane.b32.xlu0 %v218, 40
    %v1418 = vpop.permute.xlu0 %1417
    %v1421 = vsel %vm243, %v1415, 0
    %1423 = vmatprep.subr.mxu0 0.0
    %1424 = vmatpush1.msra.mxu0 %v1418
    %1425 = vmatprep.subr.mxu0 0.0
    %1426 = vmatpush1.msra.mxu0 0.0
    %1427 = vmatprep.subr.mxu0 0.0
    %1428 = vmatpush1.msra.mxu0 0.0
    %1429 = vmatprep.subr.mxu0 0.0
    %1430 = vmatpush1.msra.mxu0 0.0
    %1431 = vmatprep.subr.mxu0 0.0
    %1432 = vmatpush1.msra.mxu0 0.0
    %1433 = vmatprep.subr.mxu0 0.0
    %1434 = vmatpush1.msra.mxu0 0.0
    %1435 = vmatprep.subr.mxu0 0.0
    %1436 = vmatpush1.msra.mxu0 0.0
    %1437 = vmatprep.subr.mxu0 0.0
    %1438 = vmatpush1.msra.mxu0 0.0
    %1439 = vmatprep.subr.mxu0 0.0
    %1440 = vmatpush1.msra.mxu0 0.0
    %1441 = vmatprep.subr.mxu0 0.0
    %1442 = vmatpush1.msra.mxu0 0.0
    %1443 = vmatprep.subr.mxu0 0.0
    %1444 = vmatpush1.msra.mxu0 0.0
    %1445 = vmatprep.subr.mxu0 0.0
    %1446 = vmatpush1.msra.mxu0 0.0
    %1447 = vmatprep.subr.mxu0 0.0
    %1448 = vmatpush1.msra.mxu0 0.0
    %1449 = vmatprep.subr.mxu0 0.0
    %1450 = vmatpush1.msra.mxu0 0.0
    %1451 = vmatprep.subr.mxu0 0.0
    %1452 = vmatpush1.msra.mxu0 0.0
    %1453 = vmatprep.subr.mxu0 0.0
    %1454 = vmatpush1.msra.mxu0 0.0
    %1455 = vmatprep.subr.mxu0 0.0
    %1456 = vmatpush1.msra.mxu0 0.0
    %1457 = vmatprep.subr.mxu0 0.0
    %1458 = vmatpush1.msra.mxu0 0.0
    %1459 = vmatprep.subr.mxu0 0.0
    %1460 = vmatpush1.msra.mxu0 0.0
    %1461 = vmatprep.subr.mxu0 0.0
    %1462 = vmatpush1.msra.mxu0 0.0
    %1463 = vmatprep.subr.mxu0 0.0
    %1464 = vmatpush1.msra.mxu0 0.0
    %1465 = vmatprep.subr.mxu0 0.0
    %1466 = vmatpush1.msra.mxu0 0.0
    %1467 = vmatprep.subr.mxu0 0.0
    %1468 = vmatpush1.msra.mxu0 0.0
    %1469 = vmatprep.subr.mxu0 0.0
    %1470 = vmatpush1.msra.mxu0 0.0
    %1471 = vmatprep.subr.mxu0 0.0
    %1472 = vmatpush1.msra.mxu0 0.0
    %1473 = vmatprep.subr.mxu0 0.0
    %1474 = vmatpush1.msra.mxu0 0.0
    %1475 = vmatprep.subr.mxu0 0.0
    %1476 = vmatpush1.msra.mxu0 0.0
    %1477 = vmatprep.subr.mxu0 0.0
    %1478 = vmatpush1.msra.mxu0 0.0
    %1479 = vmatprep.subr.mxu0 0.0
    %1480 = vmatpush1.msra.mxu0 0.0
    %1481 = vmatprep.subr.mxu0 0.0
    %1482 = vmatpush1.msra.mxu0 0.0
    %1483 = vmatprep.subr.mxu0 0.0
    %1484 = vmatpush1.msra.mxu0 0.0
    %1485 = vmatprep.subr.mxu0 0.0
    %1486 = vmatpush1.msra.mxu0 0.0
    %1487 = vmatprep.mubr.f32.mxu0 0.0
    %1488 = vmatmul.mubr.f32.gmra.mrb[0].mxu0 %v1421
    %v1489 = vpop.f32.mrb[0].mxu0
    %v1490 = vadd.f32 0.0, %v1489
    %v1491 = vpop.f32.mrb[0].mxu0
    %1492 = vdwg.mxu0
    %1493 = vrot.lane.b32.xlu0 %v223, 40
    %v1494 = vpop.permute.xlu0 %1493
    %v1497 = vsel %vm243, %v1416, 0
    %1499 = vmatprep.subr.mxu0 0.0
    %1500 = vmatpush1.msra.mxu0 %v1494
    %1501 = vmatprep.subr.mxu0 0.0
    %1502 = vmatpush1.msra.mxu0 0.0
    %1503 = vmatprep.subr.mxu0 0.0
    %1504 = vmatpush1.msra.mxu0 0.0
    %1505 = vmatprep.subr.mxu0 0.0
    %1506 = vmatpush1.msra.mxu0 0.0
    %1507 = vmatprep.subr.mxu0 0.0
    %1508 = vmatpush1.msra.mxu0 0.0
    %1509 = vmatprep.subr.mxu0 0.0
    %1510 = vmatpush1.msra.mxu0 0.0
    %1511 = vmatprep.subr.mxu0 0.0
    %1512 = vmatpush1.msra.mxu0 0.0
    %1513 = vmatprep.subr.mxu0 0.0
    %1514 = vmatpush1.msra.mxu0 0.0
    %1515 = vmatprep.subr.mxu0 0.0
    %1516 = vmatpush1.msra.mxu0 0.0
    %1517 = vmatprep.subr.mxu0 0.0
    %1518 = vmatpush1.msra.mxu0 0.0
    %1519 = vmatprep.subr.mxu0 0.0
    %1520 = vmatpush1.msra.mxu0 0.0
    %1521 = vmatprep.subr.mxu0 0.0
    %1522 = vmatpush1.msra.mxu0 0.0
    %1523 = vmatprep.subr.mxu0 0.0
    %1524 = vmatpush1.msra.mxu0 0.0
    %1525 = vmatprep.subr.mxu0 0.0
    %1526 = vmatpush1.msra.mxu0 0.0
    %1527 = vmatprep.subr.mxu0 0.0
    %1528 = vmatpush1.msra.mxu0 0.0
    %1529 = vmatprep.subr.mxu0 0.0
    %1530 = vmatpush1.msra.mxu0 0.0
    %1531 = vmatprep.subr.mxu0 0.0
    %1532 = vmatpush1.msra.mxu0 0.0
    %1533 = vmatprep.subr.mxu0 0.0
    %1534 = vmatpush1.msra.mxu0 0.0
    %1535 = vmatprep.subr.mxu0 0.0
    %1536 = vmatpush1.msra.mxu0 0.0
    %1537 = vmatprep.subr.mxu0 0.0
    %1538 = vmatpush1.msra.mxu0 0.0
    %1539 = vmatprep.subr.mxu0 0.0
    %1540 = vmatpush1.msra.mxu0 0.0
    %1541 = vmatprep.subr.mxu0 0.0
    %1542 = vmatpush1.msra.mxu0 0.0
    %1543 = vmatprep.subr.mxu0 0.0
    %1544 = vmatpush1.msra.mxu0 0.0
    %1545 = vmatprep.subr.mxu0 0.0
    %1546 = vmatpush1.msra.mxu0 0.0
    %1547 = vmatprep.subr.mxu0 0.0
    %1548 = vmatpush1.msra.mxu0 0.0
    %1549 = vmatprep.subr.mxu0 0.0
    %1550 = vmatpush1.msra.mxu0 0.0
    %1551 = vmatprep.subr.mxu0 0.0
    %1552 = vmatpush1.msra.mxu0 0.0
    %1553 = vmatprep.subr.mxu0 0.0
    %1554 = vmatpush1.msra.mxu0 0.0
    %1555 = vmatprep.subr.mxu0 0.0
    %1556 = vmatpush1.msra.mxu0 0.0
    %1557 = vmatprep.subr.mxu0 0.0
    %1558 = vmatpush1.msra.mxu0 0.0
    %1559 = vmatprep.subr.mxu0 0.0
    %1560 = vmatpush1.msra.mxu0 0.0
    %1561 = vmatprep.subr.mxu0 0.0
    %1562 = vmatpush1.msra.mxu0 0.0
    %1563 = vmatprep.mubr.f32.mxu0 0.0
    %1564 = vmatmul.mubr.f32.gmra.mrb[0].mxu0 %v1497
    %v1565 = vpop.f32.mrb[0].mxu0
    %v1566 = vadd.f32 0.0, %v1565
    %v1567 = vpop.f32.mrb[0].mxu0
    %1568 = vdwg.mxu0
    %1571 = vrot.lane.b32.xlu0 %v826, 8
    %v1572 = vpop.permute.xlu0 %1571
    %1573 = vrot.lane.b32.xlu0 %v902, 8
    %v1574 = vpop.permute.xlu0 %1573
    %1579 = vrot.lane.b32.xlu0 %v1158, 16
    %v1580 = vpop.permute.xlu0 %1579
    %1581 = vrot.lane.b32.xlu0 %v1234, 16
    %v1582 = vpop.permute.xlu0 %1581
    %1587 = vrot.lane.b32.xlu0 %v1490, 24
    %v1588 = vpop.permute.xlu0 %1587
    %1589 = vrot.lane.b32.xlu0 %v1566, 24
    %v1590 = vpop.permute.xlu0 %1589
    %v1593 = vsel %vm243, %v494, %v1572
    %v1594 = vsel %vm243, %v570, %v1574
    %vm1595 = vcmask 130048
    %v1596 = vsel %vm1595, %v1593, %v1580
    %v1597 = vsel %vm1595, %v1594, %v1582
    %vm1598 = vcmask 195584
    %v1599 = vsel %vm1598, %v1596, %v1588
    %v1600 = vsel %vm1598, %v1597, %v1590
    %v1601 = vld [vmem:[%s8] sm:$0xff]
    %v1602 = vld [vmem:[%s8 + $0x8] sm:$0xff]
    %v1603 = vld [vmem:[%s8 + $0x10] sm:$0xff]
    %v1604 = vld [vmem:[%s8 + $0x18] sm:$0xff]
    %v1605 = vld [vmem:[%s9] sm:$0x1]
    %v1607 = vlaneseq
    %v1608 = vshrl.u32 %v1607, 7
    %v1609 = vsub.s32 0, %v1608
    %v1610 = vrot.slane %v1605, %v1609
    %v1613 = vsel %vm78, %v1599, 0
    %v1616 = vsel %vm78, %v1600, 0
    %1618 = vmatprep.subr.mxu0 0.0
    %1619 = vmatpush1.msra.mxu0 %v1601
    %1620 = vmatprep.subr.mxu0 0.0
    %1621 = vmatpush1.msra.mxu0 %v1602
    %1622 = vmatprep.subr.mxu0 0.0
    %1623 = vmatpush1.msra.mxu0 %v1603
    %1624 = vmatprep.subr.mxu0 0.0
    %1625 = vmatpush1.msra.mxu0 %v1604
    %1626 = vmatprep.subr.mxu0 0.0
    %1627 = vmatpush1.msra.mxu0 0.0
    %1628 = vmatprep.subr.mxu0 0.0
    %1629 = vmatpush1.msra.mxu0 0.0
    %1630 = vmatprep.subr.mxu0 0.0
    %1631 = vmatpush1.msra.mxu0 0.0
    %1632 = vmatprep.subr.mxu0 0.0
    %1633 = vmatpush1.msra.mxu0 0.0
    %1634 = vmatprep.subr.mxu0 0.0
    %1635 = vmatpush1.msra.mxu0 0.0
    %1636 = vmatprep.subr.mxu0 0.0
    %1637 = vmatpush1.msra.mxu0 0.0
    %1638 = vmatprep.subr.mxu0 0.0
    %1639 = vmatpush1.msra.mxu0 0.0
    %1640 = vmatprep.subr.mxu0 0.0
    %1641 = vmatpush1.msra.mxu0 0.0
    %1642 = vmatprep.subr.mxu0 0.0
    %1643 = vmatpush1.msra.mxu0 0.0
    %1644 = vmatprep.subr.mxu0 0.0
    %1645 = vmatpush1.msra.mxu0 0.0
    %1646 = vmatprep.subr.mxu0 0.0
    %1647 = vmatpush1.msra.mxu0 0.0
    %1648 = vmatprep.subr.mxu0 0.0
    %1649 = vmatpush1.msra.mxu0 0.0
    %1650 = vmatprep.subr.mxu0 0.0
    %1651 = vmatpush1.msra.mxu0 0.0
    %1652 = vmatprep.subr.mxu0 0.0
    %1653 = vmatpush1.msra.mxu0 0.0
    %1654 = vmatprep.subr.mxu0 0.0
    %1655 = vmatpush1.msra.mxu0 0.0
    %1656 = vmatprep.subr.mxu0 0.0
    %1657 = vmatpush1.msra.mxu0 0.0
    %1658 = vmatprep.subr.mxu0 0.0
    %1659 = vmatpush1.msra.mxu0 0.0
    %1660 = vmatprep.subr.mxu0 0.0
    %1661 = vmatpush1.msra.mxu0 0.0
    %1662 = vmatprep.subr.mxu0 0.0
    %1663 = vmatpush1.msra.mxu0 0.0
    %1664 = vmatprep.subr.mxu0 0.0
    %1665 = vmatpush1.msra.mxu0 0.0
    %1666 = vmatprep.subr.mxu0 0.0
    %1667 = vmatpush1.msra.mxu0 0.0
    %1668 = vmatprep.subr.mxu0 0.0
    %1669 = vmatpush1.msra.mxu0 0.0
    %1670 = vmatprep.subr.mxu0 0.0
    %1671 = vmatpush1.msra.mxu0 0.0
    %1672 = vmatprep.subr.mxu0 0.0
    %1673 = vmatpush1.msra.mxu0 0.0
    %1674 = vmatprep.subr.mxu0 0.0
    %1675 = vmatpush1.msra.mxu0 0.0
    %1676 = vmatprep.subr.mxu0 0.0
    %1677 = vmatpush1.msra.mxu0 0.0
    %1678 = vmatprep.subr.mxu0 0.0
    %1679 = vmatpush1.msra.mxu0 0.0
    %1680 = vmatprep.subr.mxu0 0.0
    %1681 = vmatpush1.msra.mxu0 0.0
    %1682 = vmatprep.mubr.f32.mxu0 0.0
    %1683 = vmatmul.mubr.f32.gmra.mrb[0].mxu0 %v1613
    %v1684 = vpop.f32.mrb[0].mxu0
    %v1685 = vadd.f32 %v1610, %v1684
    %v1686 = vpop.f32.mrb[0].mxu0
    %1687 = vmatprep.mubr.f32.mxu0 0.0
    %1688 = vmatmul.mubr.f32.gmra.mrb[0].mxu0 %v1616
    %v1689 = vpop.f32.mrb[0].mxu0
    %v1690 = vadd.f32 %v1610, %v1689
    %v1691 = vpop.f32.mrb[0].mxu0
    %1692 = vdwg.mxu0
    %v1693 = vadd.f32 %v132, %v1685
    %v1694 = vadd.f32 %v133, %v1690
    %v1695 = vld [vmem:[%s10] sm:$0x1]
    %v1696 = vld [vmem:[%s11] sm:$0x1]
    %v1697 = vsel %vm78, %v1693, 0.0
    %1698 = vadd.xlane.f32.xlu0 %v1697
    %v1699 = vpop.xlane.xlu0 %1698
    %v1700 = vsel %vm78, %v1694, 0.0
    %1701 = vadd.xlane.f32.xlu0 %v1700
    %v1702 = vpop.xlane.xlu0 %1701
    %v1703 = vmul.f32 %v1699, %v85
    %v1704 = vmul.f32 %v1702, %v85
    %v1705 = vsub.f32 %v1693, %v1703
    %v1706 = vsub.f32 %v1694, %v1704
    %v1707 = vmul.f32 %v1705, %v1705
    %v1708 = vmul.f32 %v1706, %v1706
    %v1709 = vsel %vm78, %v1707, 0.0
    %1710 = vadd.xlane.f32.xlu0 %v1709
    %v1711 = vpop.xlane.xlu0 %1710
    %v1712 = vsel %vm78, %v1708, 0.0
    %1713 = vadd.xlane.f32.xlu0 %v1712
    %v1714 = vpop.xlane.xlu0 %1713
    %v1715 = vmul.f32 %v1711, %v85
    %v1716 = vmul.f32 %v1714, %v85
    %v1717 = vadd.f32 %v1715, 1e-12
    %v1718 = vadd.f32 %v1716, 1e-12
    %v1719 = vrsqrt.pop %v1717
    %v1720 = vrsqrt.pop %v1718
    %v1721 = vmul.f32 %v1705, %v1719
    %v1722 = vmul.f32 %v1706, %v1720
    %v1724 = vlaneseq
    %v1725 = vshrl.u32 %v1724, 7
    %v1726 = vsub.s32 0, %v1725
    %v1727 = vrot.slane %v1695, %v1726
    %v1729 = vmul.f32 %v1721, %v1727
    %v1730 = vmul.f32 %v1722, %v1727
    %v1732 = vlaneseq
    %v1733 = vshrl.u32 %v1732, 7
    %v1734 = vsub.s32 0, %v1733
    %v1735 = vrot.slane %v1696, %v1734
    %v1737 = vadd.f32 %v1729, %v1735
    %v1738 = vadd.f32 %v1730, %v1735
    %v1739 = vld [vmem:[%s12] sm:$0xff]
    %v1740 = vld [vmem:[%s12 + $0x8] sm:$0xff]
    %v1741 = vld [vmem:[%s12 + $0x10] sm:$0xff]
    %v1742 = vld [vmem:[%s12 + $0x18] sm:$0xff]
    %v1743 = vld [vmem:[%s13] sm:$0x1]
    %v1745 = vlaneseq
    %v1746 = vshrl.u32 %v1745, 7
    %v1747 = vsub.s32 0, %v1746
    %v1748 = vrot.slane %v1743, %v1747
    %v1751 = vsel %vm78, %v1737, 0
    %v1754 = vsel %vm78, %v1738, 0
    %1756 = vmatprep.subr.mxu0 0.0
    %1757 = vmatpush1.msra.mxu0 %v1739
    %1758 = vmatprep.subr.mxu0 0.0
    %1759 = vmatpush1.msra.mxu0 %v1740
    %1760 = vmatprep.subr.mxu0 0.0
    %1761 = vmatpush1.msra.mxu0 %v1741
    %1762 = vmatprep.subr.mxu0 0.0
    %1763 = vmatpush1.msra.mxu0 %v1742
    %1764 = vmatprep.subr.mxu0 0.0
    %1765 = vmatpush1.msra.mxu0 0.0
    %1766 = vmatprep.subr.mxu0 0.0
    %1767 = vmatpush1.msra.mxu0 0.0
    %1768 = vmatprep.subr.mxu0 0.0
    %1769 = vmatpush1.msra.mxu0 0.0
    %1770 = vmatprep.subr.mxu0 0.0
    %1771 = vmatpush1.msra.mxu0 0.0
    %1772 = vmatprep.subr.mxu0 0.0
    %1773 = vmatpush1.msra.mxu0 0.0
    %1774 = vmatprep.subr.mxu0 0.0
    %1775 = vmatpush1.msra.mxu0 0.0
    %1776 = vmatprep.subr.mxu0 0.0
    %1777 = vmatpush1.msra.mxu0 0.0
    %1778 = vmatprep.subr.mxu0 0.0
    %1779 = vmatpush1.msra.mxu0 0.0
    %1780 = vmatprep.subr.mxu0 0.0
    %1781 = vmatpush1.msra.mxu0 0.0
    %1782 = vmatprep.subr.mxu0 0.0
    %1783 = vmatpush1.msra.mxu0 0.0
    %1784 = vmatprep.subr.mxu0 0.0
    %1785 = vmatpush1.msra.mxu0 0.0
    %1786 = vmatprep.subr.mxu0 0.0
    %1787 = vmatpush1.msra.mxu0 0.0
    %1788 = vmatprep.subr.mxu0 0.0
    %1789 = vmatpush1.msra.mxu0 0.0
    %1790 = vmatprep.subr.mxu0 0.0
    %1791 = vmatpush1.msra.mxu0 0.0
    %1792 = vmatprep.subr.mxu0 0.0
    %1793 = vmatpush1.msra.mxu0 0.0
    %1794 = vmatprep.subr.mxu0 0.0
    %1795 = vmatpush1.msra.mxu0 0.0
    %1796 = vmatprep.subr.mxu0 0.0
    %1797 = vmatpush1.msra.mxu0 0.0
    %1798 = vmatprep.subr.mxu0 0.0
    %1799 = vmatpush1.msra.mxu0 0.0
    %1800 = vmatprep.subr.mxu0 0.0
    %1801 = vmatpush1.msra.mxu0 0.0
    %1802 = vmatprep.subr.mxu0 0.0
    %1803 = vmatpush1.msra.mxu0 0.0
    %1804 = vmatprep.subr.mxu0 0.0
    %1805 = vmatpush1.msra.mxu0 0.0
    %1806 = vmatprep.subr.mxu0 0.0
    %1807 = vmatpush1.msra.mxu0 0.0
    %1808 = vmatprep.subr.mxu0 0.0
    %1809 = vmatpush1.msra.mxu0 0.0
    %1810 = vmatprep.subr.mxu0 0.0
    %1811 = vmatpush1.msra.mxu0 0.0
    %1812 = vmatprep.subr.mxu0 0.0
    %1813 = vmatpush1.msra.mxu0 0.0
    %1814 = vmatprep.subr.mxu0 0.0
    %1815 = vmatpush1.msra.mxu0 0.0
    %1816 = vmatprep.subr.mxu0 0.0
    %1817 = vmatpush1.msra.mxu0 0.0
    %1818 = vmatprep.subr.mxu0 0.0
    %1819 = vmatpush1.msra.mxu0 0.0
    %1820 = vmatprep.mubr.f32.mxu0 0.0
    %1821 = vmatmul.mubr.f32.gmra.mrb[0].mxu0 %v1751
    %v1822 = vpop.f32.mrb[0].mxu0
    %v1823 = vadd.f32 %v1748, %v1822
    %v1824 = vpop.f32.mrb[0].mxu0
    %1825 = vmatprep.mubr.f32.mxu0 0.0
    %1826 = vmatmul.mubr.f32.gmra.mrb[0].mxu0 %v1754
    %v1827 = vpop.f32.mrb[0].mxu0
    %v1828 = vadd.f32 %v1748, %v1827
    %v1829 = vpop.f32.mrb[0].mxu0
    %1830 = vdwg.mxu0
    %v1831 = vmul.f32 %v1823, %v1823
    %v1832 = vmul.f32 %v1828, %v1828
    %v1833 = vmul.f32 %v1823, %v1831
    %v1834 = vmul.f32 %v1828, %v1832
    %v1835 = vmul.f32 %v1833, 0.044715
    %v1836 = vmul.f32 %v1834, 0.044715
    %v1837 = vadd.f32 %v1823, %v1835
    %v1838 = vadd.f32 %v1828, %v1836
    %v1839 = vmul.f32 %v1837, 0.7978846
    %v1840 = vmul.f32 %v1838, 0.7978846
    %v1841 = vtanh.pop %v1839
    %v1842 = vtanh.pop %v1840
    %v1843 = vadd.f32 %v1841, 1.0
    %v1844 = vadd.f32 %v1842, 1.0
    %v1845 = vmul.f32 %v1843, 0.5
    %v1846 = vmul.f32 %v1844, 0.5
    %v1847 = vmul.f32 %v1823, %v1845
    %v1848 = vmul.f32 %v1828, %v1846
    %v1849 = vld [vmem:[%s14] sm:$0xff]
    %v1850 = vld [vmem:[%s14 + $0x8] sm:$0xff]
    %v1851 = vld [vmem:[%s14 + $0x10] sm:$0xff]
    %v1852 = vld [vmem:[%s14 + $0x18] sm:$0xff]
    %v1853 = vld [vmem:[%s14 + $0x20] sm:$0xff]
    %v1854 = vld [vmem:[%s14 + $0x28] sm:$0xff]
    %v1855 = vld [vmem:[%s14 + $0x30] sm:$0xff]
    %v1856 = vld [vmem:[%s14 + $0x38] sm:$0xff]
    %v1857 = vld [vmem:[%s14 + $0x40] sm:$0xff]
    %v1858 = vld [vmem:[%s14 + $0x48] sm:$0xff]
    %v1859 = vld [vmem:[%s14 + $0x50] sm:$0xff]
    %v1860 = vld [vmem:[%s14 + $0x58] sm:$0xff]
    %v1861 = vld [vmem:[%s14 + $0x60] sm:$0xff]
    %v1862 = vld [vmem:[%s14 + $0x68] sm:$0xff]
    %v1863 = vld [vmem:[%s14 + $0x70] sm:$0xff]
    %v1864 = vld [vmem:[%s14 + $0x78] sm:$0xff]
    %v1865 = vld [vmem:[%s15] sm:$0x1]
    %v1867 = vlaneseq
    %v1868 = vshrl.u32 %v1867, 7
    %v1869 = vsub.s32 0, %v1868
    %v1870 = vrot.slane %v1865, %v1869
    %1872 = vmatprep.subr.mxu0 0.0
    %1873 = vmatpush1.msra.mxu0 %v1849
    %1874 = vmatprep.subr.mxu0 0.0
    %1875 = vmatpush1.msra.mxu0 %v1850
    %1876 = vmatprep.subr.mxu0 0.0
    %1877 = vmatpush1.msra.mxu0 %v1851
    %1878 = vmatprep.subr.mxu0 0.0
    %1879 = vmatpush1.msra.mxu0 %v1852
    %1880 = vmatprep.subr.mxu0 0.0
    %1881 = vmatpush1.msra.mxu0 %v1853
    %1882 = vmatprep.subr.mxu0 0.0
    %1883 = vmatpush1.msra.mxu0 %v1854
    %1884 = vmatprep.subr.mxu0 0.0
    %1885 = vmatpush1.msra.mxu0 %v1855
    %1886 = vmatprep.subr.mxu0 0.0
    %1887 = vmatpush1.msra.mxu0 %v1856
    %1888 = vmatprep.subr.mxu0 0.0
    %1889 = vmatpush1.msra.mxu0 %v1857
    %1890 = vmatprep.subr.mxu0 0.0
    %1891 = vmatpush1.msra.mxu0 %v1858
    %1892 = vmatprep.subr.mxu0 0.0
    %1893 = vmatpush1.msra.mxu0 %v1859
    %1894 = vmatprep.subr.mxu0 0.0
    %1895 = vmatpush1.msra.mxu0 %v1860
    %1896 = vmatprep.subr.mxu0 0.0
    %1897 = vmatpush1.msra.mxu0 %v1861
    %1898 = vmatprep.subr.mxu0 0.0
    %1899 = vmatpush1.msra.mxu0 %v1862
    %1900 = vmatprep.subr.mxu0 0.0
    %1901 = vmatpush1.msra.mxu0 %v1863
    %1902 = vmatprep.subr.mxu0 0.0
    %1903 = vmatpush1.msra.mxu0 %v1864
    %1904 = vmatprep.subr.mxu0 0.0
    %1905 = vmatpush1.msra.mxu0 0.0
    %1906 = vmatprep.subr.mxu0 0.0
    %1907 = vmatpush1.msra.mxu0 0.0
    %1908 = vmatprep.subr.mxu0 0.0
    %1909 = vmatpush1.msra.mxu0 0.0
    %1910 = vmatprep.subr.mxu0 0.0
    %1911 = vmatpush1.msra.mxu0 0.0
    %1912 = vmatprep.subr.mxu0 0.0
    %1913 = vmatpush1.msra.mxu0 0.0
    %1914 = vmatprep.subr.mxu0 0.0
    %1915 = vmatpush1.msra.mxu0 0.0
    %1916 = vmatprep.subr.mxu0 0.0
    %1917 = vmatpush1.msra.mxu0 0.0
    %1918 = vmatprep.subr.mxu0 0.0
    %1919 = vmatpush1.msra.mxu0 0.0
    %1920 = vmatprep.subr.mxu0 0.0
    %1921 = vmatpush1.msra.mxu0 0.0
    %1922 = vmatprep.subr.mxu0 0.0
    %1923 = vmatpush1.msra.mxu0 0.0
    %1924 = vmatprep.subr.mxu0 0.0
    %1925 = vmatpush1.msra.mxu0 0.0
    %1926 = vmatprep.subr.mxu0 0.0
    %1927 = vmatpush1.msra.mxu0 0.0
    %1928 = vmatprep.subr.mxu0 0.0
    %1929 = vmatpush1.msra.mxu0 0.0
    %1930 = vmatprep.subr.mxu0 0.0
    %1931 = vmatpush1.msra.mxu0 0.0
    %1932 = vmatprep.subr.mxu0 0.0
    %1933 = vmatpush1.msra.mxu0 0.0
    %1934 = vmatprep.subr.mxu0 0.0
    %1935 = vmatpush1.msra.mxu0 0.0
    %1936 = vmatprep.mubr.f32.mxu0 0.0
    %1937 = vmatmul.mubr.f32.gmra.mrb[0].mxu0 %v1847
    %v1938 = vpop.f32.mrb[0].mxu0
    %v1939 = vadd.f32 %v1870, %v1938
    %v1940 = vpop.f32.mrb[0].mxu0
    %1941 = vmatprep.mubr.f32.mxu0 0.0
    %1942 = vmatmul.mubr.f32.gmra.mrb[0].mxu0 %v1848
    %v1943 = vpop.f32.mrb[0].mxu0
    %v1944 = vadd.f32 %v1870, %v1943
    %v1945 = vpop.f32.mrb[0].mxu0
    %1946 = vdwg.mxu0
    %v1947 = vadd.f32 %v1737, %v1939
    %v1948 = vadd.f32 %v1738, %v1944
    %v1949 = vld [vmem:[%s16] sm:$0x1]
    %v1950 = vld [vmem:[%s17] sm:$0x1]
    %v1951 = vsel %vm78, %v1947, 0.0
    %1952 = vadd.xlane.f32.xlu0 %v1951
    %v1953 = vpop.xlane.xlu0 %1952
    %v1954 = vsel %vm78, %v1948, 0.0
    %1955 = vadd.xlane.f32.xlu0 %v1954
    %v1956 = vpop.xlane.xlu0 %1955
    %v1957 = vmul.f32 %v1953, %v85
    %v1958 = vmul.f32 %v1956, %v85
    %v1959 = vsub.f32 %v1947, %v1957
    %v1960 = vsub.f32 %v1948, %v1958
    %v1961 = vmul.f32 %v1959, %v1959
    %v1962 = vmul.f32 %v1960, %v1960
    %v1963 = vsel %vm78, %v1961, 0.0
    %1964 = vadd.xlane.f32.xlu0 %v1963
    %v1965 = vpop.xlane.xlu0 %1964
    %v1966 = vsel %vm78, %v1962, 0.0
    %1967 = vadd.xlane.f32.xlu0 %v1966
    %v1968 = vpop.xlane.xlu0 %1967
    %v1969 = vmul.f32 %v1965, %v85
    %v1970 = vmul.f32 %v1968, %v85
    %v1971 = vadd.f32 %v1969, 1e-12
    %v1972 = vadd.f32 %v1970, 1e-12
    %v1973 = vrsqrt.pop %v1971
    %v1974 = vrsqrt.pop %v1972
    %v1975 = vmul.f32 %v1959, %v1973
    %v1976 = vmul.f32 %v1960, %v1974
    %v1978 = vlaneseq
    %v1979 = vshrl.u32 %v1978, 7
    %v1980 = vsub.s32 0, %v1979
    %v1981 = vrot.slane %v1949, %v1980
    %v1983 = vmul.f32 %v1975, %v1981
    %v1984 = vmul.f32 %v1976, %v1981
    %v1986 = vlaneseq
    %v1987 = vshrl.u32 %v1986, 7
    %v1988 = vsub.s32 0, %v1987
    %v1989 = vrot.slane %v1950, %v1988
    %v1991 = vadd.f32 %v1983, %v1989
    %v1992 = vadd.f32 %v1984, %v1989
    %v1993 = vmul.f32 %v1991, %v125
    %v1994 = vmul.f32 %v1992, %v130
    %s1995 = scalar_lea.vmem %s6, 32
    %v1996 = vld [vmem:[%s1995] sm:$0xff]
    %v1997 = vld [vmem:[%s1995 + $0x8] sm:$0xff]
    %v1998 = vld [vmem:[%s1995 + $0x10] sm:$0xff]
    %v1999 = vld [vmem:[%s1995 + $0x18] sm:$0xff]
    %s2000 = scalar_lea.vmem %s7, 1
    %v2001 = vld [vmem:[%s2000] sm:$0x1]
    %v2003 = vlaneseq
    %v2004 = vshrl.u32 %v2003, 7
    %v2005 = vsub.s32 0, %v2004
    %v2006 = vrot.slane %v2001, %v2005
    %v2009 = vsel %vm78, %v1993, 0
    %v2012 = vsel %vm78, %v1994, 0
    %2014 = vmatprep.subr.mxu0 0.0
    %2015 = vmatpush1.msra.mxu0 %v1996
    %2016 = vmatprep.subr.mxu0 0.0
    %2017 = vmatpush1.msra.mxu0 %v1997
    %2018 = vmatprep.subr.mxu0 0.0
    %2019 = vmatpush1.msra.mxu0 %v1998
    %2020 = vmatprep.subr.mxu0 0.0
    %2021 = vmatpush1.msra.mxu0 %v1999
    %2022 = vmatprep.subr.mxu0 0.0
    %2023 = vmatpush1.msra.mxu0 0.0
    %2024 = vmatprep.subr.mxu0 0.0
    %2025 = vmatpush1.msra.mxu0 0.0
    %2026 = vmatprep.subr.mxu0 0.0
    %2027 = vmatpush1.msra.mxu0 0.0
    %2028 = vmatprep.subr.mxu0 0.0
    %2029 = vmatpush1.msra.mxu0 0.0
    %2030 = vmatprep.subr.mxu0 0.0
    %2031 = vmatpush1.msra.mxu0 0.0
    %2032 = vmatprep.subr.mxu0 0.0
    %2033 = vmatpush1.msra.mxu0 0.0
    %2034 = vmatprep.subr.mxu0 0.0
    %2035 = vmatpush1.msra.mxu0 0.0
    %2036 = vmatprep.subr.mxu0 0.0
    %2037 = vmatpush1.msra.mxu0 0.0
    %2038 = vmatprep.subr.mxu0 0.0
    %2039 = vmatpush1.msra.mxu0 0.0
    %2040 = vmatprep.subr.mxu0 0.0
    %2041 = vmatpush1.msra.mxu0 0.0
    %2042 = vmatprep.subr.mxu0 0.0
    %2043 = vmatpush1.msra.mxu0 0.0
    %2044 = vmatprep.subr.mxu0 0.0
    %2045 = vmatpush1.msra.mxu0 0.0
    %2046 = vmatprep.subr.mxu0 0.0
    %2047 = vmatpush1.msra.mxu0 0.0
    %2048 = vmatprep.subr.mxu0 0.0
    %2049 = vmatpush1.msra.mxu0 0.0
    %2050 = vmatprep.subr.mxu0 0.0
    %2051 = vmatpush1.msra.mxu0 0.0
    %2052 = vmatprep.subr.mxu0 0.0
    %2053 = vmatpush1.msra.mxu0 0.0
    %2054 = vmatprep.subr.mxu0 0.0
    %2055 = vmatpush1.msra.mxu0 0.0
    %2056 = vmatprep.subr.mxu0 0.0
    %2057 = vmatpush1.msra.mxu0 0.0
    %2058 = vmatprep.subr.mxu0 0.0
    %2059 = vmatpush1.msra.mxu0 0.0
    %2060 = vmatprep.subr.mxu0 0.0
    %2061 = vmatpush1.msra.mxu0 0.0
    %2062 = vmatprep.subr.mxu0 0.0
    %2063 = vmatpush1.msra.mxu0 0.0
    %2064 = vmatprep.subr.mxu0 0.0
    %2065 = vmatpush1.msra.mxu0 0.0
    %2066 = vmatprep.subr.mxu0 0.0
    %2067 = vmatpush1.msra.mxu0 0.0
    %2068 = vmatprep.subr.mxu0 0.0
    %2069 = vmatpush1.msra.mxu0 0.0
    %2070 = vmatprep.subr.mxu0 0.0
    %2071 = vmatpush1.msra.mxu0 0.0
    %2072 = vmatprep.subr.mxu0 0.0
    %2073 = vmatpush1.msra.mxu0 0.0
    %2074 = vmatprep.subr.mxu0 0.0
    %2075 = vmatpush1.msra.mxu0 0.0
    %2076 = vmatprep.subr.mxu0 0.0
    %2077 = vmatpush1.msra.mxu0 0.0
    %2078 = vmatprep.mubr.f32.mxu0 0.0
    %2079 = vmatmul.mubr.f32.gmra.mrb[0].mxu0 %v2009
    %v2080 = vpop.f32.mrb[0].mxu0
    %v2081 = vadd.f32 %v2006, %v2080
    %v2082 = vpop.f32.mrb[0].mxu0
    %2083 = vmatprep.mubr.f32.mxu0 0.0
    %2084 = vmatmul.mubr.f32.gmra.mrb[0].mxu0 %v2012
    %v2085 = vpop.f32.mrb[0].mxu0
    %v2086 = vadd.f32 %v2006, %v2085
    %v2087 = vpop.f32.mrb[0].mxu0
    %2088 = vdwg.mxu0
    %v2089 = vmul.f32 %v2081, 0.35355338
    %v2090 = vmul.f32 %v2086, 0.35355338
    %2092 = vrot.lane.b32.xlu0 %v2081, 96
    %v2093 = vpop.permute.xlu0 %2092
    %v2095 = vsel %vm243, %v2089, 0
    %v2097 = vsel %vm243, %v2093, 0
    %2099 = vmatprep.subr.mxu0 0.0
    %2100 = vmatpush1.xpose.msra.mxu0 %v2097
    %2101 = vmatprep.subr.mxu0 0.0
    %2102 = vmatpush1.xpose.msra.mxu0 0.0
    %2103 = vmatprep.subr.mxu0 0.0
    %2104 = vmatpush1.xpose.msra.mxu0 0.0
    %2105 = vmatprep.subr.mxu0 0.0
    %2106 = vmatpush1.xpose.msra.mxu0 0.0
    %2107 = vmatprep.subr.mxu0 0.0
    %2108 = vmatpush1.xpose.msra.mxu0 0.0
    %2109 = vmatprep.subr.mxu0 0.0
    %2110 = vmatpush1.xpose.msra.mxu0 0.0
    %2111 = vmatprep.subr.mxu0 0.0
    %2112 = vmatpush1.xpose.msra.mxu0 0.0
    %2113 = vmatprep.subr.mxu0 0.0
    %2114 = vmatpush1.xpose.msra.mxu0 0.0
    %2115 = vmatprep.subr.mxu0 0.0
    %2116 = vmatpush1.xpose.msra.mxu0 0.0
    %2117 = vmatprep.subr.mxu0 0.0
    %2118 = vmatpush1.xpose.msra.mxu0 0.0
    %2119 = vmatprep.subr.mxu0 0.0
    %2120 = vmatpush1.xpose.msra.mxu0 0.0
    %2121 = vmatprep.subr.mxu0 0.0
    %2122 = vmatpush1.xpose.msra.mxu0 0.0
    %2123 = vmatprep.subr.mxu0 0.0
    %2124 = vmatpush1.xpose.msra.mxu0 0.0
    %2125 = vmatprep.subr.mxu0 0.0
    %2126 = vmatpush1.xpose.msra.mxu0 0.0
    %2127 = vmatprep.subr.mxu0 0.0
    %2128 = vmatpush1.xpose.msra.mxu0 0.0
    %2129 = vmatprep.subr.mxu0 0.0
    %2130 = vmatpush1.xpose.msra.mxu0 0.0
    %2131 = vmatprep.subr.mxu0 0.0
    %2132 = vmatpush1.xpose.msra.mxu0 0.0
    %2133 = vmatprep.subr.mxu0 0.0
    %2134 = vmatpush1.xpose.msra.mxu0 0.0
    %2135 = vmatprep.subr.mxu0 0.0
    %2136 = vmatpush1.xpose.msra.mxu0 0.0
    %2137 = vmatprep.subr.mxu0 0.0
    %2138 = vmatpush1.xpose.msra.mxu0 0.0
    %2139 = vmatprep.subr.mxu0 0.0
    %2140 = vmatpush1.xpose.msra.mxu0 0.0
    %2141 = vmatprep.subr.mxu0 0.0
    %2142 = vmatpush1.xpose.msra.mxu0 0.0
    %2143 = vmatprep.subr.mxu0 0.0
    %2144 = vmatpush1.xpose.msra.mxu0 0.0
    %2145 = vmatprep.subr.mxu0 0.0
    %2146 = vmatpush1.xpose.msra.mxu0 0.0
    %2147 = vmatprep.subr.mxu0 0.0
    %2148 = vmatpush1.xpose.msra.mxu0 0.0
    %2149 = vmatprep.subr.mxu0 0.0
    %2150 = vmatpush1.xpose.msra.mxu0 0.0
    %2151 = vmatprep.subr.mxu0 0.0
    %2152 = vmatpush1.xpose.msra.mxu0 0.0
    %2153 = vmatprep.subr.mxu0 0.0
    %2154 = vmatpush1.xpose.msra.mxu0 0.0
    %2155 = vmatprep.subr.mxu0 0.0
    %2156 = vmatpush1.xpose.msra.mxu0 0.0
    %2157 = vmatprep.subr.mxu0 0.0
    %2158 = vmatpush1.xpose.msra.mxu0 0.0
    %2159 = vmatprep.subr.mxu0 0.0
    %2160 = vmatpush1.xpose.msra.mxu0 0.0
    %2161 = vmatprep.subr.mxu0 0.0
    %2162 = vmatpush1.xpose.msra.mxu0 0.0
    %2163 = vmatprep.mubr.f32.mxu0 0.0
    %2164 = vmatmul.mubr.f32.gmra.mrb[0].mxu0 %v2095
    %v2165 = vpop.f32.mrb[0].mxu0
    %v2166 = vadd.f32 %v233, %v2165
    %v2167 = vpop.f32.mrb[0].mxu0
    %2168 = vdwg.mxu0
    %2170 = vrot.lane.b32.xlu0 %v2086, 96
    %v2171 = vpop.permute.xlu0 %2170
    %v2173 = vsel %vm243, %v2090, 0
    %v2175 = vsel %vm243, %v2171, 0
    %2177 = vmatprep.subr.mxu0 0.0
    %2178 = vmatpush1.xpose.msra.mxu0 %v2175
    %2179 = vmatprep.subr.mxu0 0.0
    %2180 = vmatpush1.xpose.msra.mxu0 0.0
    %2181 = vmatprep.subr.mxu0 0.0
    %2182 = vmatpush1.xpose.msra.mxu0 0.0
    %2183 = vmatprep.subr.mxu0 0.0
    %2184 = vmatpush1.xpose.msra.mxu0 0.0
    %2185 = vmatprep.subr.mxu0 0.0
    %2186 = vmatpush1.xpose.msra.mxu0 0.0
    %2187 = vmatprep.subr.mxu0 0.0
    %2188 = vmatpush1.xpose.msra.mxu0 0.0
    %2189 = vmatprep.subr.mxu0 0.0
    %2190 = vmatpush1.xpose.msra.mxu0 0.0
    %2191 = vmatprep.subr.mxu0 0.0
    %2192 = vmatpush1.xpose.msra.mxu0 0.0
    %2193 = vmatprep.subr.mxu0 0.0
    %2194 = vmatpush1.xpose.msra.mxu0 0.0
    %2195 = vmatprep.subr.mxu0 0.0
    %2196 = vmatpush1.xpose.msra.mxu0 0.0
    %2197 = vmatprep.subr.mxu0 0.0
    %2198 = vmatpush1.xpose.msra.mxu0 0.0
    %2199 = vmatprep.subr.mxu0 0.0
    %2200 = vmatpush1.xpose.msra.mxu0 0.0
    %2201 = vmatprep.subr.mxu0 0.0
    %2202 = vmatpush1.xpose.msra.mxu0 0.0
    %2203 = vmatprep.subr.mxu0 0.0
    %2204 = vmatpush1.xpose.msra.mxu0 0.0
    %2205 = vmatprep.subr.mxu0 0.0
    %2206 = vmatpush1.xpose.msra.mxu0 0.0
    %2207 = vmatprep.subr.mxu0 0.0
    %2208 = vmatpush1.xpose.msra.mxu0 0.0
    %2209 = vmatprep.subr.mxu0 0.0
    %2210 = vmatpush1.xpose.msra.mxu0 0.0
    %2211 = vmatprep.subr.mxu0 0.0
    %2212 = vmatpush1.xpose.msra.mxu0 0.0
    %2213 = vmatprep.subr.mxu0 0.0
    %2214 = vmatpush1.xpose.msra.mxu0 0.0
    %2215 = vmatprep.subr.mxu0 0.0
    %2216 = vmatpush1.xpose.msra.mxu0 0.0
    %2217 = vmatprep.subr.mxu0 0.0
    %2218 = vmatpush1.xpose.msra.mxu0 0.0
    %2219 = vmatprep.subr.mxu0 0.0
    %2220 = vmatpush1.xpose.msra.mxu0 0.0
    %2221 = vmatprep.subr.mxu0 0.0
    %2222 = vmatpush1.xpose.msra.mxu0 0.0
    %2223 = vmatprep.subr.mxu0 0.0
    %2224 = vmatpush1.xpose.msra.mxu0 0.0
    %2225 = vmatprep.subr.mxu0 0.0
    %2226 = vmatpush1.xpose.msra.mxu0 0.0
    %2227 = vmatprep.subr.mxu0 0.0
    %2228 = vmatpush1.xpose.msra.mxu0 0.0
    %2229 = vmatprep.subr.mxu0 0.0
    %2230 = vmatpush1.xpose.msra.mxu0 0.0
    %2231 = vmatprep.subr.mxu0 0.0
    %2232 = vmatpush1.xpose.msra.mxu0 0.0
    %2233 = vmatprep.subr.mxu0 0.0
    %2234 = vmatpush1.xpose.msra.mxu0 0.0
    %2235 = vmatprep.subr.mxu0 0.0
    %2236 = vmatpush1.xpose.msra.mxu0 0.0
    %2237 = vmatprep.subr.mxu0 0.0
    %2238 = vmatpush1.xpose.msra.mxu0 0.0
    %2239 = vmatprep.subr.mxu0 0.0
    %2240 = vmatpush1.xpose.msra.mxu0 0.0
    %2241 = vmatprep.mubr.f32.mxu0 0.0
    %2242 = vmatmul.mubr.f32.gmra.mrb[0].mxu0 %v2173
    %v2243 = vpop.f32.mrb[0].mxu0
    %v2244 = vadd.f32 %v237, %v2243
    %v2245 = vpop.f32.mrb[0].mxu0
    %2246 = vdwg.mxu0
    %v2247 = vsel %vm243, %v2166, -inf
    %2248 = vmax.xlane.f32.xlu0 %v2247
    %v2249 = vpop.xlane.xlu0 %2248
    %v2250 = vsel %vm243, %v2244, -inf
    %2251 = vmax.xlane.f32.xlu0 %v2250
    %v2252 = vpop.xlane.xlu0 %2251
    %v2253 = vsub.f32 %v2166, %v2249
    %v2254 = vsub.f32 %v2244, %v2252
    %v2255 = vmul.f32 %v2253, 1.442695
    %v2256 = vpow.pop %v2255
    %v2257 = vmul.f32 %v2254, 1.442695
    %v2258 = vpow.pop %v2257
    %v2259 = vsel %vm243, %v2256, 0.0
    %2260 = vadd.xlane.f32.xlu0 %v2259
    %v2261 = vpop.xlane.xlu0 %2260
    %v2262 = vsel %vm243, %v2258, 0.0
    %2263 = vadd.xlane.f32.xlu0 %v2262
    %v2264 = vpop.xlane.xlu0 %2263
    %v2265 = vmax.f32 %v2261, 1e-09
    %v2266 = vmax.f32 %v2264, 1e-09
    %v2267 = vrcp.pop %v2265
    %v2268 = vrcp.pop %v2266
    %v2269 = vmul.f32 %v2256, %v2267
    %v2270 = vmul.f32 %v2258, %v2268
    %2271 = vrot.lane.b32.xlu0 %v2081, 64
    %v2272 = vpop.permute.xlu0 %2271
    %v2275 = vsel %vm243, %v2269, 0
    %2277 = vmatprep.subr.mxu0 0.0
    %2278 = vmatpush1.msra.mxu0 %v2272
    %2279 = vmatprep.subr.mxu0 0.0
    %2280 = vmatpush1.msra.mxu0 0.0
    %2281 = vmatprep.subr.mxu0 0.0
    %2282 = vmatpush1.msra.mxu0 0.0
    %2283 = vmatprep.subr.mxu0 0.0
    %2284 = vmatpush1.msra.mxu0 0.0
    %2285 = vmatprep.subr.mxu0 0.0
    %2286 = vmatpush1.msra.mxu0 0.0
    %2287 = vmatprep.subr.mxu0 0.0
    %2288 = vmatpush1.msra.mxu0 0.0
    %2289 = vmatprep.subr.mxu0 0.0
    %2290 = vmatpush1.msra.mxu0 0.0
    %2291 = vmatprep.subr.mxu0 0.0
    %2292 = vmatpush1.msra.mxu0 0.0
    %2293 = vmatprep.subr.mxu0 0.0
    %2294 = vmatpush1.msra.mxu0 0.0
    %2295 = vmatprep.subr.mxu0 0.0
    %2296 = vmatpush1.msra.mxu0 0.0
    %2297 = vmatprep.subr.mxu0 0.0
    %2298 = vmatpush1.msra.mxu0 0.0
    %2299 = vmatprep.subr.mxu0 0.0
    %2300 = vmatpush1.msra.mxu0 0.0
    %2301 = vmatprep.subr.mxu0 0.0
    %2302 = vmatpush1.msra.mxu0 0.0
    %2303 = vmatprep.subr.mxu0 0.0
    %2304 = vmatpush1.msra.mxu0 0.0
    %2305 = vmatprep.subr.mxu0 0.0
    %2306 = vmatpush1.msra.mxu0 0.0
    %2307 = vmatprep.subr.mxu0 0.0
    %2308 = vmatpush1.msra.mxu0 0.0
    %2309 = vmatprep.subr.mxu0 0.0
    %2310 = vmatpush1.msra.mxu0 0.0
    %2311 = vmatprep.subr.mxu0 0.0
    %2312 = vmatpush1.msra.mxu0 0.0
    %2313 = vmatprep.subr.mxu0 0.0
    %2314 = vmatpush1.msra.mxu0 0.0
    %2315 = vmatprep.subr.mxu0 0.0
    %2316 = vmatpush1.msra.mxu0 0.0
    %2317 = vmatprep.subr.mxu0 0.0
    %2318 = vmatpush1.msra.mxu0 0.0
    %2319 = vmatprep.subr.mxu0 0.0
    %2320 = vmatpush1.msra.mxu0 0.0
    %2321 = vmatprep.subr.mxu0 0.0
    %2322 = vmatpush1.msra.mxu0 0.0
    %2323 = vmatprep.subr.mxu0 0.0
    %2324 = vmatpush1.msra.mxu0 0.0
    %2325 = vmatprep.subr.mxu0 0.0
    %2326 = vmatpush1.msra.mxu0 0.0
    %2327 = vmatprep.subr.mxu0 0.0
    %2328 = vmatpush1.msra.mxu0 0.0
    %2329 = vmatprep.subr.mxu0 0.0
    %2330 = vmatpush1.msra.mxu0 0.0
    %2331 = vmatprep.subr.mxu0 0.0
    %2332 = vmatpush1.msra.mxu0 0.0
    %2333 = vmatprep.subr.mxu0 0.0
    %2334 = vmatpush1.msra.mxu0 0.0
    %2335 = vmatprep.subr.mxu0 0.0
    %2336 = vmatpush1.msra.mxu0 0.0
    %2337 = vmatprep.subr.mxu0 0.0
    %2338 = vmatpush1.msra.mxu0 0.0
    %2339 = vmatprep.subr.mxu0 0.0
    %2340 = vmatpush1.msra.mxu0 0.0
    %2341 = vmatprep.mubr.f32.mxu0 0.0
    %2342 = vmatmul.mubr.f32.gmra.mrb[0].mxu0 %v2275
    %v2343 = vpop.f32.mrb[0].mxu0
    %v2344 = vadd.f32 0.0, %v2343
    %v2345 = vpop.f32.mrb[0].mxu0
    %2346 = vdwg.mxu0
    %2347 = vrot.lane.b32.xlu0 %v2086, 64
    %v2348 = vpop.permute.xlu0 %2347
    %v2351 = vsel %vm243, %v2270, 0
    %2353 = vmatprep.subr.mxu0 0.0
    %2354 = vmatpush1.msra.mxu0 %v2348
    %2355 = vmatprep.subr.mxu0 0.0
    %2356 = vmatpush1.msra.mxu0 0.0
    %2357 = vmatprep.subr.mxu0 0.0
    %2358 = vmatpush1.msra.mxu0 0.0
    %2359 = vmatprep.subr.mxu0 0.0
    %2360 = vmatpush1.msra.mxu0 0.0
    %2361 = vmatprep.subr.mxu0 0.0
    %2362 = vmatpush1.msra.mxu0 0.0
    %2363 = vmatprep.subr.mxu0 0.0
    %2364 = vmatpush1.msra.mxu0 0.0
    %2365 = vmatprep.subr.mxu0 0.0
    %2366 = vmatpush1.msra.mxu0 0.0
    %2367 = vmatprep.subr.mxu0 0.0
    %2368 = vmatpush1.msra.mxu0 0.0
    %2369 = vmatprep.subr.mxu0 0.0
    %2370 = vmatpush1.msra.mxu0 0.0
    %2371 = vmatprep.subr.mxu0 0.0
    %2372 = vmatpush1.msra.mxu0 0.0
    %2373 = vmatprep.subr.mxu0 0.0
    %2374 = vmatpush1.msra.mxu0 0.0
    %2375 = vmatprep.subr.mxu0 0.0
    %2376 = vmatpush1.msra.mxu0 0.0
    %2377 = vmatprep.subr.mxu0 0.0
    %2378 = vmatpush1.msra.mxu0 0.0
    %2379 = vmatprep.subr.mxu0 0.0
    %2380 = vmatpush1.msra.mxu0 0.0
    %2381 = vmatprep.subr.mxu0 0.0
    %2382 = vmatpush1.msra.mxu0 0.0
    %2383 = vmatprep.subr.mxu0 0.0
    %2384 = vmatpush1.msra.mxu0 0.0
    %2385 = vmatprep.subr.mxu0 0.0
    %2386 = vmatpush1.msra.mxu0 0.0
    %2387 = vmatprep.subr.mxu0 0.0
    %2388 = vmatpush1.msra.mxu0 0.0
    %2389 = vmatprep.subr.mxu0 0.0
    %2390 = vmatpush1.msra.mxu0 0.0
    %2391 = vmatprep.subr.mxu0 0.0
    %2392 = vmatpush1.msra.mxu0 0.0
    %2393 = vmatprep.subr.mxu0 0.0
    %2394 = vmatpush1.msra.mxu0 0.0
    %2395 = vmatprep.subr.mxu0 0.0
    %2396 = vmatpush1.msra.mxu0 0.0
    %2397 = vmatprep.subr.mxu0 0.0
    %2398 = vmatpush1.msra.mxu0 0.0
    %2399 = vmatprep.subr.mxu0 0.0
    %2400 = vmatpush1.msra.mxu0 0.0
    %2401 = vmatprep.subr.mxu0 0.0
    %2402 = vmatpush1.msra.mxu0 0.0
    %2403 = vmatprep.subr.mxu0 0.0
    %2404 = vmatpush1.msra.mxu0 0.0
    %2405 = vmatprep.subr.mxu0 0.0
    %2406 = vmatpush1.msra.mxu0 0.0
    %2407 = vmatprep.subr.mxu0 0.0
    %2408 = vmatpush1.msra.mxu0 0.0
    %2409 = vmatprep.subr.mxu0 0.0
    %2410 = vmatpush1.msra.mxu0 0.0
    %2411 = vmatprep.subr.mxu0 0.0
    %2412 = vmatpush1.msra.mxu0 0.0
    %2413 = vmatprep.subr.mxu0 0.0
    %2414 = vmatpush1.msra.mxu0 0.0
    %2415 = vmatprep.subr.mxu0 0.0
    %2416 = vmatpush1.msra.mxu0 0.0
    %2417 = vmatprep.mubr.f32.mxu0 0.0
    %2418 = vmatmul.mubr.f32.gmra.mrb[0].mxu0 %v2351
    %v2419 = vpop.f32.mrb[0].mxu0
    %v2420 = vadd.f32 0.0, %v2419
    %v2421 = vpop.f32.mrb[0].mxu0
    %2422 = vdwg.mxu0
    %2423 = vrot.lane.b32.xlu0 %v2089, 120
    %v2424 = vpop.permute.xlu0 %2423
    %2425 = vrot.lane.b32.xlu0 %v2081, 88
    %v2426 = vpop.permute.xlu0 %2425
    %v2427 = vsel %vm243, %v2424, 0
    %v2429 = vsel %vm243, %v2426, 0
    %2431 = vmatprep.subr.mxu0 0.0
    %2432 = vmatpush1.xpose.msra.mxu0 %v2429
    %2433 = vmatprep.subr.mxu0 0.0
    %2434 = vmatpush1.xpose.msra.mxu0 0.0
    %2435 = vmatprep.subr.mxu0 0.0
    %2436 = vmatpush1.xpose.msra.mxu0 0.0
    %2437 = vmatprep.subr.mxu0 0.0
    %2438 = vmatpush1.xpose.msra.mxu0 0.0
    %2439 = vmatprep.subr.mxu0 0.0
    %2440 = vmatpush1.xpose.msra.mxu0 0.0
    %2441 = vmatprep.subr.mxu0 0.0
    %2442 = vmatpush1.xpose.msra.mxu0 0.0
    %2443 = vmatprep.subr.mxu0 0.0
    %2444 = vmatpush1.xpose.msra.mxu0 0.0
    %2445 = vmatprep.subr.mxu0 0.0
    %2446 = vmatpush1.xpose.msra.mxu0 0.0
    %2447 = vmatprep.subr.mxu0 0.0
    %2448 = vmatpush1.xpose.msra.mxu0 0.0
    %2449 = vmatprep.subr.mxu0 0.0
    %2450 = vmatpush1.xpose.msra.mxu0 0.0
    %2451 = vmatprep.subr.mxu0 0.0
    %2452 = vmatpush1.xpose.msra.mxu0 0.0
    %2453 = vmatprep.subr.mxu0 0.0
    %2454 = vmatpush1.xpose.msra.mxu0 0.0
    %2455 = vmatprep.subr.mxu0 0.0
    %2456 = vmatpush1.xpose.msra.mxu0 0.0
    %2457 = vmatprep.subr.mxu0 0.0
    %2458 = vmatpush1.xpose.msra.mxu0 0.0
    %2459 = vmatprep.subr.mxu0 0.0
    %2460 = vmatpush1.xpose.msra.mxu0 0.0
    %2461 = vmatprep.subr.mxu0 0.0
    %2462 = vmatpush1.xpose.msra.mxu0 0.0
    %2463 = vmatprep.subr.mxu0 0.0
    %2464 = vmatpush1.xpose.msra.mxu0 0.0
    %2465 = vmatprep.subr.mxu0 0.0
    %2466 = vmatpush1.xpose.msra.mxu0 0.0
    %2467 = vmatprep.subr.mxu0 0.0
    %2468 = vmatpush1.xpose.msra.mxu0 0.0
    %2469 = vmatprep.subr.mxu0 0.0
    %2470 = vmatpush1.xpose.msra.mxu0 0.0
    %2471 = vmatprep.subr.mxu0 0.0
    %2472 = vmatpush1.xpose.msra.mxu0 0.0
    %2473 = vmatprep.subr.mxu0 0.0
    %2474 = vmatpush1.xpose.msra.mxu0 0.0
    %2475 = vmatprep.subr.mxu0 0.0
    %2476 = vmatpush1.xpose.msra.mxu0 0.0
    %2477 = vmatprep.subr.mxu0 0.0
    %2478 = vmatpush1.xpose.msra.mxu0 0.0
    %2479 = vmatprep.subr.mxu0 0.0
    %2480 = vmatpush1.xpose.msra.mxu0 0.0
    %2481 = vmatprep.subr.mxu0 0.0
    %2482 = vmatpush1.xpose.msra.mxu0 0.0
    %2483 = vmatprep.subr.mxu0 0.0
    %2484 = vmatpush1.xpose.msra.mxu0 0.0
    %2485 = vmatprep.subr.mxu0 0.0
    %2486 = vmatpush1.xpose.msra.mxu0 0.0
    %2487 = vmatprep.subr.mxu0 0.0
    %2488 = vmatpush1.xpose.msra.mxu0 0.0
    %2489 = vmatprep.subr.mxu0 0.0
    %2490 = vmatpush1.xpose.msra.mxu0 0.0
    %2491 = vmatprep.subr.mxu0 0.0
    %2492 = vmatpush1.xpose.msra.mxu0 0.0
    %2493 = vmatprep.subr.mxu0 0.0
    %2494 = vmatpush1.xpose.msra.mxu0 0.0
    %2495 = vmatprep.mubr.f32.mxu0 0.0
    %2496 = vmatmul.mubr.f32.gmra.mrb[0].mxu0 %v2427
    %v2497 = vpop.f32.mrb[0].mxu0
    %v2498 = vadd.f32 %v233, %v2497
    %v2499 = vpop.f32.mrb[0].mxu0
    %2500 = vdwg.mxu0
    %2501 = vrot.lane.b32.xlu0 %v2090, 120
    %v2502 = vpop.permute.xlu0 %2501
    %2503 = vrot.lane.b32.xlu0 %v2086, 88
    %v2504 = vpop.permute.xlu0 %2503
    %v2505 = vsel %vm243, %v2502, 0
    %v2507 = vsel %vm243, %v2504, 0
    %2509 = vmatprep.subr.mxu0 0.0
    %2510 = vmatpush1.xpose.msra.mxu0 %v2507
    %2511 = vmatprep.subr.mxu0 0.0
    %2512 = vmatpush1.xpose.msra.mxu0 0.0
    %2513 = vmatprep.subr.mxu0 0.0
    %2514 = vmatpush1.xpose.msra.mxu0 0.0
    %2515 = vmatprep.subr.mxu0 0.0
    %2516 = vmatpush1.xpose.msra.mxu0 0.0
    %2517 = vmatprep.subr.mxu0 0.0
    %2518 = vmatpush1.xpose.msra.mxu0 0.0
    %2519 = vmatprep.subr.mxu0 0.0
    %2520 = vmatpush1.xpose.msra.mxu0 0.0
    %2521 = vmatprep.subr.mxu0 0.0
    %2522 = vmatpush1.xpose.msra.mxu0 0.0
    %2523 = vmatprep.subr.mxu0 0.0
    %2524 = vmatpush1.xpose.msra.mxu0 0.0
    %2525 = vmatprep.subr.mxu0 0.0
    %2526 = vmatpush1.xpose.msra.mxu0 0.0
    %2527 = vmatprep.subr.mxu0 0.0
    %2528 = vmatpush1.xpose.msra.mxu0 0.0
    %2529 = vmatprep.subr.mxu0 0.0
    %2530 = vmatpush1.xpose.msra.mxu0 0.0
    %2531 = vmatprep.subr.mxu0 0.0
    %2532 = vmatpush1.xpose.msra.mxu0 0.0
    %2533 = vmatprep.subr.mxu0 0.0
    %2534 = vmatpush1.xpose.msra.mxu0 0.0
    %2535 = vmatprep.subr.mxu0 0.0
    %2536 = vmatpush1.xpose.msra.mxu0 0.0
    %2537 = vmatprep.subr.mxu0 0.0
    %2538 = vmatpush1.xpose.msra.mxu0 0.0
    %2539 = vmatprep.subr.mxu0 0.0
    %2540 = vmatpush1.xpose.msra.mxu0 0.0
    %2541 = vmatprep.subr.mxu0 0.0
    %2542 = vmatpush1.xpose.msra.mxu0 0.0
    %2543 = vmatprep.subr.mxu0 0.0
    %2544 = vmatpush1.xpose.msra.mxu0 0.0
    %2545 = vmatprep.subr.mxu0 0.0
    %2546 = vmatpush1.xpose.msra.mxu0 0.0
    %2547 = vmatprep.subr.mxu0 0.0
    %2548 = vmatpush1.xpose.msra.mxu0 0.0
    %2549 = vmatprep.subr.mxu0 0.0
    %2550 = vmatpush1.xpose.msra.mxu0 0.0
    %2551 = vmatprep.subr.mxu0 0.0
    %2552 = vmatpush1.xpose.msra.mxu0 0.0
    %2553 = vmatprep.subr.mxu0 0.0
    %2554 = vmatpush1.xpose.msra.mxu0 0.0
    %2555 = vmatprep.subr.mxu0 0.0
    %2556 = vmatpush1.xpose.msra.mxu0 0.0
    %2557 = vmatprep.subr.mxu0 0.0
    %2558 = vmatpush1.xpose.msra.mxu0 0.0
    %2559 = vmatprep.subr.mxu0 0.0
    %2560 = vmatpush1.xpose.msra.mxu0 0.0
    %2561 = vmatprep.subr.mxu0 0.0
    %2562 = vmatpush1.xpose.msra.mxu0 0.0
    %2563 = vmatprep.subr.mxu0 0.0
    %2564 = vmatpush1.xpose.msra.mxu0 0.0
    %2565 = vmatprep.subr.mxu0 0.0
    %2566 = vmatpush1.xpose.msra.mxu0 0.0
    %2567 = vmatprep.subr.mxu0 0.0
    %2568 = vmatpush1.xpose.msra.mxu0 0.0
    %2569 = vmatprep.subr.mxu0 0.0
    %2570 = vmatpush1.xpose.msra.mxu0 0.0
    %2571 = vmatprep.subr.mxu0 0.0
    %2572 = vmatpush1.xpose.msra.mxu0 0.0
    %2573 = vmatprep.mubr.f32.mxu0 0.0
    %2574 = vmatmul.mubr.f32.gmra.mrb[0].mxu0 %v2505
    %v2575 = vpop.f32.mrb[0].mxu0
    %v2576 = vadd.f32 %v237, %v2575
    %v2577 = vpop.f32.mrb[0].mxu0
    %2578 = vdwg.mxu0
    %v2579 = vsel %vm243, %v2498, -inf
    %2580 = vmax.xlane.f32.xlu0 %v2579
    %v2581 = vpop.xlane.xlu0 %2580
    %v2582 = vsel %vm243, %v2576, -inf
    %2583 = vmax.xlane.f32.xlu0 %v2582
    %v2584 = vpop.xlane.xlu0 %2583
    %v2585 = vsub.f32 %v2498, %v2581
    %v2586 = vsub.f32 %v2576, %v2584
    %v2587 = vmul.f32 %v2585, 1.442695
    %v2588 = vpow.pop %v2587
    %v2589 = vmul.f32 %v2586, 1.442695
    %v2590 = vpow.pop %v2589
    %v2591 = vsel %vm243, %v2588, 0.0
    %2592 = vadd.xlane.f32.xlu0 %v2591
    %v2593 = vpop.xlane.xlu0 %2592
    %v2594 = vsel %vm243, %v2590, 0.0
    %2595 = vadd.xlane.f32.xlu0 %v2594
    %v2596 = vpop.xlane.xlu0 %2595
    %v2597 = vmax.f32 %v2593, 1e-09
    %v2598 = vmax.f32 %v2596, 1e-09
    %v2599 = vrcp.pop %v2597
    %v2600 = vrcp.pop %v2598
    %v2601 = vmul.f32 %v2588, %v2599
    %v2602 = vmul.f32 %v2590, %v2600
    %2603 = vrot.lane.b32.xlu0 %v2081, 56
    %v2604 = vpop.permute.xlu0 %2603
    %v2607 = vsel %vm243, %v2601, 0
    %2609 = vmatprep.subr.mxu0 0.0
    %2610 = vmatpush1.msra.mxu0 %v2604
    %2611 = vmatprep.subr.mxu0 0.0
    %2612 = vmatpush1.msra.mxu0 0.0
    %2613 = vmatprep.subr.mxu0 0.0
    %2614 = vmatpush1.msra.mxu0 0.0
    %2615 = vmatprep.subr.mxu0 0.0
    %2616 = vmatpush1.msra.mxu0 0.0
    %2617 = vmatprep.subr.mxu0 0.0
    %2618 = vmatpush1.msra.mxu0 0.0
    %2619 = vmatprep.subr.mxu0 0.0
    %2620 = vmatpush1.msra.mxu0 0.0
    %2621 = vmatprep.subr.mxu0 0.0
    %2622 = vmatpush1.msra.mxu0 0.0
    %2623 = vmatprep.subr.mxu0 0.0
    %2624 = vmatpush1.msra.mxu0 0.0
    %2625 = vmatprep.subr.mxu0 0.0
    %2626 = vmatpush1.msra.mxu0 0.0
    %2627 = vmatprep.subr.mxu0 0.0
    %2628 = vmatpush1.msra.mxu0 0.0
    %2629 = vmatprep.subr.mxu0 0.0
    %2630 = vmatpush1.msra.mxu0 0.0
    %2631 = vmatprep.subr.mxu0 0.0
    %2632 = vmatpush1.msra.mxu0 0.0
    %2633 = vmatprep.subr.mxu0 0.0
    %2634 = vmatpush1.msra.mxu0 0.0
    %2635 = vmatprep.subr.mxu0 0.0
    %2636 = vmatpush1.msra.mxu0 0.0
    %2637 = vmatprep.subr.mxu0 0.0
    %2638 = vmatpush1.msra.mxu0 0.0
    %2639 = vmatprep.subr.mxu0 0.0
    %2640 = vmatpush1.msra.mxu0 0.0
    %2641 = vmatprep.subr.mxu0 0.0
    %2642 = vmatpush1.msra.mxu0 0.0
    %2643 = vmatprep.subr.mxu0 0.0
    %2644 = vmatpush1.msra.mxu0 0.0
    %2645 = vmatprep.subr.mxu0 0.0
    %2646 = vmatpush1.msra.mxu0 0.0
    %2647 = vmatprep.subr.mxu0 0.0
    %2648 = vmatpush1.msra.mxu0 0.0
    %2649 = vmatprep.subr.mxu0 0.0
    %2650 = vmatpush1.msra.mxu0 0.0
    %2651 = vmatprep.subr.mxu0 0.0
    %2652 = vmatpush1.msra.mxu0 0.0
    %2653 = vmatprep.subr.mxu0 0.0
    %2654 = vmatpush1.msra.mxu0 0.0
    %2655 = vmatprep.subr.mxu0 0.0
    %2656 = vmatpush1.msra.mxu0 0.0
    %2657 = vmatprep.subr.mxu0 0.0
    %2658 = vmatpush1.msra.mxu0 0.0
    %2659 = vmatprep.subr.mxu0 0.0
    %2660 = vmatpush1.msra.mxu0 0.0
    %2661 = vmatprep.subr.mxu0 0.0
    %2662 = vmatpush1.msra.mxu0 0.0
    %2663 = vmatprep.subr.mxu0 0.0
    %2664 = vmatpush1.msra.mxu0 0.0
    %2665 = vmatprep.subr.mxu0 0.0
    %2666 = vmatpush1.msra.mxu0 0.0
    %2667 = vmatprep.subr.mxu0 0.0
    %2668 = vmatpush1.msra.mxu0 0.0
    %2669 = vmatprep.subr.mxu0 0.0
    %2670 = vmatpush1.msra.mxu0 0.0
    %2671 = vmatprep.subr.mxu0 0.0
    %2672 = vmatpush1.msra.mxu0 0.0
    %2673 = vmatprep.mubr.f32.mxu0 0.0
    %2674 = vmatmul.mubr.f32.gmra.mrb[0].mxu0 %v2607
    %v2675 = vpop.f32.mrb[0].mxu0
    %v2676 = vadd.f32 0.0, %v2675
    %v2677 = vpop.f32.mrb[0].mxu0
    %2678 = vdwg.mxu0
    %2679 = vrot.lane.b32.xlu0 %v2086, 56
    %v2680 = vpop.permute.xlu0 %2679
    %v2683 = vsel %vm243, %v2602, 0
    %2685 = vmatprep.subr.mxu0 0.0
    %2686 = vmatpush1.msra.mxu0 %v2680
    %2687 = vmatprep.subr.mxu0 0.0
    %2688 = vmatpush1.msra.mxu0 0.0
    %2689 = vmatprep.subr.mxu0 0.0
    %2690 = vmatpush1.msra.mxu0 0.0
    %2691 = vmatprep.subr.mxu0 0.0
    %2692 = vmatpush1.msra.mxu0 0.0
    %2693 = vmatprep.subr.mxu0 0.0
    %2694 = vmatpush1.msra.mxu0 0.0
    %2695 = vmatprep.subr.mxu0 0.0
    %2696 = vmatpush1.msra.mxu0 0.0
    %2697 = vmatprep.subr.mxu0 0.0
    %2698 = vmatpush1.msra.mxu0 0.0
    %2699 = vmatprep.subr.mxu0 0.0
    %2700 = vmatpush1.msra.mxu0 0.0
    %2701 = vmatprep.subr.mxu0 0.0
    %2702 = vmatpush1.msra.mxu0 0.0
    %2703 = vmatprep.subr.mxu0 0.0
    %2704 = vmatpush1.msra.mxu0 0.0
    %2705 = vmatprep.subr.mxu0 0.0
    %2706 = vmatpush1.msra.mxu0 0.0
    %2707 = vmatprep.subr.mxu0 0.0
    %2708 = vmatpush1.msra.mxu0 0.0
    %2709 = vmatprep.subr.mxu0 0.0
    %2710 = vmatpush1.msra.mxu0 0.0
    %2711 = vmatprep.subr.mxu0 0.0
    %2712 = vmatpush1.msra.mxu0 0.0
    %2713 = vmatprep.subr.mxu0 0.0
    %2714 = vmatpush1.msra.mxu0 0.0
    %2715 = vmatprep.subr.mxu0 0.0
    %2716 = vmatpush1.msra.mxu0 0.0
    %2717 = vmatprep.subr.mxu0 0.0
    %2718 = vmatpush1.msra.mxu0 0.0
    %2719 = vmatprep.subr.mxu0 0.0
    %2720 = vmatpush1.msra.mxu0 0.0
    %2721 = vmatprep.subr.mxu0 0.0
    %2722 = vmatpush1.msra.mxu0 0.0
    %2723 = vmatprep.subr.mxu0 0.0
    %2724 = vmatpush1.msra.mxu0 0.0
    %2725 = vmatprep.subr.mxu0 0.0
    %2726 = vmatpush1.msra.mxu0 0.0
    %2727 = vmatprep.subr.mxu0 0.0
    %2728 = vmatpush1.msra.mxu0 0.0
    %2729 = vmatprep.subr.mxu0 0.0
    %2730 = vmatpush1.msra.mxu0 0.0
    %2731 = vmatprep.subr.mxu0 0.0
    %2732 = vmatpush1.msra.mxu0 0.0
    %2733 = vmatprep.subr.mxu0 0.0
    %2734 = vmatpush1.msra.mxu0 0.0
    %2735 = vmatprep.subr.mxu0 0.0
    %2736 = vmatpush1.msra.mxu0 0.0
    %2737 = vmatprep.subr.mxu0 0.0
    %2738 = vmatpush1.msra.mxu0 0.0
    %2739 = vmatprep.subr.mxu0 0.0
    %2740 = vmatpush1.msra.mxu0 0.0
    %2741 = vmatprep.subr.mxu0 0.0
    %2742 = vmatpush1.msra.mxu0 0.0
    %2743 = vmatprep.subr.mxu0 0.0
    %2744 = vmatpush1.msra.mxu0 0.0
    %2745 = vmatprep.subr.mxu0 0.0
    %2746 = vmatpush1.msra.mxu0 0.0
    %2747 = vmatprep.subr.mxu0 0.0
    %2748 = vmatpush1.msra.mxu0 0.0
    %2749 = vmatprep.mubr.f32.mxu0 0.0
    %2750 = vmatmul.mubr.f32.gmra.mrb[0].mxu0 %v2683
    %v2751 = vpop.f32.mrb[0].mxu0
    %v2752 = vadd.f32 0.0, %v2751
    %v2753 = vpop.f32.mrb[0].mxu0
    %2754 = vdwg.mxu0
    %2755 = vrot.lane.b32.xlu0 %v2089, 112
    %v2756 = vpop.permute.xlu0 %2755
    %2757 = vrot.lane.b32.xlu0 %v2081, 80
    %v2758 = vpop.permute.xlu0 %2757
    %v2759 = vsel %vm243, %v2756, 0
    %v2761 = vsel %vm243, %v2758, 0
    %2763 = vmatprep.subr.mxu0 0.0
    %2764 = vmatpush1.xpose.msra.mxu0 %v2761
    %2765 = vmatprep.subr.mxu0 0.0
    %2766 = vmatpush1.xpose.msra.mxu0 0.0
    %2767 = vmatprep.subr.mxu0 0.0
    %2768 = vmatpush1.xpose.msra.mxu0 0.0
    %2769 = vmatprep.subr.mxu0 0.0
    %2770 = vmatpush1.xpose.msra.mxu0 0.0
    %2771 = vmatprep.subr.mxu0 0.0
    %2772 = vmatpush1.xpose.msra.mxu0 0.0
    %2773 = vmatprep.subr.mxu0 0.0
    %2774 = vmatpush1.xpose.msra.mxu0 0.0
    %2775 = vmatprep.subr.mxu0 0.0
    %2776 = vmatpush1.xpose.msra.mxu0 0.0
    %2777 = vmatprep.subr.mxu0 0.0
    %2778 = vmatpush1.xpose.msra.mxu0 0.0
    %2779 = vmatprep.subr.mxu0 0.0
    %2780 = vmatpush1.xpose.msra.mxu0 0.0
    %2781 = vmatprep.subr.mxu0 0.0
    %2782 = vmatpush1.xpose.msra.mxu0 0.0
    %2783 = vmatprep.subr.mxu0 0.0
    %2784 = vmatpush1.xpose.msra.mxu0 0.0
    %2785 = vmatprep.subr.mxu0 0.0
    %2786 = vmatpush1.xpose.msra.mxu0 0.0
    %2787 = vmatprep.subr.mxu0 0.0
    %2788 = vmatpush1.xpose.msra.mxu0 0.0
    %2789 = vmatprep.subr.mxu0 0.0
    %2790 = vmatpush1.xpose.msra.mxu0 0.0
    %2791 = vmatprep.subr.mxu0 0.0
    %2792 = vmatpush1.xpose.msra.mxu0 0.0
    %2793 = vmatprep.subr.mxu0 0.0
    %2794 = vmatpush1.xpose.msra.mxu0 0.0
    %2795 = vmatprep.subr.mxu0 0.0
    %2796 = vmatpush1.xpose.msra.mxu0 0.0
    %2797 = vmatprep.subr.mxu0 0.0
    %2798 = vmatpush1.xpose.msra.mxu0 0.0
    %2799 = vmatprep.subr.mxu0 0.0
    %2800 = vmatpush1.xpose.msra.mxu0 0.0
    %2801 = vmatprep.subr.mxu0 0.0
    %2802 = vmatpush1.xpose.msra.mxu0 0.0
    %2803 = vmatprep.subr.mxu0 0.0
    %2804 = vmatpush1.xpose.msra.mxu0 0.0
    %2805 = vmatprep.subr.mxu0 0.0
    %2806 = vmatpush1.xpose.msra.mxu0 0.0
    %2807 = vmatprep.subr.mxu0 0.0
    %2808 = vmatpush1.xpose.msra.mxu0 0.0
    %2809 = vmatprep.subr.mxu0 0.0
    %2810 = vmatpush1.xpose.msra.mxu0 0.0
    %2811 = vmatprep.subr.mxu0 0.0
    %2812 = vmatpush1.xpose.msra.mxu0 0.0
    %2813 = vmatprep.subr.mxu0 0.0
    %2814 = vmatpush1.xpose.msra.mxu0 0.0
    %2815 = vmatprep.subr.mxu0 0.0
    %2816 = vmatpush1.xpose.msra.mxu0 0.0
    %2817 = vmatprep.subr.mxu0 0.0
    %2818 = vmatpush1.xpose.msra.mxu0 0.0
    %2819 = vmatprep.subr.mxu0 0.0
    %2820 = vmatpush1.xpose.msra.mxu0 0.0
    %2821 = vmatprep.subr.mxu0 0.0
    %2822 = vmatpush1.xpose.msra.mxu0 0.0
    %2823 = vmatprep.subr.mxu0 0.0
    %2824 = vmatpush1.xpose.msra.mxu0 0.0
    %2825 = vmatprep.subr.mxu0 0.0
    %2826 = vmatpush1.xpose.msra.mxu0 0.0
    %2827 = vmatprep.mubr.f32.mxu0 0.0
    %2828 = vmatmul.mubr.f32.gmra.mrb[0].mxu0 %v2759
    %v2829 = vpop.f32.mrb[0].mxu0
    %v2830 = vadd.f32 %v233, %v2829
    %v2831 = vpop.f32.mrb[0].mxu0
    %2832 = vdwg.mxu0
    %2833 = vrot.lane.b32.xlu0 %v2090, 112
    %v2834 = vpop.permute.xlu0 %2833
    %2835 = vrot.lane.b32.xlu0 %v2086, 80
    %v2836 = vpop.permute.xlu0 %2835
    %v2837 = vsel %vm243, %v2834, 0
    %v2839 = vsel %vm243, %v2836, 0
    %2841 = vmatprep.subr.mxu0 0.0
    %2842 = vmatpush1.xpose.msra.mxu0 %v2839
    %2843 = vmatprep.subr.mxu0 0.0
    %2844 = vmatpush1.xpose.msra.mxu0 0.0
    %2845 = vmatprep.subr.mxu0 0.0
    %2846 = vmatpush1.xpose.msra.mxu0 0.0
    %2847 = vmatprep.subr.mxu0 0.0
    %2848 = vmatpush1.xpose.msra.mxu0 0.0
    %2849 = vmatprep.subr.mxu0 0.0
    %2850 = vmatpush1.xpose.msra.mxu0 0.0
    %2851 = vmatprep.subr.mxu0 0.0
    %2852 = vmatpush1.xpose.msra.mxu0 0.0
    %2853 = vmatprep.subr.mxu0 0.0
    %2854 = vmatpush1.xpose.msra.mxu0 0.0
    %2855 = vmatprep.subr.mxu0 0.0
    %2856 = vmatpush1.xpose.msra.mxu0 0.0
    %2857 = vmatprep.subr.mxu0 0.0
    %2858 = vmatpush1.xpose.msra.mxu0 0.0
    %2859 = vmatprep.subr.mxu0 0.0
    %2860 = vmatpush1.xpose.msra.mxu0 0.0
    %2861 = vmatprep.subr.mxu0 0.0
    %2862 = vmatpush1.xpose.msra.mxu0 0.0
    %2863 = vmatprep.subr.mxu0 0.0
    %2864 = vmatpush1.xpose.msra.mxu0 0.0
    %2865 = vmatprep.subr.mxu0 0.0
    %2866 = vmatpush1.xpose.msra.mxu0 0.0
    %2867 = vmatprep.subr.mxu0 0.0
    %2868 = vmatpush1.xpose.msra.mxu0 0.0
    %2869 = vmatprep.subr.mxu0 0.0
    %2870 = vmatpush1.xpose.msra.mxu0 0.0
    %2871 = vmatprep.subr.mxu0 0.0
    %2872 = vmatpush1.xpose.msra.mxu0 0.0
    %2873 = vmatprep.subr.mxu0 0.0
    %2874 = vmatpush1.xpose.msra.mxu0 0.0
    %2875 = vmatprep.subr.mxu0 0.0
    %2876 = vmatpush1.xpose.msra.mxu0 0.0
    %2877 = vmatprep.subr.mxu0 0.0
    %2878 = vmatpush1.xpose.msra.mxu0 0.0
    %2879 = vmatprep.subr.mxu0 0.0
    %2880 = vmatpush1.xpose.msra.mxu0 0.0
    %2881 = vmatprep.subr.mxu0 0.0
    %2882 = vmatpush1.xpose.msra.mxu0 0.0
    %2883 = vmatprep.subr.mxu0 0.0
    %2884 = vmatpush1.xpose.msra.mxu0 0.0
    %2885 = vmatprep.subr.mxu0 0.0
    %2886 = vmatpush1.xpose.msra.mxu0 0.0
    %2887 = vmatprep.subr.mxu0 0.0
    %2888 = vmatpush1.xpose.msra.mxu0 0.0
    %2889 = vmatprep.subr.mxu0 0.0
    %2890 = vmatpush1.xpose.msra.mxu0 0.0
    %2891 = vmatprep.subr.mxu0 0.0
    %2892 = vmatpush1.xpose.msra.mxu0 0.0
    %2893 = vmatprep.subr.mxu0 0.0
    %2894 = vmatpush1.xpose.msra.mxu0 0.0
    %2895 = vmatprep.subr.mxu0 0.0
    %2896 = vmatpush1.xpose.msra.mxu0 0.0
    %2897 = vmatprep.subr.mxu0 0.0
    %2898 = vmatpush1.xpose.msra.mxu0 0.0
    %2899 = vmatprep.subr.mxu0 0.0
    %2900 = vmatpush1.xpose.msra.mxu0 0.0
    %2901 = vmatprep.subr.mxu0 0.0
    %2902 = vmatpush1.xpose.msra.mxu0 0.0
    %2903 = vmatprep.subr.mxu0 0.0
    %2904 = vmatpush1.xpose.msra.mxu0 0.0
    %2905 = vmatprep.mubr.f32.mxu0 0.0
    %2906 = vmatmul.mubr.f32.gmra.mrb[0].mxu0 %v2837
    %v2907 = vpop.f32.mrb[0].mxu0
    %v2908 = vadd.f32 %v237, %v2907
    %v2909 = vpop.f32.mrb[0].mxu0
    %2910 = vdwg.mxu0
    %v2911 = vsel %vm243, %v2830, -inf
    %2912 = vmax.xlane.f32.xlu0 %v2911
    %v2913 = vpop.xlane.xlu0 %2912
    %v2914 = vsel %vm243, %v2908, -inf
    %2915 = vmax.xlane.f32.xlu0 %v2914
    %v2916 = vpop.xlane.xlu0 %2915
    %v2917 = vsub.f32 %v2830, %v2913
    %v2918 = vsub.f32 %v2908, %v2916
    %v2919 = vmul.f32 %v2917, 1.442695
    %v2920 = vpow.pop %v2919
    %v2921 = vmul.f32 %v2918, 1.442695
    %v2922 = vpow.pop %v2921
    %v2923 = vsel %vm243, %v2920, 0.0
    %2924 = vadd.xlane.f32.xlu0 %v2923
    %v2925 = vpop.xlane.xlu0 %2924
    %v2926 = vsel %vm243, %v2922, 0.0
    %2927 = vadd.xlane.f32.xlu0 %v2926
    %v2928 = vpop.xlane.xlu0 %2927
    %v2929 = vmax.f32 %v2925, 1e-09
    %v2930 = vmax.f32 %v2928, 1e-09
    %v2931 = vrcp.pop %v2929
    %v2932 = vrcp.pop %v2930
    %v2933 = vmul.f32 %v2920, %v2931
    %v2934 = vmul.f32 %v2922, %v2932
    %2935 = vrot.lane.b32.xlu0 %v2081, 48
    %v2936 = vpop.permute.xlu0 %2935
    %v2939 = vsel %vm243, %v2933, 0
    %2941 = vmatprep.subr.mxu0 0.0
    %2942 = vmatpush1.msra.mxu0 %v2936
    %2943 = vmatprep.subr.mxu0 0.0
    %2944 = vmatpush1.msra.mxu0 0.0
    %2945 = vmatprep.subr.mxu0 0.0
    %2946 = vmatpush1.msra.mxu0 0.0
    %2947 = vmatprep.subr.mxu0 0.0
    %2948 = vmatpush1.msra.mxu0 0.0
    %2949 = vmatprep.subr.mxu0 0.0
    %2950 = vmatpush1.msra.mxu0 0.0
    %2951 = vmatprep.subr.mxu0 0.0
    %2952 = vmatpush1.msra.mxu0 0.0
    %2953 = vmatprep.subr.mxu0 0.0
    %2954 = vmatpush1.msra.mxu0 0.0
    %2955 = vmatprep.subr.mxu0 0.0
    %2956 = vmatpush1.msra.mxu0 0.0
    %2957 = vmatprep.subr.mxu0 0.0
    %2958 = vmatpush1.msra.mxu0 0.0
    %2959 = vmatprep.subr.mxu0 0.0
    %2960 = vmatpush1.msra.mxu0 0.0
    %2961 = vmatprep.subr.mxu0 0.0
    %2962 = vmatpush1.msra.mxu0 0.0
    %2963 = vmatprep.subr.mxu0 0.0
    %2964 = vmatpush1.msra.mxu0 0.0
    %2965 = vmatprep.subr.mxu0 0.0
    %2966 = vmatpush1.msra.mxu0 0.0
    %2967 = vmatprep.subr.mxu0 0.0
    %2968 = vmatpush1.msra.mxu0 0.0
    %2969 = vmatprep.subr.mxu0 0.0
    %2970 = vmatpush1.msra.mxu0 0.0
    %2971 = vmatprep.subr.mxu0 0.0
    %2972 = vmatpush1.msra.mxu0 0.0
    %2973 = vmatprep.subr.mxu0 0.0
    %2974 = vmatpush1.msra.mxu0 0.0
    %2975 = vmatprep.subr.mxu0 0.0
    %2976 = vmatpush1.msra.mxu0 0.0
    %2977 = vmatprep.subr.mxu0 0.0
    %2978 = vmatpush1.msra.mxu0 0.0
    %2979 = vmatprep.subr.mxu0 0.0
    %2980 = vmatpush1.msra.mxu0 0.0
    %2981 = vmatprep.subr.mxu0 0.0
    %2982 = vmatpush1.msra.mxu0 0.0
    %2983 = vmatprep.subr.mxu0 0.0
    %2984 = vmatpush1.msra.mxu0 0.0
    %2985 = vmatprep.subr.mxu0 0.0
    %2986 = vmatpush1.msra.mxu0 0.0
    %2987 = vmatprep.subr.mxu0 0.0
    %2988 = vmatpush1.msra.mxu0 0.0
    %2989 = vmatprep.subr.mxu0 0.0
    %2990 = vmatpush1.msra.mxu0 0.0
    %2991 = vmatprep.subr.mxu0 0.0
    %2992 = vmatpush1.msra.mxu0 0.0
    %2993 = vmatprep.subr.mxu0 0.0
    %2994 = vmatpush1.msra.mxu0 0.0
    %2995 = vmatprep.subr.mxu0 0.0
    %2996 = vmatpush1.msra.mxu0 0.0
    %2997 = vmatprep.subr.mxu0 0.0
    %2998 = vmatpush1.msra.mxu0 0.0
    %2999 = vmatprep.subr.mxu0 0.0
    %3000 = vmatpush1.msra.mxu0 0.0
    %3001 = vmatprep.subr.mxu0 0.0
    %3002 = vmatpush1.msra.mxu0 0.0
    %3003 = vmatprep.subr.mxu0 0.0
    %3004 = vmatpush1.msra.mxu0 0.0
    %3005 = vmatprep.mubr.f32.mxu0 0.0
    %3006 = vmatmul.mubr.f32.gmra.mrb[0].mxu0 %v2939
    %v3007 = vpop.f32.mrb[0].mxu0
    %v3008 = vadd.f32 0.0, %v3007
    %v3009 = vpop.f32.mrb[0].mxu0
    %3010 = vdwg.mxu0
    %3011 = vrot.lane.b32.xlu0 %v2086, 48
    %v3012 = vpop.permute.xlu0 %3011
    %v3015 = vsel %vm243, %v2934, 0
    %3017 = vmatprep.subr.mxu0 0.0
    %3018 = vmatpush1.msra.mxu0 %v3012
    %3019 = vmatprep.subr.mxu0 0.0
    %3020 = vmatpush1.msra.mxu0 0.0
    %3021 = vmatprep.subr.mxu0 0.0
    %3022 = vmatpush1.msra.mxu0 0.0
    %3023 = vmatprep.subr.mxu0 0.0
    %3024 = vmatpush1.msra.mxu0 0.0
    %3025 = vmatprep.subr.mxu0 0.0
    %3026 = vmatpush1.msra.mxu0 0.0
    %3027 = vmatprep.subr.mxu0 0.0
    %3028 = vmatpush1.msra.mxu0 0.0
    %3029 = vmatprep.subr.mxu0 0.0
    %3030 = vmatpush1.msra.mxu0 0.0
    %3031 = vmatprep.subr.mxu0 0.0
    %3032 = vmatpush1.msra.mxu0 0.0
    %3033 = vmatprep.subr.mxu0 0.0
    %3034 = vmatpush1.msra.mxu0 0.0
    %3035 = vmatprep.subr.mxu0 0.0
    %3036 = vmatpush1.msra.mxu0 0.0
    %3037 = vmatprep.subr.mxu0 0.0
    %3038 = vmatpush1.msra.mxu0 0.0
    %3039 = vmatprep.subr.mxu0 0.0
    %3040 = vmatpush1.msra.mxu0 0.0
    %3041 = vmatprep.subr.mxu0 0.0
    %3042 = vmatpush1.msra.mxu0 0.0
    %3043 = vmatprep.subr.mxu0 0.0
    %3044 = vmatpush1.msra.mxu0 0.0
    %3045 = vmatprep.subr.mxu0 0.0
    %3046 = vmatpush1.msra.mxu0 0.0
    %3047 = vmatprep.subr.mxu0 0.0
    %3048 = vmatpush1.msra.mxu0 0.0
    %3049 = vmatprep.subr.mxu0 0.0
    %3050 = vmatpush1.msra.mxu0 0.0
    %3051 = vmatprep.subr.mxu0 0.0
    %3052 = vmatpush1.msra.mxu0 0.0
    %3053 = vmatprep.subr.mxu0 0.0
    %3054 = vmatpush1.msra.mxu0 0.0
    %3055 = vmatprep.subr.mxu0 0.0
    %3056 = vmatpush1.msra.mxu0 0.0
    %3057 = vmatprep.subr.mxu0 0.0
    %3058 = vmatpush1.msra.mxu0 0.0
    %3059 = vmatprep.subr.mxu0 0.0
    %3060 = vmatpush1.msra.mxu0 0.0
    %3061 = vmatprep.subr.mxu0 0.0
    %3062 = vmatpush1.msra.mxu0 0.0
    %3063 = vmatprep.subr.mxu0 0.0
    %3064 = vmatpush1.msra.mxu0 0.0
    %3065 = vmatprep.subr.mxu0 0.0
    %3066 = vmatpush1.msra.mxu0 0.0
    %3067 = vmatprep.subr.mxu0 0.0
    %3068 = vmatpush1.msra.mxu0 0.0
    %3069 = vmatprep.subr.mxu0 0.0
    %3070 = vmatpush1.msra.mxu0 0.0
    %3071 = vmatprep.subr.mxu0 0.0
    %3072 = vmatpush1.msra.mxu0 0.0
    %3073 = vmatprep.subr.mxu0 0.0
    %3074 = vmatpush1.msra.mxu0 0.0
    %3075 = vmatprep.subr.mxu0 0.0
    %3076 = vmatpush1.msra.mxu0 0.0
    %3077 = vmatprep.subr.mxu0 0.0
    %3078 = vmatpush1.msra.mxu0 0.0
    %3079 = vmatprep.subr.mxu0 0.0
    %3080 = vmatpush1.msra.mxu0 0.0
    %3081 = vmatprep.mubr.f32.mxu0 0.0
    %3082 = vmatmul.mubr.f32.gmra.mrb[0].mxu0 %v3015
    %v3083 = vpop.f32.mrb[0].mxu0
    %v3084 = vadd.f32 0.0, %v3083
    %v3085 = vpop.f32.mrb[0].mxu0
    %3086 = vdwg.mxu0
    %3087 = vrot.lane.b32.xlu0 %v2089, 104
    %v3088 = vpop.permute.xlu0 %3087
    %3089 = vrot.lane.b32.xlu0 %v2081, 72
    %v3090 = vpop.permute.xlu0 %3089
    %v3091 = vsel %vm243, %v3088, 0
    %v3093 = vsel %vm243, %v3090, 0
    %3095 = vmatprep.subr.mxu0 0.0
    %3096 = vmatpush1.xpose.msra.mxu0 %v3093
    %3097 = vmatprep.subr.mxu0 0.0
    %3098 = vmatpush1.xpose.msra.mxu0 0.0
    %3099 = vmatprep.subr.mxu0 0.0
    %3100 = vmatpush1.xpose.msra.mxu0 0.0
    %3101 = vmatprep.subr.mxu0 0.0
    %3102 = vmatpush1.xpose.msra.mxu0 0.0
    %3103 = vmatprep.subr.mxu0 0.0
    %3104 = vmatpush1.xpose.msra.mxu0 0.0
    %3105 = vmatprep.subr.mxu0 0.0
    %3106 = vmatpush1.xpose.msra.mxu0 0.0
    %3107 = vmatprep.subr.mxu0 0.0
    %3108 = vmatpush1.xpose.msra.mxu0 0.0
    %3109 = vmatprep.subr.mxu0 0.0
    %3110 = vmatpush1.xpose.msra.mxu0 0.0
    %3111 = vmatprep.subr.mxu0 0.0
    %3112 = vmatpush1.xpose.msra.mxu0 0.0
    %3113 = vmatprep.subr.mxu0 0.0
    %3114 = vmatpush1.xpose.msra.mxu0 0.0
    %3115 = vmatprep.subr.mxu0 0.0
    %3116 = vmatpush1.xpose.msra.mxu0 0.0
    %3117 = vmatprep.subr.mxu0 0.0
    %3118 = vmatpush1.xpose.msra.mxu0 0.0
    %3119 = vmatprep.subr.mxu0 0.0
    %3120 = vmatpush1.xpose.msra.mxu0 0.0
    %3121 = vmatprep.subr.mxu0 0.0
    %3122 = vmatpush1.xpose.msra.mxu0 0.0
    %3123 = vmatprep.subr.mxu0 0.0
    %3124 = vmatpush1.xpose.msra.mxu0 0.0
    %3125 = vmatprep.subr.mxu0 0.0
    %3126 = vmatpush1.xpose.msra.mxu0 0.0
    %3127 = vmatprep.subr.mxu0 0.0
    %3128 = vmatpush1.xpose.msra.mxu0 0.0
    %3129 = vmatprep.subr.mxu0 0.0
    %3130 = vmatpush1.xpose.msra.mxu0 0.0
    %3131 = vmatprep.subr.mxu0 0.0
    %3132 = vmatpush1.xpose.msra.mxu0 0.0
    %3133 = vmatprep.subr.mxu0 0.0
    %3134 = vmatpush1.xpose.msra.mxu0 0.0
    %3135 = vmatprep.subr.mxu0 0.0
    %3136 = vmatpush1.xpose.msra.mxu0 0.0
    %3137 = vmatprep.subr.mxu0 0.0
    %3138 = vmatpush1.xpose.msra.mxu0 0.0
    %3139 = vmatprep.subr.mxu0 0.0
    %3140 = vmatpush1.xpose.msra.mxu0 0.0
    %3141 = vmatprep.subr.mxu0 0.0
    %3142 = vmatpush1.xpose.msra.mxu0 0.0
    %3143 = vmatprep.subr.mxu0 0.0
    %3144 = vmatpush1.xpose.msra.mxu0 0.0
    %3145 = vmatprep.subr.mxu0 0.0
    %3146 = vmatpush1.xpose.msra.mxu0 0.0
    %3147 = vmatprep.subr.mxu0 0.0
    %3148 = vmatpush1.xpose.msra.mxu0 0.0
    %3149 = vmatprep.subr.mxu0 0.0
    %3150 = vmatpush1.xpose.msra.mxu0 0.0
    %3151 = vmatprep.subr.mxu0 0.0
    %3152 = vmatpush1.xpose.msra.mxu0 0.0
    %3153 = vmatprep.subr.mxu0 0.0
    %3154 = vmatpush1.xpose.msra.mxu0 0.0
    %3155 = vmatprep.subr.mxu0 0.0
    %3156 = vmatpush1.xpose.msra.mxu0 0.0
    %3157 = vmatprep.subr.mxu0 0.0
    %3158 = vmatpush1.xpose.msra.mxu0 0.0
    %3159 = vmatprep.mubr.f32.mxu0 0.0
    %3160 = vmatmul.mubr.f32.gmra.mrb[0].mxu0 %v3091
    %v3161 = vpop.f32.mrb[0].mxu0
    %v3162 = vadd.f32 %v233, %v3161
    %v3163 = vpop.f32.mrb[0].mxu0
    %3164 = vdwg.mxu0
    %3165 = vrot.lane.b32.xlu0 %v2090, 104
    %v3166 = vpop.permute.xlu0 %3165
    %3167 = vrot.lane.b32.xlu0 %v2086, 72
    %v3168 = vpop.permute.xlu0 %3167
    %v3169 = vsel %vm243, %v3166, 0
    %v3171 = vsel %vm243, %v3168, 0
    %3173 = vmatprep.subr.mxu0 0.0
    %3174 = vmatpush1.xpose.msra.mxu0 %v3171
    %3175 = vmatprep.subr.mxu0 0.0
    %3176 = vmatpush1.xpose.msra.mxu0 0.0
    %3177 = vmatprep.subr.mxu0 0.0
    %3178 = vmatpush1.xpose.msra.mxu0 0.0
    %3179 = vmatprep.subr.mxu0 0.0
    %3180 = vmatpush1.xpose.msra.mxu0 0.0
    %3181 = vmatprep.subr.mxu0 0.0
    %3182 = vmatpush1.xpose.msra.mxu0 0.0
    %3183 = vmatprep.subr.mxu0 0.0
    %3184 = vmatpush1.xpose.msra.mxu0 0.0
    %3185 = vmatprep.subr.mxu0 0.0
    %3186 = vmatpush1.xpose.msra.mxu0 0.0
    %3187 = vmatprep.subr.mxu0 0.0
    %3188 = vmatpush1.xpose.msra.mxu0 0.0
    %3189 = vmatprep.subr.mxu0 0.0
    %3190 = vmatpush1.xpose.msra.mxu0 0.0
    %3191 = vmatprep.subr.mxu0 0.0
    %3192 = vmatpush1.xpose.msra.mxu0 0.0
    %3193 = vmatprep.subr.mxu0 0.0
    %3194 = vmatpush1.xpose.msra.mxu0 0.0
    %3195 = vmatprep.subr.mxu0 0.0
    %3196 = vmatpush1.xpose.msra.mxu0 0.0
    %3197 = vmatprep.subr.mxu0 0.0
    %3198 = vmatpush1.xpose.msra.mxu0 0.0
    %3199 = vmatprep.subr.mxu0 0.0
    %3200 = vmatpush1.xpose.msra.mxu0 0.0
    %3201 = vmatprep.subr.mxu0 0.0
    %3202 = vmatpush1.xpose.msra.mxu0 0.0
    %3203 = vmatprep.subr.mxu0 0.0
    %3204 = vmatpush1.xpose.msra.mxu0 0.0
    %3205 = vmatprep.subr.mxu0 0.0
    %3206 = vmatpush1.xpose.msra.mxu0 0.0
    %3207 = vmatprep.subr.mxu0 0.0
    %3208 = vmatpush1.xpose.msra.mxu0 0.0
    %3209 = vmatprep.subr.mxu0 0.0
    %3210 = vmatpush1.xpose.msra.mxu0 0.0
    %3211 = vmatprep.subr.mxu0 0.0
    %3212 = vmatpush1.xpose.msra.mxu0 0.0
    %3213 = vmatprep.subr.mxu0 0.0
    %3214 = vmatpush1.xpose.msra.mxu0 0.0
    %3215 = vmatprep.subr.mxu0 0.0
    %3216 = vmatpush1.xpose.msra.mxu0 0.0
    %3217 = vmatprep.subr.mxu0 0.0
    %3218 = vmatpush1.xpose.msra.mxu0 0.0
    %3219 = vmatprep.subr.mxu0 0.0
    %3220 = vmatpush1.xpose.msra.mxu0 0.0
    %3221 = vmatprep.subr.mxu0 0.0
    %3222 = vmatpush1.xpose.msra.mxu0 0.0
    %3223 = vmatprep.subr.mxu0 0.0
    %3224 = vmatpush1.xpose.msra.mxu0 0.0
    %3225 = vmatprep.subr.mxu0 0.0
    %3226 = vmatpush1.xpose.msra.mxu0 0.0
    %3227 = vmatprep.subr.mxu0 0.0
    %3228 = vmatpush1.xpose.msra.mxu0 0.0
    %3229 = vmatprep.subr.mxu0 0.0
    %3230 = vmatpush1.xpose.msra.mxu0 0.0
    %3231 = vmatprep.subr.mxu0 0.0
    %3232 = vmatpush1.xpose.msra.mxu0 0.0
    %3233 = vmatprep.subr.mxu0 0.0
    %3234 = vmatpush1.xpose.msra.mxu0 0.0
    %3235 = vmatprep.subr.mxu0 0.0
    %3236 = vmatpush1.xpose.msra.mxu0 0.0
    %3237 = vmatprep.mubr.f32.mxu0 0.0
    %3238 = vmatmul.mubr.f32.gmra.mrb[0].mxu0 %v3169
    %v3239 = vpop.f32.mrb[0].mxu0
    %v3240 = vadd.f32 %v237, %v3239
    %v3241 = vpop.f32.mrb[0].mxu0
    %3242 = vdwg.mxu0
    %v3243 = vsel %vm243, %v3162, -inf
    %3244 = vmax.xlane.f32.xlu0 %v3243
    %v3245 = vpop.xlane.xlu0 %3244
    %v3246 = vsel %vm243, %v3240, -inf
    %3247 = vmax.xlane.f32.xlu0 %v3246
    %v3248 = vpop.xlane.xlu0 %3247
    %v3249 = vsub.f32 %v3162, %v3245
    %v3250 = vsub.f32 %v3240, %v3248
    %v3251 = vmul.f32 %v3249, 1.442695
    %v3252 = vpow.pop %v3251
    %v3253 = vmul.f32 %v3250, 1.442695
    %v3254 = vpow.pop %v3253
    %v3255 = vsel %vm243, %v3252, 0.0
    %3256 = vadd.xlane.f32.xlu0 %v3255
    %v3257 = vpop.xlane.xlu0 %3256
    %v3258 = vsel %vm243, %v3254, 0.0
    %3259 = vadd.xlane.f32.xlu0 %v3258
    %v3260 = vpop.xlane.xlu0 %3259
    %v3261 = vmax.f32 %v3257, 1e-09
    %v3262 = vmax.f32 %v3260, 1e-09
    %v3263 = vrcp.pop %v3261
    %v3264 = vrcp.pop %v3262
    %v3265 = vmul.f32 %v3252, %v3263
    %v3266 = vmul.f32 %v3254, %v3264
    %3267 = vrot.lane.b32.xlu0 %v2081, 40
    %v3268 = vpop.permute.xlu0 %3267
    %v3271 = vsel %vm243, %v3265, 0
    %3273 = vmatprep.subr.mxu0 0.0
    %3274 = vmatpush1.msra.mxu0 %v3268
    %3275 = vmatprep.subr.mxu0 0.0
    %3276 = vmatpush1.msra.mxu0 0.0
    %3277 = vmatprep.subr.mxu0 0.0
    %3278 = vmatpush1.msra.mxu0 0.0
    %3279 = vmatprep.subr.mxu0 0.0
    %3280 = vmatpush1.msra.mxu0 0.0
    %3281 = vmatprep.subr.mxu0 0.0
    %3282 = vmatpush1.msra.mxu0 0.0
    %3283 = vmatprep.subr.mxu0 0.0
    %3284 = vmatpush1.msra.mxu0 0.0
    %3285 = vmatprep.subr.mxu0 0.0
    %3286 = vmatpush1.msra.mxu0 0.0
    %3287 = vmatprep.subr.mxu0 0.0
    %3288 = vmatpush1.msra.mxu0 0.0
    %3289 = vmatprep.subr.mxu0 0.0
    %3290 = vmatpush1.msra.mxu0 0.0
    %3291 = vmatprep.subr.mxu0 0.0
    %3292 = vmatpush1.msra.mxu0 0.0
    %3293 = vmatprep.subr.mxu0 0.0
    %3294 = vmatpush1.msra.mxu0 0.0
    %3295 = vmatprep.subr.mxu0 0.0
    %3296 = vmatpush1.msra.mxu0 0.0
    %3297 = vmatprep.subr.mxu0 0.0
    %3298 = vmatpush1.msra.mxu0 0.0
    %3299 = vmatprep.subr.mxu0 0.0
    %3300 = vmatpush1.msra.mxu0 0.0
    %3301 = vmatprep.subr.mxu0 0.0
    %3302 = vmatpush1.msra.mxu0 0.0
    %3303 = vmatprep.subr.mxu0 0.0
    %3304 = vmatpush1.msra.mxu0 0.0
    %3305 = vmatprep.subr.mxu0 0.0
    %3306 = vmatpush1.msra.mxu0 0.0
    %3307 = vmatprep.subr.mxu0 0.0
    %3308 = vmatpush1.msra.mxu0 0.0
    %3309 = vmatprep.subr.mxu0 0.0
    %3310 = vmatpush1.msra.mxu0 0.0
    %3311 = vmatprep.subr.mxu0 0.0
    %3312 = vmatpush1.msra.mxu0 0.0
    %3313 = vmatprep.subr.mxu0 0.0
    %3314 = vmatpush1.msra.mxu0 0.0
    %3315 = vmatprep.subr.mxu0 0.0
    %3316 = vmatpush1.msra.mxu0 0.0
    %3317 = vmatprep.subr.mxu0 0.0
    %3318 = vmatpush1.msra.mxu0 0.0
    %3319 = vmatprep.subr.mxu0 0.0
    %3320 = vmatpush1.msra.mxu0 0.0
    %3321 = vmatprep.subr.mxu0 0.0
    %3322 = vmatpush1.msra.mxu0 0.0
    %3323 = vmatprep.subr.mxu0 0.0
    %3324 = vmatpush1.msra.mxu0 0.0
    %3325 = vmatprep.subr.mxu0 0.0
    %3326 = vmatpush1.msra.mxu0 0.0
    %3327 = vmatprep.subr.mxu0 0.0
    %3328 = vmatpush1.msra.mxu0 0.0
    %3329 = vmatprep.subr.mxu0 0.0
    %3330 = vmatpush1.msra.mxu0 0.0
    %3331 = vmatprep.subr.mxu0 0.0
    %3332 = vmatpush1.msra.mxu0 0.0
    %3333 = vmatprep.subr.mxu0 0.0
    %3334 = vmatpush1.msra.mxu0 0.0
    %3335 = vmatprep.subr.mxu0 0.0
    %3336 = vmatpush1.msra.mxu0 0.0
    %3337 = vmatprep.mubr.f32.mxu0 0.0
    %3338 = vmatmul.mubr.f32.gmra.mrb[0].mxu0 %v3271
    %v3339 = vpop.f32.mrb[0].mxu0
    %v3340 = vadd.f32 0.0, %v3339
    %v3341 = vpop.f32.mrb[0].mxu0
    %3342 = vdwg.mxu0
    %3343 = vrot.lane.b32.xlu0 %v2086, 40
    %v3344 = vpop.permute.xlu0 %3343
    %v3347 = vsel %vm243, %v3266, 0
    %3349 = vmatprep.subr.mxu0 0.0
    %3350 = vmatpush1.msra.mxu0 %v3344
    %3351 = vmatprep.subr.mxu0 0.0
    %3352 = vmatpush1.msra.mxu0 0.0
    %3353 = vmatprep.subr.mxu0 0.0
    %3354 = vmatpush1.msra.mxu0 0.0
    %3355 = vmatprep.subr.mxu0 0.0
    %3356 = vmatpush1.msra.mxu0 0.0
    %3357 = vmatprep.subr.mxu0 0.0
    %3358 = vmatpush1.msra.mxu0 0.0
    %3359 = vmatprep.subr.mxu0 0.0
    %3360 = vmatpush1.msra.mxu0 0.0
    %3361 = vmatprep.subr.mxu0 0.0
    %3362 = vmatpush1.msra.mxu0 0.0
    %3363 = vmatprep.subr.mxu0 0.0
    %3364 = vmatpush1.msra.mxu0 0.0
    %3365 = vmatprep.subr.mxu0 0.0
    %3366 = vmatpush1.msra.mxu0 0.0
    %3367 = vmatprep.subr.mxu0 0.0
    %3368 = vmatpush1.msra.mxu0 0.0
    %3369 = vmatprep.subr.mxu0 0.0
    %3370 = vmatpush1.msra.mxu0 0.0
    %3371 = vmatprep.subr.mxu0 0.0
    %3372 = vmatpush1.msra.mxu0 0.0
    %3373 = vmatprep.subr.mxu0 0.0
    %3374 = vmatpush1.msra.mxu0 0.0
    %3375 = vmatprep.subr.mxu0 0.0
    %3376 = vmatpush1.msra.mxu0 0.0
    %3377 = vmatprep.subr.mxu0 0.0
    %3378 = vmatpush1.msra.mxu0 0.0
    %3379 = vmatprep.subr.mxu0 0.0
    %3380 = vmatpush1.msra.mxu0 0.0
    %3381 = vmatprep.subr.mxu0 0.0
    %3382 = vmatpush1.msra.mxu0 0.0
    %3383 = vmatprep.subr.mxu0 0.0
    %3384 = vmatpush1.msra.mxu0 0.0
    %3385 = vmatprep.subr.mxu0 0.0
    %3386 = vmatpush1.msra.mxu0 0.0
    %3387 = vmatprep.subr.mxu0 0.0
    %3388 = vmatpush1.msra.mxu0 0.0
    %3389 = vmatprep.subr.mxu0 0.0
    %3390 = vmatpush1.msra.mxu0 0.0
    %3391 = vmatprep.subr.mxu0 0.0
    %3392 = vmatpush1.msra.mxu0 0.0
    %3393 = vmatprep.subr.mxu0 0.0
    %3394 = vmatpush1.msra.mxu0 0.0
    %3395 = vmatprep.subr.mxu0 0.0
    %3396 = vmatpush1.msra.mxu0 0.0
    %3397 = vmatprep.subr.mxu0 0.0
    %3398 = vmatpush1.msra.mxu0 0.0
    %3399 = vmatprep.subr.mxu0 0.0
    %3400 = vmatpush1.msra.mxu0 0.0
    %3401 = vmatprep.subr.mxu0 0.0
    %3402 = vmatpush1.msra.mxu0 0.0
    %3403 = vmatprep.subr.mxu0 0.0
    %3404 = vmatpush1.msra.mxu0 0.0
    %3405 = vmatprep.subr.mxu0 0.0
    %3406 = vmatpush1.msra.mxu0 0.0
    %3407 = vmatprep.subr.mxu0 0.0
    %3408 = vmatpush1.msra.mxu0 0.0
    %3409 = vmatprep.subr.mxu0 0.0
    %3410 = vmatpush1.msra.mxu0 0.0
    %3411 = vmatprep.subr.mxu0 0.0
    %3412 = vmatpush1.msra.mxu0 0.0
    %3413 = vmatprep.mubr.f32.mxu0 0.0
    %3414 = vmatmul.mubr.f32.gmra.mrb[0].mxu0 %v3347
    %v3415 = vpop.f32.mrb[0].mxu0
    %v3416 = vadd.f32 0.0, %v3415
    %v3417 = vpop.f32.mrb[0].mxu0
    %3418 = vdwg.mxu0
    %3421 = vrot.lane.b32.xlu0 %v2676, 8
    %v3422 = vpop.permute.xlu0 %3421
    %3423 = vrot.lane.b32.xlu0 %v2752, 8
    %v3424 = vpop.permute.xlu0 %3423
    %3429 = vrot.lane.b32.xlu0 %v3008, 16
    %v3430 = vpop.permute.xlu0 %3429
    %3431 = vrot.lane.b32.xlu0 %v3084, 16
    %v3432 = vpop.permute.xlu0 %3431
    %3437 = vrot.lane.b32.xlu0 %v3340, 24
    %v3438 = vpop.permute.xlu0 %3437
    %3439 = vrot.lane.b32.xlu0 %v3416, 24
    %v3440 = vpop.permute.xlu0 %3439
    %v3443 = vsel %vm243, %v2344, %v3422
    %v3444 = vsel %vm243, %v2420, %v3424
    %v3445 = vsel %vm1595, %v3443, %v3430
    %v3446 = vsel %vm1595, %v3444, %v3432
    %v3447 = vsel %vm1598, %v3445, %v3438
    %v3448 = vsel %vm1598, %v3446, %v3440
    %s3449 = scalar_lea.vmem %s8, 32
    %v3450 = vld [vmem:[%s3449] sm:$0xff]
    %v3451 = vld [vmem:[%s3449 + $0x8] sm:$0xff]
    %v3452 = vld [vmem:[%s3449 + $0x10] sm:$0xff]
    %v3453 = vld [vmem:[%s3449 + $0x18] sm:$0xff]
    %s3454 = scalar_lea.vmem %s9, 1
    %v3455 = vld [vmem:[%s3454] sm:$0x1]
    %v3457 = vlaneseq
    %v3458 = vshrl.u32 %v3457, 7
    %v3459 = vsub.s32 0, %v3458
    %v3460 = vrot.slane %v3455, %v3459
    %v3463 = vsel %vm78, %v3447, 0
    %v3466 = vsel %vm78, %v3448, 0
    %3468 = vmatprep.subr.mxu0 0.0
    %3469 = vmatpush1.msra.mxu0 %v3450
    %3470 = vmatprep.subr.mxu0 0.0
    %3471 = vmatpush1.msra.mxu0 %v3451
    %3472 = vmatprep.subr.mxu0 0.0
    %3473 = vmatpush1.msra.mxu0 %v3452
    %3474 = vmatprep.subr.mxu0 0.0
    %3475 = vmatpush1.msra.mxu0 %v3453
    %3476 = vmatprep.subr.mxu0 0.0
    %3477 = vmatpush1.msra.mxu0 0.0
    %3478 = vmatprep.subr.mxu0 0.0
    %3479 = vmatpush1.msra.mxu0 0.0
    %3480 = vmatprep.subr.mxu0 0.0
    %3481 = vmatpush1.msra.mxu0 0.0
    %3482 = vmatprep.subr.mxu0 0.0
    %3483 = vmatpush1.msra.mxu0 0.0
    %3484 = vmatprep.subr.mxu0 0.0
    %3485 = vmatpush1.msra.mxu0 0.0
    %3486 = vmatprep.subr.mxu0 0.0
    %3487 = vmatpush1.msra.mxu0 0.0
    %3488 = vmatprep.subr.mxu0 0.0
    %3489 = vmatpush1.msra.mxu0 0.0
    %3490 = vmatprep.subr.mxu0 0.0
    %3491 = vmatpush1.msra.mxu0 0.0
    %3492 = vmatprep.subr.mxu0 0.0
    %3493 = vmatpush1.msra.mxu0 0.0
    %3494 = vmatprep.subr.mxu0 0.0
    %3495 = vmatpush1.msra.mxu0 0.0
    %3496 = vmatprep.subr.mxu0 0.0
    %3497 = vmatpush1.msra.mxu0 0.0
    %3498 = vmatprep.subr.mxu0 0.0
    %3499 = vmatpush1.msra.mxu0 0.0
    %3500 = vmatprep.subr.mxu0 0.0
    %3501 = vmatpush1.msra.mxu0 0.0
    %3502 = vmatprep.subr.mxu0 0.0
    %3503 = vmatpush1.msra.mxu0 0.0
    %3504 = vmatprep.subr.mxu0 0.0
    %3505 = vmatpush1.msra.mxu0 0.0
    %3506 = vmatprep.subr.mxu0 0.0
    %3507 = vmatpush1.msra.mxu0 0.0
    %3508 = vmatprep.subr.mxu0 0.0
    %3509 = vmatpush1.msra.mxu0 0.0
    %3510 = vmatprep.subr.mxu0 0.0
    %3511 = vmatpush1.msra.mxu0 0.0
    %3512 = vmatprep.subr.mxu0 0.0
    %3513 = vmatpush1.msra.mxu0 0.0
    %3514 = vmatprep.subr.mxu0 0.0
    %3515 = vmatpush1.msra.mxu0 0.0
    %3516 = vmatprep.subr.mxu0 0.0
    %3517 = vmatpush1.msra.mxu0 0.0
    %3518 = vmatprep.subr.mxu0 0.0
    %3519 = vmatpush1.msra.mxu0 0.0
    %3520 = vmatprep.subr.mxu0 0.0
    %3521 = vmatpush1.msra.mxu0 0.0
    %3522 = vmatprep.subr.mxu0 0.0
    %3523 = vmatpush1.msra.mxu0 0.0
    %3524 = vmatprep.subr.mxu0 0.0
    %3525 = vmatpush1.msra.mxu0 0.0
    %3526 = vmatprep.subr.mxu0 0.0
    %3527 = vmatpush1.msra.mxu0 0.0
    %3528 = vmatprep.subr.mxu0 0.0
    %3529 = vmatpush1.msra.mxu0 0.0
    %3530 = vmatprep.subr.mxu0 0.0
    %3531 = vmatpush1.msra.mxu0 0.0
    %3532 = vmatprep.mubr.f32.mxu0 0.0
    %3533 = vmatmul.mubr.f32.gmra.mrb[0].mxu0 %v3463
    %v3534 = vpop.f32.mrb[0].mxu0
    %v3535 = vadd.f32 %v3460, %v3534
    %v3536 = vpop.f32.mrb[0].mxu0
    %3537 = vmatprep.mubr.f32.mxu0 0.0
    %3538 = vmatmul.mubr.f32.gmra.mrb[0].mxu0 %v3466
    %v3539 = vpop.f32.mrb[0].mxu0
    %v3540 = vadd.f32 %v3460, %v3539
    %v3541 = vpop.f32.mrb[0].mxu0
    %3542 = vdwg.mxu0
    %v3543 = vadd.f32 %v1993, %v3535
    %v3544 = vadd.f32 %v1994, %v3540
    %s3545 = scalar_lea.vmem %s10, 1
    %v3546 = vld [vmem:[%s3545] sm:$0x1]
    %s3547 = scalar_lea.vmem %s11, 1
    %v3548 = vld [vmem:[%s3547] sm:$0x1]
    %v3549 = vsel %vm78, %v3543, 0.0
    %3550 = vadd.xlane.f32.xlu0 %v3549
    %v3551 = vpop.xlane.xlu0 %3550
    %v3552 = vsel %vm78, %v3544, 0.0
    %3553 = vadd.xlane.f32.xlu0 %v3552
    %v3554 = vpop.xlane.xlu0 %3553
    %v3555 = vmul.f32 %v3551, %v85
    %v3556 = vmul.f32 %v3554, %v85
    %v3557 = vsub.f32 %v3543, %v3555
    %v3558 = vsub.f32 %v3544, %v3556
    %v3559 = vmul.f32 %v3557, %v3557
    %v3560 = vmul.f32 %v3558, %v3558
    %v3561 = vsel %vm78, %v3559, 0.0
    %3562 = vadd.xlane.f32.xlu0 %v3561
    %v3563 = vpop.xlane.xlu0 %3562
    %v3564 = vsel %vm78, %v3560, 0.0
    %3565 = vadd.xlane.f32.xlu0 %v3564
    %v3566 = vpop.xlane.xlu0 %3565
    %v3567 = vmul.f32 %v3563, %v85
    %v3568 = vmul.f32 %v3566, %v85
    %v3569 = vadd.f32 %v3567, 1e-12
    %v3570 = vadd.f32 %v3568, 1e-12
    %v3571 = vrsqrt.pop %v3569
    %v3572 = vrsqrt.pop %v3570
    %v3573 = vmul.f32 %v3557, %v3571
    %v3574 = vmul.f32 %v3558, %v3572
    %v3576 = vlaneseq
    %v3577 = vshrl.u32 %v3576, 7
    %v3578 = vsub.s32 0, %v3577
    %v3579 = vrot.slane %v3546, %v3578
    %v3581 = vmul.f32 %v3573, %v3579
    %v3582 = vmul.f32 %v3574, %v3579
    %v3584 = vlaneseq
    %v3585 = vshrl.u32 %v3584, 7
    %v3586 = vsub.s32 0, %v3585
    %v3587 = vrot.slane %v3548, %v3586
    %v3589 = vadd.f32 %v3581, %v3587
    %v3590 = vadd.f32 %v3582, %v3587
    %s3591 = scalar_lea.vmem %s12, 32
    %v3592 = vld [vmem:[%s3591] sm:$0xff]
    %v3593 = vld [vmem:[%s3591 + $0x8] sm:$0xff]
    %v3594 = vld [vmem:[%s3591 + $0x10] sm:$0xff]
    %v3595 = vld [vmem:[%s3591 + $0x18] sm:$0xff]
    %s3596 = scalar_lea.vmem %s13, 1
    %v3597 = vld [vmem:[%s3596] sm:$0x1]
    %v3599 = vlaneseq
    %v3600 = vshrl.u32 %v3599, 7
    %v3601 = vsub.s32 0, %v3600
    %v3602 = vrot.slane %v3597, %v3601
    %v3605 = vsel %vm78, %v3589, 0
    %v3608 = vsel %vm78, %v3590, 0
    %3610 = vmatprep.subr.mxu0 0.0
    %3611 = vmatpush1.msra.mxu0 %v3592
    %3612 = vmatprep.subr.mxu0 0.0
    %3613 = vmatpush1.msra.mxu0 %v3593
    %3614 = vmatprep.subr.mxu0 0.0
    %3615 = vmatpush1.msra.mxu0 %v3594
    %3616 = vmatprep.subr.mxu0 0.0
    %3617 = vmatpush1.msra.mxu0 %v3595
    %3618 = vmatprep.subr.mxu0 0.0
    %3619 = vmatpush1.msra.mxu0 0.0
    %3620 = vmatprep.subr.mxu0 0.0
    %3621 = vmatpush1.msra.mxu0 0.0
    %3622 = vmatprep.subr.mxu0 0.0
    %3623 = vmatpush1.msra.mxu0 0.0
    %3624 = vmatprep.subr.mxu0 0.0
    %3625 = vmatpush1.msra.mxu0 0.0
    %3626 = vmatprep.subr.mxu0 0.0
    %3627 = vmatpush1.msra.mxu0 0.0
    %3628 = vmatprep.subr.mxu0 0.0
    %3629 = vmatpush1.msra.mxu0 0.0
    %3630 = vmatprep.subr.mxu0 0.0
    %3631 = vmatpush1.msra.mxu0 0.0
    %3632 = vmatprep.subr.mxu0 0.0
    %3633 = vmatpush1.msra.mxu0 0.0
    %3634 = vmatprep.subr.mxu0 0.0
    %3635 = vmatpush1.msra.mxu0 0.0
    %3636 = vmatprep.subr.mxu0 0.0
    %3637 = vmatpush1.msra.mxu0 0.0
    %3638 = vmatprep.subr.mxu0 0.0
    %3639 = vmatpush1.msra.mxu0 0.0
    %3640 = vmatprep.subr.mxu0 0.0
    %3641 = vmatpush1.msra.mxu0 0.0
    %3642 = vmatprep.subr.mxu0 0.0
    %3643 = vmatpush1.msra.mxu0 0.0
    %3644 = vmatprep.subr.mxu0 0.0
    %3645 = vmatpush1.msra.mxu0 0.0
    %3646 = vmatprep.subr.mxu0 0.0
    %3647 = vmatpush1.msra.mxu0 0.0
    %3648 = vmatprep.subr.mxu0 0.0
    %3649 = vmatpush1.msra.mxu0 0.0
    %3650 = vmatprep.subr.mxu0 0.0
    %3651 = vmatpush1.msra.mxu0 0.0
    %3652 = vmatprep.subr.mxu0 0.0
    %3653 = vmatpush1.msra.mxu0 0.0
    %3654 = vmatprep.subr.mxu0 0.0
    %3655 = vmatpush1.msra.mxu0 0.0
    %3656 = vmatprep.subr.mxu0 0.0
    %3657 = vmatpush1.msra.mxu0 0.0
    %3658 = vmatprep.subr.mxu0 0.0
    %3659 = vmatpush1.msra.mxu0 0.0
    %3660 = vmatprep.subr.mxu0 0.0
    %3661 = vmatpush1.msra.mxu0 0.0
    %3662 = vmatprep.subr.mxu0 0.0
    %3663 = vmatpush1.msra.mxu0 0.0
    %3664 = vmatprep.subr.mxu0 0.0
    %3665 = vmatpush1.msra.mxu0 0.0
    %3666 = vmatprep.subr.mxu0 0.0
    %3667 = vmatpush1.msra.mxu0 0.0
    %3668 = vmatprep.subr.mxu0 0.0
    %3669 = vmatpush1.msra.mxu0 0.0
    %3670 = vmatprep.subr.mxu0 0.0
    %3671 = vmatpush1.msra.mxu0 0.0
    %3672 = vmatprep.subr.mxu0 0.0
    %3673 = vmatpush1.msra.mxu0 0.0
    %3674 = vmatprep.mubr.f32.mxu0 0.0
    %3675 = vmatmul.mubr.f32.gmra.mrb[0].mxu0 %v3605
    %v3676 = vpop.f32.mrb[0].mxu0
    %v3677 = vadd.f32 %v3602, %v3676
    %v3678 = vpop.f32.mrb[0].mxu0
    %3679 = vmatprep.mubr.f32.mxu0 0.0
    %3680 = vmatmul.mubr.f32.gmra.mrb[0].mxu0 %v3608
    %v3681 = vpop.f32.mrb[0].mxu0
    %v3682 = vadd.f32 %v3602, %v3681
    %v3683 = vpop.f32.mrb[0].mxu0
    %3684 = vdwg.mxu0
    %v3685 = vmul.f32 %v3677, %v3677
    %v3686 = vmul.f32 %v3682, %v3682
    %v3687 = vmul.f32 %v3677, %v3685
    %v3688 = vmul.f32 %v3682, %v3686
    %v3689 = vmul.f32 %v3687, 0.044715
    %v3690 = vmul.f32 %v3688, 0.044715
    %v3691 = vadd.f32 %v3677, %v3689
    %v3692 = vadd.f32 %v3682, %v3690
    %v3693 = vmul.f32 %v3691, 0.7978846
    %v3694 = vmul.f32 %v3692, 0.7978846
    %v3695 = vtanh.pop %v3693
    %v3696 = vtanh.pop %v3694
    %v3697 = vadd.f32 %v3695, 1.0
    %v3698 = vadd.f32 %v3696, 1.0
    %v3699 = vmul.f32 %v3697, 0.5
    %v3700 = vmul.f32 %v3698, 0.5
    %v3701 = vmul.f32 %v3677, %v3699
    %v3702 = vmul.f32 %v3682, %v3700
    %s3703 = scalar_lea.vmem %s14, 128
    %v3704 = vld [vmem:[%s3703] sm:$0xff]
    %v3705 = vld [vmem:[%s3703 + $0x8] sm:$0xff]
    %v3706 = vld [vmem:[%s3703 + $0x10] sm:$0xff]
    %v3707 = vld [vmem:[%s3703 + $0x18] sm:$0xff]
    %v3708 = vld [vmem:[%s3703 + $0x20] sm:$0xff]
    %v3709 = vld [vmem:[%s3703 + $0x28] sm:$0xff]
    %v3710 = vld [vmem:[%s3703 + $0x30] sm:$0xff]
    %v3711 = vld [vmem:[%s3703 + $0x38] sm:$0xff]
    %v3712 = vld [vmem:[%s3703 + $0x40] sm:$0xff]
    %v3713 = vld [vmem:[%s3703 + $0x48] sm:$0xff]
    %v3714 = vld [vmem:[%s3703 + $0x50] sm:$0xff]
    %v3715 = vld [vmem:[%s3703 + $0x58] sm:$0xff]
    %v3716 = vld [vmem:[%s3703 + $0x60] sm:$0xff]
    %v3717 = vld [vmem:[%s3703 + $0x68] sm:$0xff]
    %v3718 = vld [vmem:[%s3703 + $0x70] sm:$0xff]
    %v3719 = vld [vmem:[%s3703 + $0x78] sm:$0xff]
    %s3720 = scalar_lea.vmem %s15, 1
    %v3721 = vld [vmem:[%s3720] sm:$0x1]
    %v3723 = vlaneseq
    %v3724 = vshrl.u32 %v3723, 7
    %v3725 = vsub.s32 0, %v3724
    %v3726 = vrot.slane %v3721, %v3725
    %3728 = vmatprep.subr.mxu0 0.0
    %3729 = vmatpush1.msra.mxu0 %v3704
    %3730 = vmatprep.subr.mxu0 0.0
    %3731 = vmatpush1.msra.mxu0 %v3705
    %3732 = vmatprep.subr.mxu0 0.0
    %3733 = vmatpush1.msra.mxu0 %v3706
    %3734 = vmatprep.subr.mxu0 0.0
    %3735 = vmatpush1.msra.mxu0 %v3707
    %3736 = vmatprep.subr.mxu0 0.0
    %3737 = vmatpush1.msra.mxu0 %v3708
    %3738 = vmatprep.subr.mxu0 0.0
    %3739 = vmatpush1.msra.mxu0 %v3709
    %3740 = vmatprep.subr.mxu0 0.0
    %3741 = vmatpush1.msra.mxu0 %v3710
    %3742 = vmatprep.subr.mxu0 0.0
    %3743 = vmatpush1.msra.mxu0 %v3711
    %3744 = vmatprep.subr.mxu0 0.0
    %3745 = vmatpush1.msra.mxu0 %v3712
    %3746 = vmatprep.subr.mxu0 0.0
    %3747 = vmatpush1.msra.mxu0 %v3713
    %3748 = vmatprep.subr.mxu0 0.0
    %3749 = vmatpush1.msra.mxu0 %v3714
    %3750 = vmatprep.subr.mxu0 0.0
    %3751 = vmatpush1.msra.mxu0 %v3715
    %3752 = vmatprep.subr.mxu0 0.0
    %3753 = vmatpush1.msra.mxu0 %v3716
    %3754 = vmatprep.subr.mxu0 0.0
    %3755 = vmatpush1.msra.mxu0 %v3717
    %3756 = vmatprep.subr.mxu0 0.0
    %3757 = vmatpush1.msra.mxu0 %v3718
    %3758 = vmatprep.subr.mxu0 0.0
    %3759 = vmatpush1.msra.mxu0 %v3719
    %3760 = vmatprep.subr.mxu0 0.0
    %3761 = vmatpush1.msra.mxu0 0.0
    %3762 = vmatprep.subr.mxu0 0.0
    %3763 = vmatpush1.msra.mxu0 0.0
    %3764 = vmatprep.subr.mxu0 0.0
    %3765 = vmatpush1.msra.mxu0 0.0
    %3766 = vmatprep.subr.mxu0 0.0
    %3767 = vmatpush1.msra.mxu0 0.0
    %3768 = vmatprep.subr.mxu0 0.0
    %3769 = vmatpush1.msra.mxu0 0.0
    %3770 = vmatprep.subr.mxu0 0.0
    %3771 = vmatpush1.msra.mxu0 0.0
    %3772 = vmatprep.subr.mxu0 0.0
    %3773 = vmatpush1.msra.mxu0 0.0
    %3774 = vmatprep.subr.mxu0 0.0
    %3775 = vmatpush1.msra.mxu0 0.0
    %3776 = vmatprep.subr.mxu0 0.0
    %3777 = vmatpush1.msra.mxu0 0.0
    %3778 = vmatprep.subr.mxu0 0.0
    %3779 = vmatpush1.msra.mxu0 0.0
    %3780 = vmatprep.subr.mxu0 0.0
    %3781 = vmatpush1.msra.mxu0 0.0
    %3782 = vmatprep.subr.mxu0 0.0
    %3783 = vmatpush1.msra.mxu0 0.0
    %3784 = vmatprep.subr.mxu0 0.0
    %3785 = vmatpush1.msra.mxu0 0.0
    %3786 = vmatprep.subr.mxu0 0.0
    %3787 = vmatpush1.msra.mxu0 0.0
    %3788 = vmatprep.subr.mxu0 0.0
    %3789 = vmatpush1.msra.mxu0 0.0
    %3790 = vmatprep.subr.mxu0 0.0
    %3791 = vmatpush1.msra.mxu0 0.0
    %3792 = vmatprep.mubr.f32.mxu0 0.0
    %3793 = vmatmul.mubr.f32.gmra.mrb[0].mxu0 %v3701
    %v3794 = vpop.f32.mrb[0].mxu0
    %v3795 = vadd.f32 %v3726, %v3794
    %v3796 = vpop.f32.mrb[0].mxu0
    %3797 = vmatprep.mubr.f32.mxu0 0.0
    %3798 = vmatmul.mubr.f32.gmra.mrb[0].mxu0 %v3702
    %v3799 = vpop.f32.mrb[0].mxu0
    %v3800 = vadd.f32 %v3726, %v3799
    %v3801 = vpop.f32.mrb[0].mxu0
    %3802 = vdwg.mxu0
    %v3803 = vadd.f32 %v3589, %v3795
    %v3804 = vadd.f32 %v3590, %v3800
    %s3805 = scalar_lea.vmem %s16, 1
    %v3806 = vld [vmem:[%s3805] sm:$0x1]
    %s3807 = scalar_lea.vmem %s17, 1
    %v3808 = vld [vmem:[%s3807] sm:$0x1]
    %v3809 = vsel %vm78, %v3803, 0.0
    %3810 = vadd.xlane.f32.xlu0 %v3809
    %v3811 = vpop.xlane.xlu0 %3810
    %v3812 = vsel %vm78, %v3804, 0.0
    %3813 = vadd.xlane.f32.xlu0 %v3812
    %v3814 = vpop.xlane.xlu0 %3813
    %v3815 = vmul.f32 %v3811, %v85
    %v3816 = vmul.f32 %v3814, %v85
    %v3817 = vsub.f32 %v3803, %v3815
    %v3818 = vsub.f32 %v3804, %v3816
    %v3819 = vmul.f32 %v3817, %v3817
    %v3820 = vmul.f32 %v3818, %v3818
    %v3821 = vsel %vm78, %v3819, 0.0
    %3822 = vadd.xlane.f32.xlu0 %v3821
    %v3823 = vpop.xlane.xlu0 %3822
    %v3824 = vsel %vm78, %v3820, 0.0
    %3825 = vadd.xlane.f32.xlu0 %v3824
    %v3826 = vpop.xlane.xlu0 %3825
    %v3827 = vmul.f32 %v3823, %v85
    %v3828 = vmul.f32 %v3826, %v85
    %v3829 = vadd.f32 %v3827, 1e-12
    %v3830 = vadd.f32 %v3828, 1e-12
    %v3831 = vrsqrt.pop %v3829
    %v3832 = vrsqrt.pop %v3830
    %v3833 = vmul.f32 %v3817, %v3831
    %v3834 = vmul.f32 %v3818, %v3832
    %v3836 = vlaneseq
    %v3837 = vshrl.u32 %v3836, 7
    %v3838 = vsub.s32 0, %v3837
    %v3839 = vrot.slane %v3806, %v3838
    %v3841 = vmul.f32 %v3833, %v3839
    %v3842 = vmul.f32 %v3834, %v3839
    %v3844 = vlaneseq
    %v3845 = vshrl.u32 %v3844, 7
    %v3846 = vsub.s32 0, %v3845
    %v3847 = vrot.slane %v3808, %v3846
    %v3849 = vadd.f32 %v3841, %v3847
    %v3850 = vadd.f32 %v3842, %v3847
    %v3851 = vmul.f32 %v3849, %v125
    %v3852 = vmul.f32 %v3850, %v130
    %v3853 = vld [vmem:[%s3] sm:$0x3]
    %v3855 = vsel %vm1595, %v3853, 0
    %3857 = vmatprep.subr.mxu0 0.0
    %3858 = vmatpush1.msra.mxu0 %v3851
    %3859 = vmatprep.subr.mxu0 0.0
    %3860 = vmatpush1.msra.mxu0 %v3852
    %3861 = vmatprep.subr.mxu0 0.0
    %3862 = vmatpush1.msra.mxu0 0.0
    %3863 = vmatprep.subr.mxu0 0.0
    %3864 = vmatpush1.msra.mxu0 0.0
    %3865 = vmatprep.subr.mxu0 0.0
    %3866 = vmatpush1.msra.mxu0 0.0
    %3867 = vmatprep.subr.mxu0 0.0
    %3868 = vmatpush1.msra.mxu0 0.0
    %3869 = vmatprep.subr.mxu0 0.0
    %3870 = vmatpush1.msra.mxu0 0.0
    %3871 = vmatprep.subr.mxu0 0.0
    %3872 = vmatpush1.msra.mxu0 0.0
    %3873 = vmatprep.subr.mxu0 0.0
    %3874 = vmatpush1.msra.mxu0 0.0
    %3875 = vmatprep.subr.mxu0 0.0
    %3876 = vmatpush1.msra.mxu0 0.0
    %3877 = vmatprep.subr.mxu0 0.0
    %3878 = vmatpush1.msra.mxu0 0.0
    %3879 = vmatprep.subr.mxu0 0.0
    %3880 = vmatpush1.msra.mxu0 0.0
    %3881 = vmatprep.subr.mxu0 0.0
    %3882 = vmatpush1.msra.mxu0 0.0
    %3883 = vmatprep.subr.mxu0 0.0
    %3884 = vmatpush1.msra.mxu0 0.0
    %3885 = vmatprep.subr.mxu0 0.0
    %3886 = vmatpush1.msra.mxu0 0.0
    %3887 = vmatprep.subr.mxu0 0.0
    %3888 = vmatpush1.msra.mxu0 0.0
    %3889 = vmatprep.subr.mxu0 0.0
    %3890 = vmatpush1.msra.mxu0 0.0
    %3891 = vmatprep.subr.mxu0 0.0
    %3892 = vmatpush1.msra.mxu0 0.0
    %3893 = vmatprep.subr.mxu0 0.0
    %3894 = vmatpush1.msra.mxu0 0.0
    %3895 = vmatprep.subr.mxu0 0.0
    %3896 = vmatpush1.msra.mxu0 0.0
    %3897 = vmatprep.subr.mxu0 0.0
    %3898 = vmatpush1.msra.mxu0 0.0
    %3899 = vmatprep.subr.mxu0 0.0
    %3900 = vmatpush1.msra.mxu0 0.0
    %3901 = vmatprep.subr.mxu0 0.0
    %3902 = vmatpush1.msra.mxu0 0.0
    %3903 = vmatprep.subr.mxu0 0.0
    %3904 = vmatpush1.msra.mxu0 0.0
    %3905 = vmatprep.subr.mxu0 0.0
    %3906 = vmatpush1.msra.mxu0 0.0
    %3907 = vmatprep.subr.mxu0 0.0
    %3908 = vmatpush1.msra.mxu0 0.0
    %3909 = vmatprep.subr.mxu0 0.0
    %3910 = vmatpush1.msra.mxu0 0.0
    %3911 = vmatprep.subr.mxu0 0.0
    %3912 = vmatpush1.msra.mxu0 0.0
    %3913 = vmatprep.subr.mxu0 0.0
    %3914 = vmatpush1.msra.mxu0 0.0
    %3915 = vmatprep.subr.mxu0 0.0
    %3916 = vmatpush1.msra.mxu0 0.0
    %3917 = vmatprep.subr.mxu0 0.0
    %3918 = vmatpush1.msra.mxu0 0.0
    %3919 = vmatprep.subr.mxu0 0.0
    %3920 = vmatpush1.msra.mxu0 0.0
    %3921 = vmatprep.mubr.f32.mxu0 0.0
    %3922 = vmatmul.mubr.f32.gmra.mrb[0].mxu0 %v3855
    %v3923 = vpop.f32.mrb[0].mxu0
    %v3924 = vadd.f32 0.0, %v3923
    %v3925 = vpop.f32.mrb[0].mxu0
    %3926 = vdwg.mxu0
    %v3927 = vld [vmem:[%s18] sm:$0xff]
    %v3928 = vld [vmem:[%s18 + $0x8] sm:$0xff]
    %v3929 = vld [vmem:[%s18 + $0x10] sm:$0xff]
    %v3930 = vld [vmem:[%s18 + $0x18] sm:$0xff]
    %v3931 = vld [vmem:[%s19] sm:$0x1]
    %v3933 = vlaneseq
    %v3934 = vshrl.u32 %v3933, 7
    %v3935 = vsub.s32 0, %v3934
    %v3936 = vrot.slane %v3931, %v3935
    %v3939 = vsel %vm78, %v3924, 0
    %3941 = vmatprep.subr.mxu0 0.0
    %3942 = vmatpush1.msra.mxu0 %v3927
    %3943 = vmatprep.subr.mxu0 0.0
    %3944 = vmatpush1.msra.mxu0 %v3928
    %3945 = vmatprep.subr.mxu0 0.0
    %3946 = vmatpush1.msra.mxu0 %v3929
    %3947 = vmatprep.subr.mxu0 0.0
    %3948 = vmatpush1.msra.mxu0 %v3930
    %3949 = vmatprep.subr.mxu0 0.0
    %3950 = vmatpush1.msra.mxu0 0.0
    %3951 = vmatprep.subr.mxu0 0.0
    %3952 = vmatpush1.msra.mxu0 0.0
    %3953 = vmatprep.subr.mxu0 0.0
    %3954 = vmatpush1.msra.mxu0 0.0
    %3955 = vmatprep.subr.mxu0 0.0
    %3956 = vmatpush1.msra.mxu0 0.0
    %3957 = vmatprep.subr.mxu0 0.0
    %3958 = vmatpush1.msra.mxu0 0.0
    %3959 = vmatprep.subr.mxu0 0.0
    %3960 = vmatpush1.msra.mxu0 0.0
    %3961 = vmatprep.subr.mxu0 0.0
    %3962 = vmatpush1.msra.mxu0 0.0
    %3963 = vmatprep.subr.mxu0 0.0
    %3964 = vmatpush1.msra.mxu0 0.0
    %3965 = vmatprep.subr.mxu0 0.0
    %3966 = vmatpush1.msra.mxu0 0.0
    %3967 = vmatprep.subr.mxu0 0.0
    %3968 = vmatpush1.msra.mxu0 0.0
    %3969 = vmatprep.subr.mxu0 0.0
    %3970 = vmatpush1.msra.mxu0 0.0
    %3971 = vmatprep.subr.mxu0 0.0
    %3972 = vmatpush1.msra.mxu0 0.0
    %3973 = vmatprep.subr.mxu0 0.0
    %3974 = vmatpush1.msra.mxu0 0.0
    %3975 = vmatprep.subr.mxu0 0.0
    %3976 = vmatpush1.msra.mxu0 0.0
    %3977 = vmatprep.subr.mxu0 0.0
    %3978 = vmatpush1.msra.mxu0 0.0
    %3979 = vmatprep.subr.mxu0 0.0
    %3980 = vmatpush1.msra.mxu0 0.0
    %3981 = vmatprep.subr.mxu0 0.0
    %3982 = vmatpush1.msra.mxu0 0.0
    %3983 = vmatprep.subr.mxu0 0.0
    %3984 = vmatpush1.msra.mxu0 0.0
    %3985 = vmatprep.subr.mxu0 0.0
    %3986 = vmatpush1.msra.mxu0 0.0
    %3987 = vmatprep.subr.mxu0 0.0
    %3988 = vmatpush1.msra.mxu0 0.0
    %3989 = vmatprep.subr.mxu0 0.0
    %3990 = vmatpush1.msra.mxu0 0.0
    %3991 = vmatprep.subr.mxu0 0.0
    %3992 = vmatpush1.msra.mxu0 0.0
    %3993 = vmatprep.subr.mxu0 0.0
    %3994 = vmatpush1.msra.mxu0 0.0
    %3995 = vmatprep.subr.mxu0 0.0
    %3996 = vmatpush1.msra.mxu0 0.0
    %3997 = vmatprep.subr.mxu0 0.0
    %3998 = vmatpush1.msra.mxu0 0.0
    %3999 = vmatprep.subr.mxu0 0.0
    %4000 = vmatpush1.msra.mxu0 0.0
    %4001 = vmatprep.subr.mxu0 0.0
    %4002 = vmatpush1.msra.mxu0 0.0
    %4003 = vmatprep.subr.mxu0 0.0
    %4004 = vmatpush1.msra.mxu0 0.0
    %4005 = vmatprep.mubr.f32.mxu0 0.0
    %4006 = vmatmul.mubr.f32.gmra.mrb[0].mxu0 %v3939
    %v4007 = vpop.f32.mrb[0].mxu0
    %v4008 = vadd.f32 %v3936, %v4007
    %v4009 = vpop.f32.mrb[0].mxu0
    %4010 = vdwg.mxu0
    %4011 = vst [vmem:[#allocation2] sm:$0x3] %v4008
    // Predicated region
    $region82: #{xlm_model_forward.1} parent=1 // pred_check
      _
    $region83: #{xlm_model_forward.1} parent=1 // pred_check_branch
      %4013 = sbr.rel (0) target = $region85
    $region84: #{xlm_model_forward.1} parent=1 // pred_region
      %s4015 = ssub.s32 32, 32
      %4016 = vsyncadd [#allocation3], %s4015
      %s4018 = sshll.u32 [#allocation2], 4
      %s4019 = int_to_ptr.vmem [resolvable:$true] %s4018
      %4021 = dma.vmem_to_hbm [thread:$0]  %s4019, 32, %s20, [#allocation3]
    $region85: #{xlm_model_forward.1} parent=1 // pred_fallthru
      _
    // Predicated region
    $region86: #{xlm_model_forward.1} parent=1 // pred_check
      _
    $region87: #{xlm_model_forward.1} parent=1 // pred_check_branch
      %4023 = sbr.rel (0) target = $region89
    $region88: #{xlm_model_forward.1} parent=1 // pred_region
      %4024 = dma.done [#allocation3], 32
    $region89: #{xlm_model_forward.1} parent=1 // pred_fallthru
      _
    %4025 = vsyncpa [#allocation3], 1

</llo_original>
